<compile_context>
chip_gen: v6e
topology: v6e:2x2x1
jax: 0.10.0
libtpu: 0.0.40
codegen_flags: <defaults>
</compile_context>

<pallas_src>
import jax
import jax.numpy as jnp
from jax.experimental import pallas as pl
from jax.experimental.pallas import tpu as pltpu


# ----------------------------------------------------------------------------
# Fused Pallas kernel: [concat + pad + conv3x3 + BN + ReLU] x 2, one batch elem
# ----------------------------------------------------------------------------
def _im2col_3x3(xp, H, W, C):
    """xp: (H+2, W+2, C) zero-padded tile -> (H*W, 9*C) im2col patches.

    K ordering is (kw, kh, c); the wrapper permutes the OIHW weights to match.
    Both concatenations are along the last (lane) axis.
    """
    rows = jnp.concatenate([xp[0:H], xp[1:H + 1], xp[2:H + 2]], axis=-1)
    cols = jnp.concatenate(
        [rows[:, 0:W], rows[:, 1:W + 1], rows[:, 2:W + 2]], axis=-1)
    return cols.reshape(H * W, 9 * C)


def _up_double_conv_kernel(x2_ref, x1_ref, w1_ref, sh1_ref, w2_ref, sh2_ref,
                           o_ref, xp1_ref, xp2_ref):
    # x2_ref : (1, H, W, C2)        skip connection (NHWC)
    # x1_ref : (1, H, W, C2)        upsampled low-res features (NHWC)
    # w1_ref : (9*Cin, Cmid)        conv1 weights, BN scale folded in
    # sh1_ref: (1, Cmid)            conv1 folded bias / BN shift
    # w2_ref : (9*Cmid, Cout)       conv2 weights, BN scale folded in
    # sh2_ref: (1, Cout)            conv2 folded bias / BN shift
    # o_ref  : (1, H, W, Cout)
    # xp1_ref: VMEM (H+2, W+2, Cin)  scratch: padded, channel-concat input
    # xp2_ref: VMEM (H+2, W+2, Cmid) scratch: padded mid activation
    H = o_ref.shape[1]
    W = o_ref.shape[2]
    Cin = xp1_ref.shape[2]
    Cmid = xp2_ref.shape[2]
    Cout = o_ref.shape[3]

    # Channel concat [x2, x1] + 1-pixel zero halo built directly in VMEM
    # (replaces the HBM jnp.concatenate + jnp.pad of the unfused version).
    xp1_ref[...] = jnp.zeros_like(xp1_ref)
    xp1_ref[1:H + 1, 1:W + 1, :] = jnp.concatenate(
        [x2_ref[0], x1_ref[0]], axis=-1)

    # conv1 (3x3, pad=1) as a single im2col matmul; folded-BN shift + ReLU.
    p1 = _im2col_3x3(xp1_ref[...], H, W, Cin)                  # (H*W, 9*Cin)
    h = jnp.dot(p1, w1_ref[...], preferred_element_type=jnp.float32)
    h = jnp.maximum(h + sh1_ref[0], 0.0)                       # (H*W, Cmid)

    # Re-pad the mid activation in VMEM (never touches HBM) and run conv2.
    xp2_ref[...] = jnp.zeros_like(xp2_ref)
    xp2_ref[1:H + 1, 1:W + 1, :] = h.reshape(H, W, Cmid)

    p2 = _im2col_3x3(xp2_ref[...], H, W, Cmid)                 # (H*W, 9*Cmid)
    y = jnp.dot(p2, w2_ref[...], preferred_element_type=jnp.float32)
    y = jnp.maximum(y + sh2_ref[0], 0.0)
    o_ref[0] = y.reshape(H, W, Cout)


def up_double_conv(x2_nhwc, x1u_nhwc, w1k, sh1, w2k, sh2):
    """x2/x1u: (N,H,W,C2) f32; w1k: (9*2C2, Cmid); w2k: (9*Cmid, Cout)."""
    N, H, W, C2 = x2_nhwc.shape
    Cin = 2 * C2
    Cmid = w1k.shape[1]
    Cout = w2k.shape[1]
    return pl.pallas_call(
        _up_double_conv_kernel,
        out_shape=jax.ShapeDtypeStruct((N, H, W, Cout), jnp.float32),
        grid=(N,),
        in_specs=[
            pl.BlockSpec((1, H, W, C2), lambda n: (n, 0, 0, 0)),   # x2 skip
            pl.BlockSpec((1, H, W, C2), lambda n: (n, 0, 0, 0)),   # x1 upsampled
            pl.BlockSpec((9 * Cin, Cmid), lambda n: (0, 0)),       # w1 (folded)
            pl.BlockSpec((1, Cmid), lambda n: (0, 0)),             # shift1
            pl.BlockSpec((9 * Cmid, Cout), lambda n: (0, 0)),      # w2 (folded)
            pl.BlockSpec((1, Cout), lambda n: (0, 0)),             # shift2
        ],
        out_specs=pl.BlockSpec((1, H, W, Cout), lambda n: (n, 0, 0, 0)),
        scratch_shapes=[
            pltpu.VMEM((H + 2, W + 2, Cin), jnp.float32),
            pltpu.VMEM((H + 2, W + 2, Cmid), jnp.float32),
        ],
        compiler_params=pltpu.CompilerParams(
            dimension_semantics=("parallel",)),
    )(x2_nhwc, x1u_nhwc, w1k, sh1, w2k, sh2)


# ----------------------------------------------------------------------------
# Glue: bilinear upsample matrix (align_corners=True), BN folding
# ----------------------------------------------------------------------------
def _interp_matrix(n_out, n_in):
    """(n_out, n_in) row-stochastic bilinear matrix, align_corners=True."""
    if n_in == 1:
        return jnp.ones((n_out, 1), jnp.float32)
    src = jnp.arange(n_out, dtype=jnp.float32) * (n_in - 1) / (n_out - 1)
    i0 = jnp.clip(jnp.floor(src).astype(jnp.int32), 0, n_in - 2)
    frac = src - i0.astype(jnp.float32)
    rows = jnp.arange(n_out)
    m = jnp.zeros((n_out, n_in), jnp.float32)
    m = m.at[rows, i0].add(1.0 - frac)
    m = m.at[rows, i0 + 1].add(frac)
    return m


def _fold_bn(bias, gamma, beta, mean, var, eps):
    scale = gamma / jnp.sqrt(var + eps)
    shift = (bias - mean) * scale + beta
    return scale, shift


def _fold_weight(w_oihw, scale):
    """OIHW conv weight -> (9*Cin, Cout), K ordered (kw, kh, c), BN scale folded."""
    cout = w_oihw.shape[0]
    cin = w_oihw.shape[1]
    wt = jnp.transpose(w_oihw, (3, 2, 1, 0)) * scale       # (KW, KH, I, O)
    return wt.reshape(9 * cin, cout).astype(jnp.float32)


# ----------------------------------------------------------------------------
# Up.forward wrapper
# ----------------------------------------------------------------------------
@jax.jit
def up_forward(x1_nchw, x2_nchw, params):
    N, C2, H2, W2 = x2_nchw.shape

    # 1) bilinear x2 upsample of x1 (align_corners=True), emitted directly NHWC
    ah = _interp_matrix(2 * x1_nchw.shape[2], x1_nchw.shape[2])
    aw = _interp_matrix(2 * x1_nchw.shape[3], x1_nchw.shape[3])
    x1u = jnp.einsum('ih,nchw,jw->nijc', ah, x1_nchw, aw,
                     precision=jax.lax.Precision.HIGHEST)

    # 2) F.pad([left, right, top, bottom]) to x2's spatial size (no-op if equal)
    dy = H2 - x1u.shape[1]
    dx = W2 - x1u.shape[2]
    if dy or dx:
        x1u = jnp.pad(x1u, ((0, 0), (dy // 2, dy - dy // 2),
                            (dx // 2, dx - dx // 2), (0, 0)))

    x2_nhwc = jnp.transpose(x2_nchw, (0, 2, 3, 1))

    # 3) fold eval-mode BN: scale into weights, shift as the epilogue bias
    p = params
    s1, sh1 = _fold_bn(p['b1'], p['g1'], p['be1'], p['m1'], p['v1'], p['eps'])
    s2, sh2 = _fold_bn(p['b2'], p['g2'], p['be2'], p['m2'], p['v2'], p['eps'])
    w1k = _fold_weight(p['w1'], s1)
    w2k = _fold_weight(p['w2'], s2)
    cmid = p['w1'].shape[0]
    cout = p['w2'].shape[0]

    # 4) fused concat + pad + DoubleConv in one Pallas kernel (NHWC inside)
    y = up_double_conv(x2_nhwc, x1u, w1k,
                       sh1.reshape(1, cmid).astype(jnp.float32),
                       w2k,
                       sh2.reshape(1, cout).astype(jnp.float32))
    return jnp.transpose(y, (0, 3, 1, 2))  # back to NCHW (PyTorch interface)


# ----------------------------------------------------------------------------
# Parameters (deterministic, synthetic)
# ----------------------------------------------------------------------------
def make_up_params(key, in_channels, out_channels):
    mid = in_channels // 2
    ks = jax.random.split(key, 12)
    eps = 1e-5

    def conv_w(k, cout, cin):
        return 0.1 * jax.random.normal(k, (cout, cin, 3, 3), jnp.float32)

    return dict(
        w1=conv_w(ks[0], mid, in_channels),
        b1=0.1 * jax.random.normal(ks[1], (mid,), jnp.float32),
        g1=1.0 + 0.1 * jax.random.normal(ks[2], (mid,), jnp.float32),
        be1=0.1 * jax.random.normal(ks[3], (mid,), jnp.float32),
        m1=0.1 * jax.random.normal(ks[4], (mid,), jnp.float32),
        v1=jnp.abs(jax.random.normal(ks[5], (mid,), jnp.float32)) + 0.5,
        w2=conv_w(ks[6], out_channels, mid),
        b2=0.1 * jax.random.normal(ks[7], (out_channels,), jnp.float32),
        g2=1.0 + 0.1 * jax.random.normal(ks[8], (out_channels,), jnp.float32),
        be2=0.1 * jax.random.normal(ks[9], (out_channels,), jnp.float32),
        m2=0.1 * jax.random.normal(ks[10], (out_channels,), jnp.float32),
        v2=jnp.abs(jax.random.normal(ks[11], (out_channels,), jnp.float32)) + 0.5,
        eps=eps,
    )


# ----------------------------------------------------------------------------
# Pure-JAX reference (for self-consistency check)
# ----------------------------------------------------------------------------
def up_forward_ref(x1, x2, p):
    ah = _interp_matrix(2 * x1.shape[2], x1.shape[2])
    aw = _interp_matrix(2 * x1.shape[3], x1.shape[3])
    x1u = jnp.einsum('ih,nchw,jw->ncij', ah, x1, aw,
                     precision=jax.lax.Precision.HIGHEST)
    dy = x2.shape[2] - x1u.shape[2]
    dx = x2.shape[3] - x1u.shape[3]
    x1p = jnp.pad(x1u, ((0, 0), (0, 0),
                        (dy // 2, dy - dy // 2), (dx // 2, dx - dx // 2)))
    x = jnp.concatenate([x2, x1p], axis=1)

    def conv_bn_relu(x, w, b, g, be, m, v):
        y = jax.lax.conv_general_dilated(
            x, w, (1, 1), ((1, 1), (1, 1)),
            dimension_numbers=('NCHW', 'OIHW', 'NCHW'))
        y = y + b[None, :, None, None]
        y = (y - m[None, :, None, None]) / jnp.sqrt(
            v[None, :, None, None] + p['eps'])
        y = y * g[None, :, None, None] + be[None, :, None, None]
        return jnp.maximum(y, 0.0)

    h = conv_bn_relu(x, p['w1'], p['b1'], p['g1'], p['be1'], p['m1'], p['v1'])
    return conv_bn_relu(h, p['w2'], p['b2'], p['g2'], p['be2'], p['m2'], p['v2'])


if __name__ == "__main__":
    key = jax.random.PRNGKey(0)
    k_x1, k_x2, k_p = jax.random.split(key, 3)

    in_channels, out_channels = 8, 4
    # x1: lower-resolution features with in_channels // 2 channels,
    # x2: skip connection with in_channels // 2 channels (classic UNet wiring).
    x1 = jax.random.normal(k_x1, (2, in_channels // 2, 8, 8), jnp.float32)
    x2 = jax.random.normal(k_x2, (2, in_channels // 2, 16, 16), jnp.float32)

    params = make_up_params(k_p, in_channels, out_channels)

    out = jax.block_until_ready(up_forward(x1, x2, params))
    ref = jax.block_until_ready(up_forward_ref(x1, x2, params))

    assert out.shape == (2, out_channels, 16, 16), out.shape
    assert jnp.allclose(out, ref, atol=2e-4, rtol=2e-4), (
        float(jnp.max(jnp.abs(out - ref))))

    print("KERNEL_OK")
</pallas_src>

<mosaic_0001>
module attributes {stable_mosaic.version = 11 : i64} {
  func.func private @main(%arg0: i32) attributes {dimension_semantics = [#tpu.dimension_semantics<core_parallel>], iteration_bounds = array<i64: 2>, tpu.core_type = #tpu.core_type<sc_scalar_subcore>, window_params = []} {
    return
  }
}

module attributes {stable_mosaic.version = 11 : i64} {
  func.func private @main(%arg0: i32) attributes {dimension_semantics = [#tpu.dimension_semantics<core_parallel>], iteration_bounds = array<i64: 2>, tpu.core_type = #tpu.core_type<sc_scalar_subcore>, window_params = []} {
    return
  }
}

module attributes {stable_mosaic.version = 11 : i64} {
  func.func @_up_double_conv_kernel(%arg0: i32, %arg1: memref<1x16x16x4xf32, #tpu.memory_space<vmem>>, %arg2: memref<1x16x16x4xf32, #tpu.memory_space<vmem>>, %arg3: memref<72x4xf32, #tpu.memory_space<vmem>>, %arg4: memref<1x4xf32, #tpu.memory_space<vmem>>, %arg5: memref<36x4xf32, #tpu.memory_space<vmem>>, %arg6: memref<1x4xf32, #tpu.memory_space<vmem>>, %arg7: memref<1x16x16x4xf32, #tpu.memory_space<vmem>>, %arg8: memref<18x18x8xf32, #tpu.memory_space<vmem>>, %arg9: memref<18x18x4xf32, #tpu.memory_space<vmem>>) attributes {dimension_semantics = [#tpu.dimension_semantics<parallel>], iteration_bounds = array<i64: 2>, scalar_prefetch = 0 : i64, scratch_operands = 2 : i64, tpu.core_type = #tpu.core_type<tc>, window_params = [{transform_indices = @transform_0, window_bounds = array<i64: 1, 16, 16, 4>}, {transform_indices = @transform_1, window_bounds = array<i64: 1, 16, 16, 4>}, {pipeline_mode = #tpu.pipeline_mode<synchronous>, transform_indices = @transform_2, window_bounds = array<i64: 72, 4>}, {pipeline_mode = #tpu.pipeline_mode<synchronous>, transform_indices = @transform_3, window_bounds = array<i64: 1, 4>}, {pipeline_mode = #tpu.pipeline_mode<synchronous>, transform_indices = @transform_4, window_bounds = array<i64: 36, 4>}, {pipeline_mode = #tpu.pipeline_mode<synchronous>, transform_indices = @transform_5, window_bounds = array<i64: 1, 4>}, {transform_indices = @transform_6, window_bounds = array<i64: 1, 16, 16, 4>}]} {
    %cst = arith.constant 0.000000e+00 : f32
    %0 = vector.broadcast %cst : f32 to vector<18x18x8xf32>
    %c0 = arith.constant 0 : index
    %c0_0 = arith.constant 0 : index
    %c0_1 = arith.constant 0 : index
    %1 = vector.load %arg8[%c0, %c0_0, %c0_1] : memref<18x18x8xf32, #tpu.memory_space<vmem>>, vector<18x18x8xf32>
    tpu.vector_store %arg8[%c0, %c0_0, %c0_1], %0 {strides = array<i32>} : memref<18x18x8xf32, #tpu.memory_space<vmem>>, vector<18x18x8xf32>,
    %c0_2 = arith.constant 0 : index
    %c0_3 = arith.constant 0 : index
    %c0_4 = arith.constant 0 : index
    %c0_5 = arith.constant 0 : index
    %2 = vector.load %arg1[%c0_2, %c0_3, %c0_4, %c0_5] : memref<1x16x16x4xf32, #tpu.memory_space<vmem>>, vector<1x16x16x4xf32>
    %3 = vector.shape_cast %2 : vector<1x16x16x4xf32> to vector<16x16x4xf32>
    %c0_6 = arith.constant 0 : index
    %c0_7 = arith.constant 0 : index
    %c0_8 = arith.constant 0 : index
    %c0_9 = arith.constant 0 : index
    %4 = vector.load %arg2[%c0_6, %c0_7, %c0_8, %c0_9] : memref<1x16x16x4xf32, #tpu.memory_space<vmem>>, vector<1x16x16x4xf32>
    %5 = vector.shape_cast %4 : vector<1x16x16x4xf32> to vector<16x16x4xf32>
    %6 = tpu.concatenate %3, %5 in 2 : vector<16x16x4xf32>, vector<16x16x4xf32> -> vector<16x16x8xf32>
    %c1 = arith.constant 1 : index
    %c1_10 = arith.constant 1 : index
    %c0_11 = arith.constant 0 : index
    %7 = vector.load %arg8[%c1, %c1_10, %c0_11] : memref<18x18x8xf32, #tpu.memory_space<vmem>>, vector<16x16x8xf32>
    tpu.vector_store %arg8[%c1, %c1_10, %c0_11], %6 {strides = array<i32>} : memref<18x18x8xf32, #tpu.memory_space<vmem>>, vector<16x16x8xf32>,
    %c0_12 = arith.constant 0 : index
    %c0_13 = arith.constant 0 : index
    %c0_14 = arith.constant 0 : index
    %8 = vector.load %arg8[%c0_12, %c0_13, %c0_14] : memref<18x18x8xf32, #tpu.memory_space<vmem>>, vector<18x18x8xf32>
    %9 = vector.extract_strided_slice %8 {offsets = [0, 0, 0], sizes = [16, 18, 8], strides = [1, 1, 1]} : vector<18x18x8xf32> to vector<16x18x8xf32>
    %10 = vector.extract_strided_slice %8 {offsets = [1, 0, 0], sizes = [16, 18, 8], strides = [1, 1, 1]} : vector<18x18x8xf32> to vector<16x18x8xf32>
    %11 = vector.extract_strided_slice %8 {offsets = [2, 0, 0], sizes = [16, 18, 8], strides = [1, 1, 1]} : vector<18x18x8xf32> to vector<16x18x8xf32>
    %12 = tpu.concatenate %9, %10, %11 in 2 : vector<16x18x8xf32>, vector<16x18x8xf32>, vector<16x18x8xf32> -> vector<16x18x24xf32>
    %13 = vector.extract_strided_slice %12 {offsets = [0, 0, 0], sizes = [16, 16, 24], strides = [1, 1, 1]} : vector<16x18x24xf32> to vector<16x16x24xf32>
    %14 = vector.extract_strided_slice %12 {offsets = [0, 1, 0], sizes = [16, 16, 24], strides = [1, 1, 1]} : vector<16x18x24xf32> to vector<16x16x24xf32>
    %15 = vector.extract_strided_slice %12 {offsets = [0, 2, 0], sizes = [16, 16, 24], strides = [1, 1, 1]} : vector<16x18x24xf32> to vector<16x16x24xf32>
    %16 = tpu.concatenate %13, %14, %15 in 2 : vector<16x16x24xf32>, vector<16x16x24xf32>, vector<16x16x24xf32> -> vector<16x16x72xf32>
    %17 = vector.shape_cast %16 : vector<16x16x72xf32> to vector<256x72xf32>
    %c0_15 = arith.constant 0 : index
    %c0_16 = arith.constant 0 : index
    %18 = vector.load %arg3[%c0_15, %c0_16] : memref<72x4xf32, #tpu.memory_space<vmem>>, vector<72x4xf32>
    %cst_17 = arith.constant dense<0.000000e+00> : vector<256x4xf32>
    %19 = tpu.matmul %17, %18, %cst_17 {dimension_numbers = #tpu.dot_dimension_numbers<[1], [0], [0], [1], [0, 0, 1, 1], [], []>} : vector<256x72xf32>, vector<72x4xf32>, vector<256x4xf32> -> vector<256x4xf32>
    %c0_18 = arith.constant 0 : index
    %c0_19 = arith.constant 0 : index
    %20 = vector.load %arg4[%c0_18, %c0_19] : memref<1x4xf32, #tpu.memory_space<vmem>>, vector<1x4xf32>
    %21 = vector.shape_cast %20 : vector<1x4xf32> to vector<4xf32>
    %22 = vector.shape_cast %21 : vector<4xf32> to vector<1x4xf32>
    %23 = vector.broadcast %22 : vector<1x4xf32> to vector<256x4xf32>
    %24 = arith.addf %19, %23 : vector<256x4xf32>
    %cst_20 = arith.constant 0.000000e+00 : f32
    %25 = vector.broadcast %cst_20 : f32 to vector<256x4xf32>
    %26 = arith.maximumf %24, %25 : vector<256x4xf32>
    %cst_21 = arith.constant 0.000000e+00 : f32
    %27 = vector.broadcast %cst_21 : f32 to vector<18x18x4xf32>
    %c0_22 = arith.constant 0 : index
    %c0_23 = arith.constant 0 : index
    %c0_24 = arith.constant 0 : index
    %28 = vector.load %arg9[%c0_22, %c0_23, %c0_24] : memref<18x18x4xf32, #tpu.memory_space<vmem>>, vector<18x18x4xf32>
    tpu.vector_store %arg9[%c0_22, %c0_23, %c0_24], %27 {strides = array<i32>} : memref<18x18x4xf32, #tpu.memory_space<vmem>>, vector<18x18x4xf32>,
    %29 = vector.shape_cast %26 : vector<256x4xf32> to vector<16x16x4xf32>
    %c1_25 = arith.constant 1 : index
    %c1_26 = arith.constant 1 : index
    %c0_27 = arith.constant 0 : index
    %30 = vector.load %arg9[%c1_25, %c1_26, %c0_27] : memref<18x18x4xf32, #tpu.memory_space<vmem>>, vector<16x16x4xf32>
    tpu.vector_store %arg9[%c1_25, %c1_26, %c0_27], %29 {strides = array<i32>} : memref<18x18x4xf32, #tpu.memory_space<vmem>>, vector<16x16x4xf32>,
    %c0_28 = arith.constant 0 : index
    %c0_29 = arith.constant 0 : index
    %c0_30 = arith.constant 0 : index
    %31 = vector.load %arg9[%c0_28, %c0_29, %c0_30] : memref<18x18x4xf32, #tpu.memory_space<vmem>>, vector<18x18x4xf32>
    %32 = vector.extract_strided_slice %31 {offsets = [0, 0, 0], sizes = [16, 18, 4], strides = [1, 1, 1]} : vector<18x18x4xf32> to vector<16x18x4xf32>
    %33 = vector.extract_strided_slice %31 {offsets = [1, 0, 0], sizes = [16, 18, 4], strides = [1, 1, 1]} : vector<18x18x4xf32> to vector<16x18x4xf32>
    %34 = vector.extract_strided_slice %31 {offsets = [2, 0, 0], sizes = [16, 18, 4], strides = [1, 1, 1]} : vector<18x18x4xf32> to vector<16x18x4xf32>
    %35 = tpu.concatenate %32, %33, %34 in 2 : vector<16x18x4xf32>, vector<16x18x4xf32>, vector<16x18x4xf32> -> vector<16x18x12xf32>
    %36 = vector.extract_strided_slice %35 {offsets = [0, 0, 0], sizes = [16, 16, 12], strides = [1, 1, 1]} : vector<16x18x12xf32> to vector<16x16x12xf32>
    %37 = vector.extract_strided_slice %35 {offsets = [0, 1, 0], sizes = [16, 16, 12], strides = [1, 1, 1]} : vector<16x18x12xf32> to vector<16x16x12xf32>
    %38 = vector.extract_strided_slice %35 {offsets = [0, 2, 0], sizes = [16, 16, 12], strides = [1, 1, 1]} : vector<16x18x12xf32> to vector<16x16x12xf32>
    %39 = tpu.concatenate %36, %37, %38 in 2 : vector<16x16x12xf32>, vector<16x16x12xf32>, vector<16x16x12xf32> -> vector<16x16x36xf32>
    %40 = vector.shape_cast %39 : vector<16x16x36xf32> to vector<256x36xf32>
    %c0_31 = arith.constant 0 : index
    %c0_32 = arith.constant 0 : index
    %41 = vector.load %arg5[%c0_31, %c0_32] : memref<36x4xf32, #tpu.memory_space<vmem>>, vector<36x4xf32>
    %cst_33 = arith.constant dense<0.000000e+00> : vector<256x4xf32>
    %42 = tpu.matmul %40, %41, %cst_33 {dimension_numbers = #tpu.dot_dimension_numbers<[1], [0], [0], [1], [0, 0, 1, 1], [], []>} : vector<256x36xf32>, vector<36x4xf32>, vector<256x4xf32> -> vector<256x4xf32>
    %c0_34 = arith.constant 0 : index
    %c0_35 = arith.constant 0 : index
    %43 = vector.load %arg6[%c0_34, %c0_35] : memref<1x4xf32, #tpu.memory_space<vmem>>, vector<1x4xf32>
    %44 = vector.shape_cast %43 : vector<1x4xf32> to vector<4xf32>
    %45 = vector.shape_cast %44 : vector<4xf32> to vector<1x4xf32>
    %46 = vector.broadcast %45 : vector<1x4xf32> to vector<256x4xf32>
    %47 = arith.addf %42, %46 : vector<256x4xf32>
    %cst_36 = arith.constant 0.000000e+00 : f32
    %48 = vector.broadcast %cst_36 : f32 to vector<256x4xf32>
    %49 = arith.maximumf %47, %48 : vector<256x4xf32>
    %50 = vector.shape_cast %49 : vector<256x4xf32> to vector<16x16x4xf32>
    %c0_37 = arith.constant 0 : index
    %c0_38 = arith.constant 0 : index
    %c0_39 = arith.constant 0 : index
    %c0_40 = arith.constant 0 : index
    %51 = vector.load %arg7[%c0_37, %c0_38, %c0_39, %c0_40] : memref<1x16x16x4xf32, #tpu.memory_space<vmem>>, vector<1x16x16x4xf32>
    %52 = vector.shape_cast %51 : vector<1x16x16x4xf32> to vector<16x16x4xf32>
    %53 = vector.shape_cast %50 : vector<16x16x4xf32> to vector<1x16x16x4xf32>
    tpu.vector_store %arg7[%c0_37, %c0_38, %c0_39, %c0_40], %53 {strides = array<i32>} : memref<1x16x16x4xf32, #tpu.memory_space<vmem>>, vector<1x16x16x4xf32>,
    return
  }
  func.func @transform_0(%arg0: i32) -> (i32, i32, i32, i32) {
    %c0_i32 = arith.constant 0 : i32
    %c0_i32_0 = arith.constant 0 : i32
    %c0_i32_1 = arith.constant 0 : i32
    %c0_i32_2 = arith.constant 0 : i32
    return %arg0, %c0_i32, %c0_i32_0, %c0_i32_1 : i32, i32, i32, i32
  }
  func.func @transform_1(%arg0: i32) -> (i32, i32, i32, i32) {
    %c0_i32 = arith.constant 0 : i32
    %c0_i32_0 = arith.constant 0 : i32
    %c0_i32_1 = arith.constant 0 : i32
    %c0_i32_2 = arith.constant 0 : i32
    return %arg0, %c0_i32, %c0_i32_0, %c0_i32_1 : i32, i32, i32, i32
  }
  func.func @transform_2(%arg0: i32) -> (i32, i32) {
    %c0_i32 = arith.constant 0 : i32
    %c0_i32_0 = arith.constant 0 : i32
    %c0_i32_1 = arith.constant 0 : i32
    return %c0_i32, %c0_i32_0 : i32, i32
  }
  func.func @transform_3(%arg0: i32) -> (i32, i32) {
    %c0_i32 = arith.constant 0 : i32
    %c0_i32_0 = arith.constant 0 : i32
    %c0_i32_1 = arith.constant 0 : i32
    return %c0_i32, %c0_i32_0 : i32, i32
  }
  func.func @transform_4(%arg0: i32) -> (i32, i32) {
    %c0_i32 = arith.constant 0 : i32
    %c0_i32_0 = arith.constant 0 : i32
    %c0_i32_1 = arith.constant 0 : i32
    return %c0_i32, %c0_i32_0 : i32, i32
  }
  func.func @transform_5(%arg0: i32) -> (i32, i32) {
    %c0_i32 = arith.constant 0 : i32
    %c0_i32_0 = arith.constant 0 : i32
    %c0_i32_1 = arith.constant 0 : i32
    return %c0_i32, %c0_i32_0 : i32, i32
  }
  func.func @transform_6(%arg0: i32) -> (i32, i32, i32, i32) {
    %c0_i32 = arith.constant 0 : i32
    %c0_i32_0 = arith.constant 0 : i32
    %c0_i32_1 = arith.constant 0 : i32
    %c0_i32_2 = arith.constant 0 : i32
    return %arg0, %c0_i32, %c0_i32_0, %c0_i32_1 : i32, i32, i32, i32
  }
}

</mosaic_0001>

<llo_original>
// kernel: up_forward.1
$region0: #{up_forward.1}
  #allocation0 [shape = 'u32[]', space=smem, size = 0x4, offset = 0x4, fixed_abs, tag = 'smem constant byte address 0x4 - core index']
  #allocation1 [shape = 'u32[144,128]{1,0:T(1,128)}', space=vmem, size = 0x12000, scoped, tag = 'internal scratch']
  #allocation2 [shape = 'f32[18,18,8]{2,1,0:T(8,128)}', space=vmem, size = 0x36000, scoped, tag = 'scratch operand']
  #allocation3 [shape = 'f32[18,18,4]{2,1,0:T(8,128)}', space=vmem, size = 0x36000, scoped, tag = 'scratch operand']
  %s0 = inlined_call_operand.vmem [shape: f32[2,16,16,4], index: 0, kind: input, shape index: {}]
  %s1 = inlined_call_operand.vmem [shape: f32[2,16,16,4], index: 1, kind: input, shape index: {}]
  %s2 = inlined_call_operand.vmem [shape: f32[72,4], index: 2, kind: input, shape index: {}]
  %s3 = inlined_call_operand.vmem [shape: f32[1,4], index: 3, kind: input, shape index: {}]
  %s4 = inlined_call_operand.vmem [shape: f32[36,4], index: 4, kind: input, shape index: {}]
  %s5 = inlined_call_operand.vmem [shape: f32[1,4], index: 5, kind: input, shape index: {}]
  %s6 = inlined_call_operand.vmem [shape: f32[2,16,16,4], index: 6, kind: output, shape index: {}]
  %s7 = sld [smem:[#allocation0]]
  $region57: #{up_forward.1} parent=0
    _
  %s9 = ssub.s32 1, %s7
  %s10 = scalar_select 0, %s9, %s7
  loop: start=0, step=1, limit=4
  $region2: #{up_forward.1} parent=0 // loop_pre_header
    _
  $region3: #{up_forward.1} parent=0 // loop_header
    %s12 = sphi 0, %s16
    %p13 = scmp.ge.s32.totalorder %s12, 4
    %s22 = sphi 0, %s24
    %s25 = sphi 0, %s22
    %s26 = sphi 0, %s25
    %s42 = sphi 0, %s26
    %s48 = sphi 0, %s50
    %s51 = sphi 0, %s48
    %s52 = sphi 0, %s51
    %s68 = sphi 0, %s52
    %s72 = sphi 0, %s72
    %s74 = sphi 0, %s72
    %s75 = sphi 0, %s74
    %s89 = sphi 0, %s75
    %s93 = sphi 0, %s93
    %s95 = sphi 0, %s93
    %s96 = sphi 0, %s95
    %s110 = sphi 0, %s96
    %s114 = sphi 0, %s114
    %s116 = sphi 0, %s114
    %s117 = sphi 0, %s116
    %s131 = sphi 0, %s117
    %s135 = sphi 0, %s135
    %s137 = sphi 0, %s135
    %s138 = sphi 0, %s137
    %s152 = sphi 0, %s138
    %s158 = sphi 0, %s160
    %s161 = sphi 0, %s158
    %s162 = sphi 0, %s161
    %s178 = sphi 0, %s162
  $region4: #{up_forward.1} parent=0 // loop_header_branch
    %15 = sbr.rel (%p13) target = $region8
  $region5: #{up_forward.1} parent=0 // loop_body
    %s17 = ssub.s32 %s12, 1
    %s18 = ssub.s32 %s12, 2
    %s19 = sadd.s32 %s12, 1
    %s20 = ssub.s32 %s12, %s19
    %p21 = scmp.eq.s32.totalorder %s20, 0
    %s23 = sadd.s32 %s22, 1
    %s24 = scalar_select %p21, %s22, %s23
    %p27 = pneg %p21
    %p28 = scmp.eq.s32.totalorder %s12, 1
    %p29 = por %p27, %p28
    %p30 = scmp.ne.s32.totalorder %s22, %s25
    %p31 = scmp.eq.s32.totalorder %s12, 0
    %p32 = por %p30, %p31
    %p33 = scmp.ne.s32.totalorder %s22, %s25
    %p34 = scmp.eq.s32.totalorder %s17, 1
    %p35 = por %p33, %p34
    %p36 = scmp.ne.s32.totalorder %s25, %s26
    %p37 = scmp.eq.s32.totalorder %s17, 0
    %p38 = por %p36, %p37
    %p39 = scmp.ne.s32.totalorder %s25, %s26
    %p40 = scmp.eq.s32.totalorder %s18, 1
    %p41 = por %p39, %p40
    %p43 = scmp.ne.s32.totalorder %s26, %s42
    %p44 = scmp.eq.s32.totalorder %s18, 0
    %p45 = por %p43, %p44
    %s46 = ssub.s32 %s12, %s19
    %p47 = scmp.eq.s32.totalorder %s46, 0
    %s49 = sadd.s32 %s48, 1
    %s50 = scalar_select %p47, %s48, %s49
    %p53 = pneg %p47
    %p54 = scmp.eq.s32.totalorder %s12, 1
    %p55 = por %p53, %p54
    %p56 = scmp.ne.s32.totalorder %s48, %s51
    %p57 = scmp.eq.s32.totalorder %s12, 0
    %p58 = por %p56, %p57
    %p59 = scmp.ne.s32.totalorder %s48, %s51
    %p60 = scmp.eq.s32.totalorder %s17, 1
    %p61 = por %p59, %p60
    %p62 = scmp.ne.s32.totalorder %s51, %s52
    %p63 = scmp.eq.s32.totalorder %s17, 0
    %p64 = por %p62, %p63
    %p65 = scmp.ne.s32.totalorder %s51, %s52
    %p66 = scmp.eq.s32.totalorder %s18, 1
    %p67 = por %p65, %p66
    %p69 = scmp.ne.s32.totalorder %s52, %s68
    %p70 = scmp.eq.s32.totalorder %s18, 0
    %p71 = por %p69, %p70
    %s73 = sadd.s32 %s72, 1
    %p76 = scmp.eq.s32.totalorder %s12, 1
    %p77 = scmp.ne.s32.totalorder %s72, %s74
    %p78 = scmp.eq.s32.totalorder %s12, 0
    %p79 = por %p77, %p78
    %p80 = scmp.ne.s32.totalorder %s72, %s74
    %p81 = scmp.eq.s32.totalorder %s17, 1
    %p82 = por %p80, %p81
    %p83 = scmp.ne.s32.totalorder %s74, %s75
    %p84 = scmp.eq.s32.totalorder %s17, 0
    %p85 = por %p83, %p84
    %p86 = scmp.ne.s32.totalorder %s74, %s75
    %p87 = scmp.eq.s32.totalorder %s18, 1
    %p88 = por %p86, %p87
    %p90 = scmp.ne.s32.totalorder %s75, %s89
    %p91 = scmp.eq.s32.totalorder %s18, 0
    %p92 = por %p90, %p91
    %s94 = sadd.s32 %s93, 1
    %p97 = scmp.eq.s32.totalorder %s12, 1
    %p98 = scmp.ne.s32.totalorder %s93, %s95
    %p99 = scmp.eq.s32.totalorder %s12, 0
    %p100 = por %p98, %p99
    %p101 = scmp.ne.s32.totalorder %s93, %s95
    %p102 = scmp.eq.s32.totalorder %s17, 1
    %p103 = por %p101, %p102
    %p104 = scmp.ne.s32.totalorder %s95, %s96
    %p105 = scmp.eq.s32.totalorder %s17, 0
    %p106 = por %p104, %p105
    %p107 = scmp.ne.s32.totalorder %s95, %s96
    %p108 = scmp.eq.s32.totalorder %s18, 1
    %p109 = por %p107, %p108
    %p111 = scmp.ne.s32.totalorder %s96, %s110
    %p112 = scmp.eq.s32.totalorder %s18, 0
    %p113 = por %p111, %p112
    %s115 = sadd.s32 %s114, 1
    %p118 = scmp.eq.s32.totalorder %s12, 1
    %p119 = scmp.ne.s32.totalorder %s114, %s116
    %p120 = scmp.eq.s32.totalorder %s12, 0
    %p121 = por %p119, %p120
    %p122 = scmp.ne.s32.totalorder %s114, %s116
    %p123 = scmp.eq.s32.totalorder %s17, 1
    %p124 = por %p122, %p123
    %p125 = scmp.ne.s32.totalorder %s116, %s117
    %p126 = scmp.eq.s32.totalorder %s17, 0
    %p127 = por %p125, %p126
    %p128 = scmp.ne.s32.totalorder %s116, %s117
    %p129 = scmp.eq.s32.totalorder %s18, 1
    %p130 = por %p128, %p129
    %p132 = scmp.ne.s32.totalorder %s117, %s131
    %p133 = scmp.eq.s32.totalorder %s18, 0
    %p134 = por %p132, %p133
    %s136 = sadd.s32 %s135, 1
    %p139 = scmp.eq.s32.totalorder %s12, 1
    %p140 = scmp.ne.s32.totalorder %s135, %s137
    %p141 = scmp.eq.s32.totalorder %s12, 0
    %p142 = por %p140, %p141
    %p143 = scmp.ne.s32.totalorder %s135, %s137
    %p144 = scmp.eq.s32.totalorder %s17, 1
    %p145 = por %p143, %p144
    %p146 = scmp.ne.s32.totalorder %s137, %s138
    %p147 = scmp.eq.s32.totalorder %s17, 0
    %p148 = por %p146, %p147
    %p149 = scmp.ne.s32.totalorder %s137, %s138
    %p150 = scmp.eq.s32.totalorder %s18, 1
    %p151 = por %p149, %p150
    %p153 = scmp.ne.s32.totalorder %s138, %s152
    %p154 = scmp.eq.s32.totalorder %s18, 0
    %p155 = por %p153, %p154
    %s156 = ssub.s32 %s12, %s19
    %p157 = scmp.eq.s32.totalorder %s156, 0
    %s159 = sadd.s32 %s158, 1
    %s160 = scalar_select %p157, %s158, %s159
    %p163 = pneg %p157
    %p164 = scmp.eq.s32.totalorder %s12, 1
    %p165 = por %p163, %p164
    %p166 = scmp.ne.s32.totalorder %s158, %s161
    %p167 = scmp.eq.s32.totalorder %s12, 0
    %p168 = por %p166, %p167
    %p169 = scmp.ne.s32.totalorder %s158, %s161
    %p170 = scmp.eq.s32.totalorder %s17, 1
    %p171 = por %p169, %p170
    %p172 = scmp.ne.s32.totalorder %s161, %s162
    %p173 = scmp.eq.s32.totalorder %s17, 0
    %p174 = por %p172, %p173
    %p175 = scmp.ne.s32.totalorder %s161, %s162
    %p176 = scmp.eq.s32.totalorder %s18, 1
    %p177 = por %p175, %p176
    %p179 = scmp.ne.s32.totalorder %s162, %s178
    %p180 = scmp.eq.s32.totalorder %s18, 0
    %p181 = por %p179, %p180
    %p182 = scmp.le.s32.totalorder 1, %s12
    %p183 = scmp.lt.s32.totalorder %s12, 3
    %p184 = pnand %p182, %p183
    %p185 = pneg %p184
    // Predicated region
    $region9: #{up_forward.1} parent=5 // pred_check
      _
    $region10: #{up_forward.1} parent=5 // pred_check_branch
      %187 = sbr.rel (%p184) target = $region12
    $region11: #{up_forward.1} parent=5 // pred_region
      %s188 = ssub.s32 %s12, 1
      // Predicated region
      $region13: #{up_forward.1} parent=11 // pred_check
        %p189 = pneg %p85
      $region14: #{up_forward.1} parent=11 // pred_check_branch
        %191 = sbr.rel (%p189) target = $region16
      $region15: #{up_forward.1} parent=11 // pred_region
        _
      $region16: #{up_forward.1} parent=11 // pred_fallthru
        _
      // Predicated region
      $region17: #{up_forward.1} parent=11 // pred_check
        %p192 = pneg %p106
      $region18: #{up_forward.1} parent=11 // pred_check_branch
        %194 = sbr.rel (%p192) target = $region20
      $region19: #{up_forward.1} parent=11 // pred_region
        _
      $region20: #{up_forward.1} parent=11 // pred_fallthru
        _
      // Predicated region
      $region21: #{up_forward.1} parent=11 // pred_check
        %p195 = pneg %p127
      $region22: #{up_forward.1} parent=11 // pred_check_branch
        %197 = sbr.rel (%p195) target = $region24
      $region23: #{up_forward.1} parent=11 // pred_region
        _
      $region24: #{up_forward.1} parent=11 // pred_fallthru
        _
      // Predicated region
      $region25: #{up_forward.1} parent=11 // pred_check
        %p198 = pneg %p148
      $region26: #{up_forward.1} parent=11 // pred_check_branch
        %200 = sbr.rel (%p198) target = $region28
      $region27: #{up_forward.1} parent=11 // pred_region
        _
      $region28: #{up_forward.1} parent=11 // pred_fallthru
        _
    $region12: #{up_forward.1} parent=5 // pred_fallthru
      _
    %p201 = scmp.lt.s32.totalorder %s12, 2
    // Predicated region
    $region29: #{up_forward.1} parent=5 // pred_check
      %p202 = pneg %p201
    $region30: #{up_forward.1} parent=5 // pred_check_branch
      %204 = sbr.rel (%p202) target = $region32
    $region31: #{up_forward.1} parent=5 // pred_region
      // Predicated region
      $region33: #{up_forward.1} parent=31 // pred_check
        %p205 = pneg %p32
      $region34: #{up_forward.1} parent=31 // pred_check_branch
        %207 = sbr.rel (%p205) target = $region36
      $region35: #{up_forward.1} parent=31 // pred_region
        %p208 = scmp.lt.s32.totalorder %s12, 1
        %s209 = scalar_select %p208, %s12, 1
        %s210 = smul.addr %s209, 32
        %s211 = smul.addr %s210, 8
        %s212 = scalar_lea.vmem %s0, %s211
      $region36: #{up_forward.1} parent=31 // pred_fallthru
        _
      // Predicated region
      $region37: #{up_forward.1} parent=31 // pred_check
        %p213 = pneg %p58
      $region38: #{up_forward.1} parent=31 // pred_check_branch
        %215 = sbr.rel (%p213) target = $region40
      $region39: #{up_forward.1} parent=31 // pred_region
        %p216 = scmp.lt.s32.totalorder %s12, 1
        %s217 = scalar_select %p216, %s12, 1
        %s218 = smul.addr %s217, 32
        %s219 = smul.addr %s218, 8
        %s220 = scalar_lea.vmem %s1, %s219
      $region40: #{up_forward.1} parent=31 // pred_fallthru
        _
    $region32: #{up_forward.1} parent=5 // pred_fallthru
      _
    %p221 = scmp.le.s32.totalorder 1, %s12
    %p222 = scmp.lt.s32.totalorder %s12, 3
    %p223 = pnand %p221, %p222
    %p224 = pneg %p223
    // Predicated region
    $region41: #{up_forward.1} parent=5 // pred_check
      _
    $region42: #{up_forward.1} parent=5 // pred_check_branch
      %226 = sbr.rel (%p223) target = $region44
    $region43: #{up_forward.1} parent=5 // pred_region
      %s227 = ssub.s32 %s12, 1
      %p228 = scmp.lt.s32.totalorder %s17, 1
      %s229 = scalar_select %p228, %s17, 1
      %s230 = smul.addr %s229, 32
      %s231 = smul.addr %s230, 8
      %s232 = scalar_lea.vmem %s0, %s231
      %p233 = pneg %p38
      %p234 = pneg %p35
      %p235 = scmp.lt.s32.totalorder %s17, 1
      %s236 = scalar_select %p235, %s17, 1
      %s237 = smul.addr %s236, 32
      %s238 = smul.addr %s237, 8
      %s239 = scalar_lea.vmem %s1, %s238
      %p240 = pneg %p64
      %p241 = pneg %p61
      %p242 = pneg %p85
      %p243 = pneg %p82
      %p244 = pneg %p106
      %p245 = pneg %p103
      %p246 = pneg %p127
      %p247 = pneg %p124
      %p248 = pneg %p148
      %p249 = pneg %p145
      %p250 = pneg %p174
      %p251 = pneg %p171
      %p252 = scmp.lt.s32.totalorder %s17, 1
      %s253 = scalar_select %p252, %s17, 1
      %s254 = smul.addr %s253, 32
      %s255 = smul.addr %s254, 8
      %s256 = scalar_lea.vmem %s6, %s255
      %p257 = scmp.lt.s32.totalorder %s17, 1
      %s258 = scalar_select %p257, %s17, 1
      %s259 = smul.addr %s258, 32
      %s260 = smul.addr %s259, 8
      %s261 = scalar_lea.vmem %s0, %s260
      %p262 = scmp.lt.s32.totalorder %s17, 1
      %s263 = scalar_select %p262, %s17, 1
      %s264 = smul.addr %s263, 32
      %s265 = smul.addr %s264, 8
      %s266 = scalar_lea.vmem %s1, %s265
      %p267 = scmp.lt.s32.totalorder %s17, 1
      %s268 = scalar_select %p267, %s17, 1
      %s269 = smul.addr %s268, 32
      %s270 = smul.addr %s269, 8
      %s271 = scalar_lea.vmem %s6, %s270
      %vm272 = vcmask 64512
      %273 = vst.msk [vmem:[#allocation2] sm:$0xff] %vm272, 0.0
      %274 = vst.msk [vmem:[#allocation2 + $0x8] sm:$0xff] %vm272, 0.0
      %vm275 = vcmask 58368
      %276 = vst.msk [vmem:[#allocation2 + $0x10] sm:$0x3] %vm275, 0.0
      %277 = vst.msk [vmem:[#allocation2 + $0x18] sm:$0xff] %vm272, 0.0
      %278 = vst.msk [vmem:[#allocation2 + $0x20] sm:$0xff] %vm272, 0.0
      %279 = vst.msk [vmem:[#allocation2 + $0x28] sm:$0x3] %vm275, 0.0
      %280 = vst.msk [vmem:[#allocation2 + $0x30] sm:$0xff] %vm272, 0.0
      %281 = vst.msk [vmem:[#allocation2 + $0x38] sm:$0xff] %vm272, 0.0
      %282 = vst.msk [vmem:[#allocation2 + $0x40] sm:$0x3] %vm275, 0.0
      %283 = vst.msk [vmem:[#allocation2 + $0x48] sm:$0xff] %vm272, 0.0
      %284 = vst.msk [vmem:[#allocation2 + $0x50] sm:$0xff] %vm272, 0.0
      %285 = vst.msk [vmem:[#allocation2 + $0x58] sm:$0x3] %vm275, 0.0
      %286 = vst.msk [vmem:[#allocation2 + $0x60] sm:$0xff] %vm272, 0.0
      %287 = vst.msk [vmem:[#allocation2 + $0x68] sm:$0xff] %vm272, 0.0
      %288 = vst.msk [vmem:[#allocation2 + $0x70] sm:$0x3] %vm275, 0.0
      %289 = vst.msk [vmem:[#allocation2 + $0x78] sm:$0xff] %vm272, 0.0
      %290 = vst.msk [vmem:[#allocation2 + $0x80] sm:$0xff] %vm272, 0.0
      %291 = vst.msk [vmem:[#allocation2 + $0x88] sm:$0x3] %vm275, 0.0
      %292 = vst.msk [vmem:[#allocation2 + $0x90] sm:$0xff] %vm272, 0.0
      %293 = vst.msk [vmem:[#allocation2 + $0x98] sm:$0xff] %vm272, 0.0
      %294 = vst.msk [vmem:[#allocation2 + $0xa0] sm:$0x3] %vm275, 0.0
      %295 = vst.msk [vmem:[#allocation2 + $0xa8] sm:$0xff] %vm272, 0.0
      %296 = vst.msk [vmem:[#allocation2 + $0xb0] sm:$0xff] %vm272, 0.0
      %297 = vst.msk [vmem:[#allocation2 + $0xb8] sm:$0x3] %vm275, 0.0
      %298 = vst.msk [vmem:[#allocation2 + $0xc0] sm:$0xff] %vm272, 0.0
      %299 = vst.msk [vmem:[#allocation2 + $0xc8] sm:$0xff] %vm272, 0.0
      %300 = vst.msk [vmem:[#allocation2 + $0xd0] sm:$0x3] %vm275, 0.0
      %301 = vst.msk [vmem:[#allocation2 + $0xd8] sm:$0xff] %vm272, 0.0
      %302 = vst.msk [vmem:[#allocation2 + $0xe0] sm:$0xff] %vm272, 0.0
      %303 = vst.msk [vmem:[#allocation2 + $0xe8] sm:$0x3] %vm275, 0.0
      %304 = vst.msk [vmem:[#allocation2 + $0xf0] sm:$0xff] %vm272, 0.0
      %305 = vst.msk [vmem:[#allocation2 + $0xf8] sm:$0xff] %vm272, 0.0
      %306 = vst.msk [vmem:[#allocation2 + $0x100] sm:$0x3] %vm275, 0.0
      %307 = vst.msk [vmem:[#allocation2 + $0x108] sm:$0xff] %vm272, 0.0
      %308 = vst.msk [vmem:[#allocation2 + $0x110] sm:$0xff] %vm272, 0.0
      %309 = vst.msk [vmem:[#allocation2 + $0x118] sm:$0x3] %vm275, 0.0
      %310 = vst.msk [vmem:[#allocation2 + $0x120] sm:$0xff] %vm272, 0.0
      %311 = vst.msk [vmem:[#allocation2 + $0x128] sm:$0xff] %vm272, 0.0
      %312 = vst.msk [vmem:[#allocation2 + $0x130] sm:$0x3] %vm275, 0.0
      %313 = vst.msk [vmem:[#allocation2 + $0x138] sm:$0xff] %vm272, 0.0
      %314 = vst.msk [vmem:[#allocation2 + $0x140] sm:$0xff] %vm272, 0.0
      %315 = vst.msk [vmem:[#allocation2 + $0x148] sm:$0x3] %vm275, 0.0
      %316 = vst.msk [vmem:[#allocation2 + $0x150] sm:$0xff] %vm272, 0.0
      %317 = vst.msk [vmem:[#allocation2 + $0x158] sm:$0xff] %vm272, 0.0
      %318 = vst.msk [vmem:[#allocation2 + $0x160] sm:$0x3] %vm275, 0.0
      %319 = vst.msk [vmem:[#allocation2 + $0x168] sm:$0xff] %vm272, 0.0
      %320 = vst.msk [vmem:[#allocation2 + $0x170] sm:$0xff] %vm272, 0.0
      %321 = vst.msk [vmem:[#allocation2 + $0x178] sm:$0x3] %vm275, 0.0
      %322 = vst.msk [vmem:[#allocation2 + $0x180] sm:$0xff] %vm272, 0.0
      %323 = vst.msk [vmem:[#allocation2 + $0x188] sm:$0xff] %vm272, 0.0
      %324 = vst.msk [vmem:[#allocation2 + $0x190] sm:$0x3] %vm275, 0.0
      %325 = vst.msk [vmem:[#allocation2 + $0x198] sm:$0xff] %vm272, 0.0
      %326 = vst.msk [vmem:[#allocation2 + $0x1a0] sm:$0xff] %vm272, 0.0
      %327 = vst.msk [vmem:[#allocation2 + $0x1a8] sm:$0x3] %vm275, 0.0
      %v328 = vld [vmem:[%s261] sm:$0xff]
      %v329 = vld [vmem:[%s261 + $0x8] sm:$0xff]
      %v330 = vld [vmem:[%s261 + $0x10] sm:$0xff]
      %v331 = vld [vmem:[%s261 + $0x18] sm:$0xff]
      %v332 = vld [vmem:[%s261 + $0x20] sm:$0xff]
      %v333 = vld [vmem:[%s261 + $0x28] sm:$0xff]
      %v334 = vld [vmem:[%s261 + $0x30] sm:$0xff]
      %v335 = vld [vmem:[%s261 + $0x38] sm:$0xff]
      %v336 = vld [vmem:[%s261 + $0x40] sm:$0xff]
      %v337 = vld [vmem:[%s261 + $0x48] sm:$0xff]
      %v338 = vld [vmem:[%s261 + $0x50] sm:$0xff]
      %v339 = vld [vmem:[%s261 + $0x58] sm:$0xff]
      %v340 = vld [vmem:[%s261 + $0x60] sm:$0xff]
      %v341 = vld [vmem:[%s261 + $0x68] sm:$0xff]
      %v342 = vld [vmem:[%s261 + $0x70] sm:$0xff]
      %v343 = vld [vmem:[%s261 + $0x78] sm:$0xff]
      %v344 = vld [vmem:[%s261 + $0x80] sm:$0xff]
      %v345 = vld [vmem:[%s261 + $0x88] sm:$0xff]
      %v346 = vld [vmem:[%s261 + $0x90] sm:$0xff]
      %v347 = vld [vmem:[%s261 + $0x98] sm:$0xff]
      %v348 = vld [vmem:[%s261 + $0xa0] sm:$0xff]
      %v349 = vld [vmem:[%s261 + $0xa8] sm:$0xff]
      %v350 = vld [vmem:[%s261 + $0xb0] sm:$0xff]
      %v351 = vld [vmem:[%s261 + $0xb8] sm:$0xff]
      %v352 = vld [vmem:[%s261 + $0xc0] sm:$0xff]
      %v353 = vld [vmem:[%s261 + $0xc8] sm:$0xff]
      %v354 = vld [vmem:[%s261 + $0xd0] sm:$0xff]
      %v355 = vld [vmem:[%s261 + $0xd8] sm:$0xff]
      %v356 = vld [vmem:[%s261 + $0xe0] sm:$0xff]
      %v357 = vld [vmem:[%s261 + $0xe8] sm:$0xff]
      %v358 = vld [vmem:[%s261 + $0xf0] sm:$0xff]
      %v359 = vld [vmem:[%s261 + $0xf8] sm:$0xff]
      %v360 = vld [vmem:[%s266] sm:$0xff]
      %v361 = vld [vmem:[%s266 + $0x8] sm:$0xff]
      %v362 = vld [vmem:[%s266 + $0x10] sm:$0xff]
      %v363 = vld [vmem:[%s266 + $0x18] sm:$0xff]
      %v364 = vld [vmem:[%s266 + $0x20] sm:$0xff]
      %v365 = vld [vmem:[%s266 + $0x28] sm:$0xff]
      %v366 = vld [vmem:[%s266 + $0x30] sm:$0xff]
      %v367 = vld [vmem:[%s266 + $0x38] sm:$0xff]
      %v368 = vld [vmem:[%s266 + $0x40] sm:$0xff]
      %v369 = vld [vmem:[%s266 + $0x48] sm:$0xff]
      %v370 = vld [vmem:[%s266 + $0x50] sm:$0xff]
      %v371 = vld [vmem:[%s266 + $0x58] sm:$0xff]
      %v372 = vld [vmem:[%s266 + $0x60] sm:$0xff]
      %v373 = vld [vmem:[%s266 + $0x68] sm:$0xff]
      %v374 = vld [vmem:[%s266 + $0x70] sm:$0xff]
      %v375 = vld [vmem:[%s266 + $0x78] sm:$0xff]
      %v376 = vld [vmem:[%s266 + $0x80] sm:$0xff]
      %v377 = vld [vmem:[%s266 + $0x88] sm:$0xff]
      %v378 = vld [vmem:[%s266 + $0x90] sm:$0xff]
      %v379 = vld [vmem:[%s266 + $0x98] sm:$0xff]
      %v380 = vld [vmem:[%s266 + $0xa0] sm:$0xff]
      %v381 = vld [vmem:[%s266 + $0xa8] sm:$0xff]
      %v382 = vld [vmem:[%s266 + $0xb0] sm:$0xff]
      %v383 = vld [vmem:[%s266 + $0xb8] sm:$0xff]
      %v384 = vld [vmem:[%s266 + $0xc0] sm:$0xff]
      %v385 = vld [vmem:[%s266 + $0xc8] sm:$0xff]
      %v386 = vld [vmem:[%s266 + $0xd0] sm:$0xff]
      %v387 = vld [vmem:[%s266 + $0xd8] sm:$0xff]
      %v388 = vld [vmem:[%s266 + $0xe0] sm:$0xff]
      %v389 = vld [vmem:[%s266 + $0xe8] sm:$0xff]
      %v390 = vld [vmem:[%s266 + $0xf0] sm:$0xff]
      %v391 = vld [vmem:[%s266 + $0xf8] sm:$0xff]
      %424 = vrot.lane.b32.xlu0 %v360, 4
      %v425 = vpop.permute.xlu0 %424
      %426 = vrot.lane.b32.xlu0 %v361, 4
      %v427 = vpop.permute.xlu0 %426
      %428 = vrot.lane.b32.xlu0 %v362, 4
      %v429 = vpop.permute.xlu0 %428
      %430 = vrot.lane.b32.xlu0 %v363, 4
      %v431 = vpop.permute.xlu0 %430
      %432 = vrot.lane.b32.xlu0 %v364, 4
      %v433 = vpop.permute.xlu0 %432
      %434 = vrot.lane.b32.xlu0 %v365, 4
      %v435 = vpop.permute.xlu0 %434
      %436 = vrot.lane.b32.xlu0 %v366, 4
      %v437 = vpop.permute.xlu0 %436
      %438 = vrot.lane.b32.xlu0 %v367, 4
      %v439 = vpop.permute.xlu0 %438
      %440 = vrot.lane.b32.xlu0 %v368, 4
      %v441 = vpop.permute.xlu0 %440
      %442 = vrot.lane.b32.xlu0 %v369, 4
      %v443 = vpop.permute.xlu0 %442
      %444 = vrot.lane.b32.xlu0 %v370, 4
      %v445 = vpop.permute.xlu0 %444
      %446 = vrot.lane.b32.xlu0 %v371, 4
      %v447 = vpop.permute.xlu0 %446
      %448 = vrot.lane.b32.xlu0 %v372, 4
      %v449 = vpop.permute.xlu0 %448
      %450 = vrot.lane.b32.xlu0 %v373, 4
      %v451 = vpop.permute.xlu0 %450
      %452 = vrot.lane.b32.xlu0 %v374, 4
      %v453 = vpop.permute.xlu0 %452
      %454 = vrot.lane.b32.xlu0 %v375, 4
      %v455 = vpop.permute.xlu0 %454
      %456 = vrot.lane.b32.xlu0 %v376, 4
      %v457 = vpop.permute.xlu0 %456
      %458 = vrot.lane.b32.xlu0 %v377, 4
      %v459 = vpop.permute.xlu0 %458
      %460 = vrot.lane.b32.xlu0 %v378, 4
      %v461 = vpop.permute.xlu0 %460
      %462 = vrot.lane.b32.xlu0 %v379, 4
      %v463 = vpop.permute.xlu0 %462
      %464 = vrot.lane.b32.xlu0 %v380, 4
      %v465 = vpop.permute.xlu0 %464
      %466 = vrot.lane.b32.xlu0 %v381, 4
      %v467 = vpop.permute.xlu0 %466
      %468 = vrot.lane.b32.xlu0 %v382, 4
      %v469 = vpop.permute.xlu0 %468
      %470 = vrot.lane.b32.xlu0 %v383, 4
      %v471 = vpop.permute.xlu0 %470
      %472 = vrot.lane.b32.xlu0 %v384, 4
      %v473 = vpop.permute.xlu0 %472
      %474 = vrot.lane.b32.xlu0 %v385, 4
      %v475 = vpop.permute.xlu0 %474
      %476 = vrot.lane.b32.xlu0 %v386, 4
      %v477 = vpop.permute.xlu0 %476
      %478 = vrot.lane.b32.xlu0 %v387, 4
      %v479 = vpop.permute.xlu0 %478
      %480 = vrot.lane.b32.xlu0 %v388, 4
      %v481 = vpop.permute.xlu0 %480
      %482 = vrot.lane.b32.xlu0 %v389, 4
      %v483 = vpop.permute.xlu0 %482
      %484 = vrot.lane.b32.xlu0 %v390, 4
      %v485 = vpop.permute.xlu0 %484
      %486 = vrot.lane.b32.xlu0 %v391, 4
      %v487 = vpop.permute.xlu0 %486
      %vm520 = vcmask 31744
      %v521 = vsel %vm520, %v328, %v425
      %v522 = vsel %vm520, %v329, %v427
      %v523 = vsel %vm520, %v330, %v429
      %v524 = vsel %vm520, %v331, %v431
      %v525 = vsel %vm520, %v332, %v433
      %v526 = vsel %vm520, %v333, %v435
      %v527 = vsel %vm520, %v334, %v437
      %v528 = vsel %vm520, %v335, %v439
      %v529 = vsel %vm520, %v336, %v441
      %v530 = vsel %vm520, %v337, %v443
      %v531 = vsel %vm520, %v338, %v445
      %v532 = vsel %vm520, %v339, %v447
      %v533 = vsel %vm520, %v340, %v449
      %v534 = vsel %vm520, %v341, %v451
      %v535 = vsel %vm520, %v342, %v453
      %v536 = vsel %vm520, %v343, %v455
      %v537 = vsel %vm520, %v344, %v457
      %v538 = vsel %vm520, %v345, %v459
      %v539 = vsel %vm520, %v346, %v461
      %v540 = vsel %vm520, %v347, %v463
      %v541 = vsel %vm520, %v348, %v465
      %v542 = vsel %vm520, %v349, %v467
      %v543 = vsel %vm520, %v350, %v469
      %v544 = vsel %vm520, %v351, %v471
      %v545 = vsel %vm520, %v352, %v473
      %v546 = vsel %vm520, %v353, %v475
      %v547 = vsel %vm520, %v354, %v477
      %v548 = vsel %vm520, %v355, %v479
      %v549 = vsel %vm520, %v356, %v481
      %v550 = vsel %vm520, %v357, %v483
      %v551 = vsel %vm520, %v358, %v485
      %v552 = vsel %vm520, %v359, %v487
      %s553 = scalar_lea.vmem [#allocation2], 24
      %554 = vst.msk [vmem:[%s553 + $0x1] sm:$0xff] %vm272, %v521
      %555 = vst.msk [vmem:[%s553 + $0x9] sm:$0xff] %vm272, %v522
      %556 = vst.msk [vmem:[%s553 + $0x19] sm:$0xff] %vm272, %v523
      %557 = vst.msk [vmem:[%s553 + $0x21] sm:$0xff] %vm272, %v524
      %558 = vst.msk [vmem:[%s553 + $0x31] sm:$0xff] %vm272, %v525
      %559 = vst.msk [vmem:[%s553 + $0x39] sm:$0xff] %vm272, %v526
      %560 = vst.msk [vmem:[%s553 + $0x49] sm:$0xff] %vm272, %v527
      %561 = vst.msk [vmem:[%s553 + $0x51] sm:$0xff] %vm272, %v528
      %562 = vst.msk [vmem:[%s553 + $0x61] sm:$0xff] %vm272, %v529
      %563 = vst.msk [vmem:[%s553 + $0x69] sm:$0xff] %vm272, %v530
      %564 = vst.msk [vmem:[%s553 + $0x79] sm:$0xff] %vm272, %v531
      %565 = vst.msk [vmem:[%s553 + $0x81] sm:$0xff] %vm272, %v532
      %566 = vst.msk [vmem:[%s553 + $0x91] sm:$0xff] %vm272, %v533
      %567 = vst.msk [vmem:[%s553 + $0x99] sm:$0xff] %vm272, %v534
      %568 = vst.msk [vmem:[%s553 + $0xa9] sm:$0xff] %vm272, %v535
      %569 = vst.msk [vmem:[%s553 + $0xb1] sm:$0xff] %vm272, %v536
      %570 = vst.msk [vmem:[%s553 + $0xc1] sm:$0xff] %vm272, %v537
      %571 = vst.msk [vmem:[%s553 + $0xc9] sm:$0xff] %vm272, %v538
      %572 = vst.msk [vmem:[%s553 + $0xd9] sm:$0xff] %vm272, %v539
      %573 = vst.msk [vmem:[%s553 + $0xe1] sm:$0xff] %vm272, %v540
      %574 = vst.msk [vmem:[%s553 + $0xf1] sm:$0xff] %vm272, %v541
      %575 = vst.msk [vmem:[%s553 + $0xf9] sm:$0xff] %vm272, %v542
      %576 = vst.msk [vmem:[%s553 + $0x109] sm:$0xff] %vm272, %v543
      %577 = vst.msk [vmem:[%s553 + $0x111] sm:$0xff] %vm272, %v544
      %578 = vst.msk [vmem:[%s553 + $0x121] sm:$0xff] %vm272, %v545
      %579 = vst.msk [vmem:[%s553 + $0x129] sm:$0xff] %vm272, %v546
      %580 = vst.msk [vmem:[%s553 + $0x139] sm:$0xff] %vm272, %v547
      %581 = vst.msk [vmem:[%s553 + $0x141] sm:$0xff] %vm272, %v548
      %582 = vst.msk [vmem:[%s553 + $0x151] sm:$0xff] %vm272, %v549
      %583 = vst.msk [vmem:[%s553 + $0x159] sm:$0xff] %vm272, %v550
      %584 = vst.msk [vmem:[%s553 + $0x169] sm:$0xff] %vm272, %v551
      %585 = vst.msk [vmem:[%s553 + $0x171] sm:$0xff] %vm272, %v552
      %v586 = vld [vmem:[#allocation2] sm:$0xff]
      %v587 = vld [vmem:[#allocation2 + $0x8] sm:$0xff]
      %v588 = vld [vmem:[#allocation2 + $0x10] sm:$0x3]
      %v589 = vld [vmem:[#allocation2 + $0x18] sm:$0xff]
      %v590 = vld [vmem:[#allocation2 + $0x20] sm:$0xff]
      %v591 = vld [vmem:[#allocation2 + $0x28] sm:$0x3]
      %v592 = vld [vmem:[#allocation2 + $0x30] sm:$0xff]
      %v593 = vld [vmem:[#allocation2 + $0x38] sm:$0xff]
      %v594 = vld [vmem:[#allocation2 + $0x40] sm:$0x3]
      %v595 = vld [vmem:[#allocation2 + $0x48] sm:$0xff]
      %v596 = vld [vmem:[#allocation2 + $0x50] sm:$0xff]
      %v597 = vld [vmem:[#allocation2 + $0x58] sm:$0x3]
      %v598 = vld [vmem:[#allocation2 + $0x60] sm:$0xff]
      %v599 = vld [vmem:[#allocation2 + $0x68] sm:$0xff]
      %v600 = vld [vmem:[#allocation2 + $0x70] sm:$0x3]
      %v601 = vld [vmem:[#allocation2 + $0x78] sm:$0xff]
      %v602 = vld [vmem:[#allocation2 + $0x80] sm:$0xff]
      %v603 = vld [vmem:[#allocation2 + $0x88] sm:$0x3]
      %v604 = vld [vmem:[#allocation2 + $0x90] sm:$0xff]
      %v605 = vld [vmem:[#allocation2 + $0x98] sm:$0xff]
      %v606 = vld [vmem:[#allocation2 + $0xa0] sm:$0x3]
      %v607 = vld [vmem:[#allocation2 + $0xa8] sm:$0xff]
      %v608 = vld [vmem:[#allocation2 + $0xb0] sm:$0xff]
      %v609 = vld [vmem:[#allocation2 + $0xb8] sm:$0x3]
      %v610 = vld [vmem:[#allocation2 + $0xc0] sm:$0xff]
      %v611 = vld [vmem:[#allocation2 + $0xc8] sm:$0xff]
      %v612 = vld [vmem:[#allocation2 + $0xd0] sm:$0x3]
      %v613 = vld [vmem:[#allocation2 + $0xd8] sm:$0xff]
      %v614 = vld [vmem:[#allocation2 + $0xe0] sm:$0xff]
      %v615 = vld [vmem:[#allocation2 + $0xe8] sm:$0x3]
      %v616 = vld [vmem:[#allocation2 + $0xf0] sm:$0xff]
      %v617 = vld [vmem:[#allocation2 + $0xf8] sm:$0xff]
      %v618 = vld [vmem:[#allocation2 + $0x100] sm:$0x3]
      %v619 = vld [vmem:[#allocation2 + $0x108] sm:$0xff]
      %v620 = vld [vmem:[#allocation2 + $0x110] sm:$0xff]
      %v621 = vld [vmem:[#allocation2 + $0x118] sm:$0x3]
      %v622 = vld [vmem:[#allocation2 + $0x120] sm:$0xff]
      %v623 = vld [vmem:[#allocation2 + $0x128] sm:$0xff]
      %v624 = vld [vmem:[#allocation2 + $0x130] sm:$0x3]
      %v625 = vld [vmem:[#allocation2 + $0x138] sm:$0xff]
      %v626 = vld [vmem:[#allocation2 + $0x140] sm:$0xff]
      %v627 = vld [vmem:[#allocation2 + $0x148] sm:$0x3]
      %v628 = vld [vmem:[#allocation2 + $0x150] sm:$0xff]
      %v629 = vld [vmem:[#allocation2 + $0x158] sm:$0xff]
      %v630 = vld [vmem:[#allocation2 + $0x160] sm:$0x3]
      %v631 = vld [vmem:[#allocation2 + $0x168] sm:$0xff]
      %v632 = vld [vmem:[#allocation2 + $0x170] sm:$0xff]
      %v633 = vld [vmem:[#allocation2 + $0x178] sm:$0x3]
      %v634 = vld [vmem:[#allocation2 + $0x180] sm:$0xff]
      %v635 = vld [vmem:[#allocation2 + $0x188] sm:$0xff]
      %v636 = vld [vmem:[#allocation2 + $0x190] sm:$0x3]
      %v637 = vld [vmem:[#allocation2 + $0x198] sm:$0xff]
      %v638 = vld [vmem:[#allocation2 + $0x1a0] sm:$0xff]
      %v639 = vld [vmem:[#allocation2 + $0x1a8] sm:$0x3]
      %688 = vrot.lane.b32.xlu0 %v589, 8
      %v689 = vpop.permute.xlu0 %688
      %690 = vrot.lane.b32.xlu0 %v590, 8
      %v691 = vpop.permute.xlu0 %690
      %692 = vrot.lane.b32.xlu0 %v591, 8
      %v693 = vpop.permute.xlu0 %692
      %694 = vrot.lane.b32.xlu0 %v592, 8
      %v695 = vpop.permute.xlu0 %694
      %696 = vrot.lane.b32.xlu0 %v593, 8
      %v697 = vpop.permute.xlu0 %696
      %698 = vrot.lane.b32.xlu0 %v594, 8
      %v699 = vpop.permute.xlu0 %698
      %700 = vrot.lane.b32.xlu0 %v595, 8
      %v701 = vpop.permute.xlu0 %700
      %702 = vrot.lane.b32.xlu0 %v596, 8
      %v703 = vpop.permute.xlu0 %702
      %704 = vrot.lane.b32.xlu0 %v597, 8
      %v705 = vpop.permute.xlu0 %704
      %706 = vrot.lane.b32.xlu0 %v598, 8
      %v707 = vpop.permute.xlu0 %706
      %708 = vrot.lane.b32.xlu0 %v599, 8
      %v709 = vpop.permute.xlu0 %708
      %710 = vrot.lane.b32.xlu0 %v600, 8
      %v711 = vpop.permute.xlu0 %710
      %712 = vrot.lane.b32.xlu0 %v601, 8
      %v713 = vpop.permute.xlu0 %712
      %714 = vrot.lane.b32.xlu0 %v602, 8
      %v715 = vpop.permute.xlu0 %714
      %716 = vrot.lane.b32.xlu0 %v603, 8
      %v717 = vpop.permute.xlu0 %716
      %718 = vrot.lane.b32.xlu0 %v604, 8
      %v719 = vpop.permute.xlu0 %718
      %720 = vrot.lane.b32.xlu0 %v605, 8
      %v721 = vpop.permute.xlu0 %720
      %722 = vrot.lane.b32.xlu0 %v606, 8
      %v723 = vpop.permute.xlu0 %722
      %724 = vrot.lane.b32.xlu0 %v607, 8
      %v725 = vpop.permute.xlu0 %724
      %726 = vrot.lane.b32.xlu0 %v608, 8
      %v727 = vpop.permute.xlu0 %726
      %728 = vrot.lane.b32.xlu0 %v609, 8
      %v729 = vpop.permute.xlu0 %728
      %730 = vrot.lane.b32.xlu0 %v610, 8
      %v731 = vpop.permute.xlu0 %730
      %732 = vrot.lane.b32.xlu0 %v611, 8
      %v733 = vpop.permute.xlu0 %732
      %734 = vrot.lane.b32.xlu0 %v612, 8
      %v735 = vpop.permute.xlu0 %734
      %736 = vrot.lane.b32.xlu0 %v613, 8
      %v737 = vpop.permute.xlu0 %736
      %738 = vrot.lane.b32.xlu0 %v614, 8
      %v739 = vpop.permute.xlu0 %738
      %740 = vrot.lane.b32.xlu0 %v615, 8
      %v741 = vpop.permute.xlu0 %740
      %742 = vrot.lane.b32.xlu0 %v616, 8
      %v743 = vpop.permute.xlu0 %742
      %744 = vrot.lane.b32.xlu0 %v617, 8
      %v745 = vpop.permute.xlu0 %744
      %746 = vrot.lane.b32.xlu0 %v618, 8
      %v747 = vpop.permute.xlu0 %746
      %748 = vrot.lane.b32.xlu0 %v619, 8
      %v749 = vpop.permute.xlu0 %748
      %750 = vrot.lane.b32.xlu0 %v620, 8
      %v751 = vpop.permute.xlu0 %750
      %752 = vrot.lane.b32.xlu0 %v621, 8
      %v753 = vpop.permute.xlu0 %752
      %754 = vrot.lane.b32.xlu0 %v622, 8
      %v755 = vpop.permute.xlu0 %754
      %756 = vrot.lane.b32.xlu0 %v623, 8
      %v757 = vpop.permute.xlu0 %756
      %758 = vrot.lane.b32.xlu0 %v624, 8
      %v759 = vpop.permute.xlu0 %758
      %760 = vrot.lane.b32.xlu0 %v625, 8
      %v761 = vpop.permute.xlu0 %760
      %762 = vrot.lane.b32.xlu0 %v626, 8
      %v763 = vpop.permute.xlu0 %762
      %764 = vrot.lane.b32.xlu0 %v627, 8
      %v765 = vpop.permute.xlu0 %764
      %766 = vrot.lane.b32.xlu0 %v628, 8
      %v767 = vpop.permute.xlu0 %766
      %768 = vrot.lane.b32.xlu0 %v629, 8
      %v769 = vpop.permute.xlu0 %768
      %770 = vrot.lane.b32.xlu0 %v630, 8
      %v771 = vpop.permute.xlu0 %770
      %772 = vrot.lane.b32.xlu0 %v631, 8
      %v773 = vpop.permute.xlu0 %772
      %774 = vrot.lane.b32.xlu0 %v632, 8
      %v775 = vpop.permute.xlu0 %774
      %776 = vrot.lane.b32.xlu0 %v633, 8
      %v777 = vpop.permute.xlu0 %776
      %778 = vrot.lane.b32.xlu0 %v634, 8
      %v779 = vpop.permute.xlu0 %778
      %780 = vrot.lane.b32.xlu0 %v635, 8
      %v781 = vpop.permute.xlu0 %780
      %782 = vrot.lane.b32.xlu0 %v636, 8
      %v783 = vpop.permute.xlu0 %782
      %835 = vrot.lane.b32.xlu0 %v592, 16
      %v836 = vpop.permute.xlu0 %835
      %837 = vrot.lane.b32.xlu0 %v593, 16
      %v838 = vpop.permute.xlu0 %837
      %839 = vrot.lane.b32.xlu0 %v594, 16
      %v840 = vpop.permute.xlu0 %839
      %841 = vrot.lane.b32.xlu0 %v595, 16
      %v842 = vpop.permute.xlu0 %841
      %843 = vrot.lane.b32.xlu0 %v596, 16
      %v844 = vpop.permute.xlu0 %843
      %845 = vrot.lane.b32.xlu0 %v597, 16
      %v846 = vpop.permute.xlu0 %845
      %847 = vrot.lane.b32.xlu0 %v598, 16
      %v848 = vpop.permute.xlu0 %847
      %849 = vrot.lane.b32.xlu0 %v599, 16
      %v850 = vpop.permute.xlu0 %849
      %851 = vrot.lane.b32.xlu0 %v600, 16
      %v852 = vpop.permute.xlu0 %851
      %853 = vrot.lane.b32.xlu0 %v601, 16
      %v854 = vpop.permute.xlu0 %853
      %855 = vrot.lane.b32.xlu0 %v602, 16
      %v856 = vpop.permute.xlu0 %855
      %857 = vrot.lane.b32.xlu0 %v603, 16
      %v858 = vpop.permute.xlu0 %857
      %859 = vrot.lane.b32.xlu0 %v604, 16
      %v860 = vpop.permute.xlu0 %859
      %861 = vrot.lane.b32.xlu0 %v605, 16
      %v862 = vpop.permute.xlu0 %861
      %863 = vrot.lane.b32.xlu0 %v606, 16
      %v864 = vpop.permute.xlu0 %863
      %865 = vrot.lane.b32.xlu0 %v607, 16
      %v866 = vpop.permute.xlu0 %865
      %867 = vrot.lane.b32.xlu0 %v608, 16
      %v868 = vpop.permute.xlu0 %867
      %869 = vrot.lane.b32.xlu0 %v609, 16
      %v870 = vpop.permute.xlu0 %869
      %871 = vrot.lane.b32.xlu0 %v610, 16
      %v872 = vpop.permute.xlu0 %871
      %873 = vrot.lane.b32.xlu0 %v611, 16
      %v874 = vpop.permute.xlu0 %873
      %875 = vrot.lane.b32.xlu0 %v612, 16
      %v876 = vpop.permute.xlu0 %875
      %877 = vrot.lane.b32.xlu0 %v613, 16
      %v878 = vpop.permute.xlu0 %877
      %879 = vrot.lane.b32.xlu0 %v614, 16
      %v880 = vpop.permute.xlu0 %879
      %881 = vrot.lane.b32.xlu0 %v615, 16
      %v882 = vpop.permute.xlu0 %881
      %883 = vrot.lane.b32.xlu0 %v616, 16
      %v884 = vpop.permute.xlu0 %883
      %885 = vrot.lane.b32.xlu0 %v617, 16
      %v886 = vpop.permute.xlu0 %885
      %887 = vrot.lane.b32.xlu0 %v618, 16
      %v888 = vpop.permute.xlu0 %887
      %889 = vrot.lane.b32.xlu0 %v619, 16
      %v890 = vpop.permute.xlu0 %889
      %891 = vrot.lane.b32.xlu0 %v620, 16
      %v892 = vpop.permute.xlu0 %891
      %893 = vrot.lane.b32.xlu0 %v621, 16
      %v894 = vpop.permute.xlu0 %893
      %895 = vrot.lane.b32.xlu0 %v622, 16
      %v896 = vpop.permute.xlu0 %895
      %897 = vrot.lane.b32.xlu0 %v623, 16
      %v898 = vpop.permute.xlu0 %897
      %899 = vrot.lane.b32.xlu0 %v624, 16
      %v900 = vpop.permute.xlu0 %899
      %901 = vrot.lane.b32.xlu0 %v625, 16
      %v902 = vpop.permute.xlu0 %901
      %903 = vrot.lane.b32.xlu0 %v626, 16
      %v904 = vpop.permute.xlu0 %903
      %905 = vrot.lane.b32.xlu0 %v627, 16
      %v906 = vpop.permute.xlu0 %905
      %907 = vrot.lane.b32.xlu0 %v628, 16
      %v908 = vpop.permute.xlu0 %907
      %909 = vrot.lane.b32.xlu0 %v629, 16
      %v910 = vpop.permute.xlu0 %909
      %911 = vrot.lane.b32.xlu0 %v630, 16
      %v912 = vpop.permute.xlu0 %911
      %913 = vrot.lane.b32.xlu0 %v631, 16
      %v914 = vpop.permute.xlu0 %913
      %915 = vrot.lane.b32.xlu0 %v632, 16
      %v916 = vpop.permute.xlu0 %915
      %917 = vrot.lane.b32.xlu0 %v633, 16
      %v918 = vpop.permute.xlu0 %917
      %919 = vrot.lane.b32.xlu0 %v634, 16
      %v920 = vpop.permute.xlu0 %919
      %921 = vrot.lane.b32.xlu0 %v635, 16
      %v922 = vpop.permute.xlu0 %921
      %923 = vrot.lane.b32.xlu0 %v636, 16
      %v924 = vpop.permute.xlu0 %923
      %925 = vrot.lane.b32.xlu0 %v637, 16
      %v926 = vpop.permute.xlu0 %925
      %927 = vrot.lane.b32.xlu0 %v638, 16
      %v928 = vpop.permute.xlu0 %927
      %929 = vrot.lane.b32.xlu0 %v639, 16
      %v930 = vpop.permute.xlu0 %929
      %v979 = vsel %vm272, %v586, %v689
      %v980 = vsel %vm272, %v587, %v691
      %v981 = vsel %vm272, %v588, %v693
      %v982 = vsel %vm272, %v589, %v695
      %v983 = vsel %vm272, %v590, %v697
      %v984 = vsel %vm272, %v591, %v699
      %v985 = vsel %vm272, %v592, %v701
      %v986 = vsel %vm272, %v593, %v703
      %v987 = vsel %vm272, %v594, %v705
      %v988 = vsel %vm272, %v595, %v707
      %v989 = vsel %vm272, %v596, %v709
      %v990 = vsel %vm272, %v597, %v711
      %v991 = vsel %vm272, %v598, %v713
      %v992 = vsel %vm272, %v599, %v715
      %v993 = vsel %vm272, %v600, %v717
      %v994 = vsel %vm272, %v601, %v719
      %v995 = vsel %vm272, %v602, %v721
      %v996 = vsel %vm272, %v603, %v723
      %v997 = vsel %vm272, %v604, %v725
      %v998 = vsel %vm272, %v605, %v727
      %v999 = vsel %vm272, %v606, %v729
      %v1000 = vsel %vm272, %v607, %v731
      %v1001 = vsel %vm272, %v608, %v733
      %v1002 = vsel %vm272, %v609, %v735
      %v1003 = vsel %vm272, %v610, %v737
      %v1004 = vsel %vm272, %v611, %v739
      %v1005 = vsel %vm272, %v612, %v741
      %v1006 = vsel %vm272, %v613, %v743
      %v1007 = vsel %vm272, %v614, %v745
      %v1008 = vsel %vm272, %v615, %v747
      %v1009 = vsel %vm272, %v616, %v749
      %v1010 = vsel %vm272, %v617, %v751
      %v1011 = vsel %vm272, %v618, %v753
      %v1012 = vsel %vm272, %v619, %v755
      %v1013 = vsel %vm272, %v620, %v757
      %v1014 = vsel %vm272, %v621, %v759
      %v1015 = vsel %vm272, %v622, %v761
      %v1016 = vsel %vm272, %v623, %v763
      %v1017 = vsel %vm272, %v624, %v765
      %v1018 = vsel %vm272, %v625, %v767
      %v1019 = vsel %vm272, %v626, %v769
      %v1020 = vsel %vm272, %v627, %v771
      %v1021 = vsel %vm272, %v628, %v773
      %v1022 = vsel %vm272, %v629, %v775
      %v1023 = vsel %vm272, %v630, %v777
      %v1024 = vsel %vm272, %v631, %v779
      %v1025 = vsel %vm272, %v632, %v781
      %v1026 = vsel %vm272, %v633, %v783
      %vm1027 = vcmask 130048
      %v1028 = vsel %vm1027, %v979, %v836
      %v1029 = vsel %vm1027, %v980, %v838
      %v1030 = vsel %vm1027, %v981, %v840
      %v1031 = vsel %vm1027, %v982, %v842
      %v1032 = vsel %vm1027, %v983, %v844
      %v1033 = vsel %vm1027, %v984, %v846
      %v1034 = vsel %vm1027, %v985, %v848
      %v1035 = vsel %vm1027, %v986, %v850
      %v1036 = vsel %vm1027, %v987, %v852
      %v1037 = vsel %vm1027, %v988, %v854
      %v1038 = vsel %vm1027, %v989, %v856
      %v1039 = vsel %vm1027, %v990, %v858
      %v1040 = vsel %vm1027, %v991, %v860
      %v1041 = vsel %vm1027, %v992, %v862
      %v1042 = vsel %vm1027, %v993, %v864
      %v1043 = vsel %vm1027, %v994, %v866
      %v1044 = vsel %vm1027, %v995, %v868
      %v1045 = vsel %vm1027, %v996, %v870
      %v1046 = vsel %vm1027, %v997, %v872
      %v1047 = vsel %vm1027, %v998, %v874
      %v1048 = vsel %vm1027, %v999, %v876
      %v1049 = vsel %vm1027, %v1000, %v878
      %v1050 = vsel %vm1027, %v1001, %v880
      %v1051 = vsel %vm1027, %v1002, %v882
      %v1052 = vsel %vm1027, %v1003, %v884
      %v1053 = vsel %vm1027, %v1004, %v886
      %v1054 = vsel %vm1027, %v1005, %v888
      %v1055 = vsel %vm1027, %v1006, %v890
      %v1056 = vsel %vm1027, %v1007, %v892
      %v1057 = vsel %vm1027, %v1008, %v894
      %v1058 = vsel %vm1027, %v1009, %v896
      %v1059 = vsel %vm1027, %v1010, %v898
      %v1060 = vsel %vm1027, %v1011, %v900
      %v1061 = vsel %vm1027, %v1012, %v902
      %v1062 = vsel %vm1027, %v1013, %v904
      %v1063 = vsel %vm1027, %v1014, %v906
      %v1064 = vsel %vm1027, %v1015, %v908
      %v1065 = vsel %vm1027, %v1016, %v910
      %v1066 = vsel %vm1027, %v1017, %v912
      %v1067 = vsel %vm1027, %v1018, %v914
      %v1068 = vsel %vm1027, %v1019, %v916
      %v1069 = vsel %vm1027, %v1020, %v918
      %v1070 = vsel %vm1027, %v1021, %v920
      %v1071 = vsel %vm1027, %v1022, %v922
      %v1072 = vsel %vm1027, %v1023, %v924
      %v1073 = vsel %vm1027, %v1024, %v926
      %v1074 = vsel %vm1027, %v1025, %v928
      %v1075 = vsel %vm1027, %v1026, %v930
      %vm1124 = vcmask 1046528
      %v1125 = vrot.slane %v1028, 1
      %v1126 = vrot.slane %v1029, 1
      %v1127 = vsel %vm1124, %v1125, %v1126
      %v1128 = vrot.slane %v1030, 1
      %v1129 = vsel %vm1124, %v1126, %v1128
      %v1130 = vrot.slane %v1031, 1
      %v1131 = vrot.slane %v1032, 1
      %v1132 = vsel %vm1124, %v1130, %v1131
      %v1133 = vrot.slane %v1033, 1
      %v1134 = vsel %vm1124, %v1131, %v1133
      %v1135 = vrot.slane %v1034, 1
      %v1136 = vrot.slane %v1035, 1
      %v1137 = vsel %vm1124, %v1135, %v1136
      %v1138 = vrot.slane %v1036, 1
      %v1139 = vsel %vm1124, %v1136, %v1138
      %v1140 = vrot.slane %v1037, 1
      %v1141 = vrot.slane %v1038, 1
      %v1142 = vsel %vm1124, %v1140, %v1141
      %v1143 = vrot.slane %v1039, 1
      %v1144 = vsel %vm1124, %v1141, %v1143
      %v1145 = vrot.slane %v1040, 1
      %v1146 = vrot.slane %v1041, 1
      %v1147 = vsel %vm1124, %v1145, %v1146
      %v1148 = vrot.slane %v1042, 1
      %v1149 = vsel %vm1124, %v1146, %v1148
      %v1150 = vrot.slane %v1043, 1
      %v1151 = vrot.slane %v1044, 1
      %v1152 = vsel %vm1124, %v1150, %v1151
      %v1153 = vrot.slane %v1045, 1
      %v1154 = vsel %vm1124, %v1151, %v1153
      %v1155 = vrot.slane %v1046, 1
      %v1156 = vrot.slane %v1047, 1
      %v1157 = vsel %vm1124, %v1155, %v1156
      %v1158 = vrot.slane %v1048, 1
      %v1159 = vsel %vm1124, %v1156, %v1158
      %v1160 = vrot.slane %v1049, 1
      %v1161 = vrot.slane %v1050, 1
      %v1162 = vsel %vm1124, %v1160, %v1161
      %v1163 = vrot.slane %v1051, 1
      %v1164 = vsel %vm1124, %v1161, %v1163
      %v1165 = vrot.slane %v1052, 1
      %v1166 = vrot.slane %v1053, 1
      %v1167 = vsel %vm1124, %v1165, %v1166
      %v1168 = vrot.slane %v1054, 1
      %v1169 = vsel %vm1124, %v1166, %v1168
      %v1170 = vrot.slane %v1055, 1
      %v1171 = vrot.slane %v1056, 1
      %v1172 = vsel %vm1124, %v1170, %v1171
      %v1173 = vrot.slane %v1057, 1
      %v1174 = vsel %vm1124, %v1171, %v1173
      %v1175 = vrot.slane %v1058, 1
      %v1176 = vrot.slane %v1059, 1
      %v1177 = vsel %vm1124, %v1175, %v1176
      %v1178 = vrot.slane %v1060, 1
      %v1179 = vsel %vm1124, %v1176, %v1178
      %v1180 = vrot.slane %v1061, 1
      %v1181 = vrot.slane %v1062, 1
      %v1182 = vsel %vm1124, %v1180, %v1181
      %v1183 = vrot.slane %v1063, 1
      %v1184 = vsel %vm1124, %v1181, %v1183
      %v1185 = vrot.slane %v1064, 1
      %v1186 = vrot.slane %v1065, 1
      %v1187 = vsel %vm1124, %v1185, %v1186
      %v1188 = vrot.slane %v1066, 1
      %v1189 = vsel %vm1124, %v1186, %v1188
      %v1190 = vrot.slane %v1067, 1
      %v1191 = vrot.slane %v1068, 1
      %v1192 = vsel %vm1124, %v1190, %v1191
      %v1193 = vrot.slane %v1069, 1
      %v1194 = vsel %vm1124, %v1191, %v1193
      %v1195 = vrot.slane %v1070, 1
      %v1196 = vrot.slane %v1071, 1
      %v1197 = vsel %vm1124, %v1195, %v1196
      %v1198 = vrot.slane %v1072, 1
      %v1199 = vsel %vm1124, %v1196, %v1198
      %v1200 = vrot.slane %v1073, 1
      %v1201 = vrot.slane %v1074, 1
      %v1202 = vsel %vm1124, %v1200, %v1201
      %v1203 = vrot.slane %v1075, 1
      %v1204 = vsel %vm1124, %v1201, %v1203
      %1205 = vrot.lane.b32.xlu0 %v1127, 24
      %v1206 = vpop.permute.xlu0 %1205
      %1207 = vrot.lane.b32.xlu0 %v1129, 24
      %v1208 = vpop.permute.xlu0 %1207
      %1209 = vrot.lane.b32.xlu0 %v1132, 24
      %v1210 = vpop.permute.xlu0 %1209
      %1211 = vrot.lane.b32.xlu0 %v1134, 24
      %v1212 = vpop.permute.xlu0 %1211
      %1213 = vrot.lane.b32.xlu0 %v1137, 24
      %v1214 = vpop.permute.xlu0 %1213
      %1215 = vrot.lane.b32.xlu0 %v1139, 24
      %v1216 = vpop.permute.xlu0 %1215
      %1217 = vrot.lane.b32.xlu0 %v1142, 24
      %v1218 = vpop.permute.xlu0 %1217
      %1219 = vrot.lane.b32.xlu0 %v1144, 24
      %v1220 = vpop.permute.xlu0 %1219
      %1221 = vrot.lane.b32.xlu0 %v1147, 24
      %v1222 = vpop.permute.xlu0 %1221
      %1223 = vrot.lane.b32.xlu0 %v1149, 24
      %v1224 = vpop.permute.xlu0 %1223
      %1225 = vrot.lane.b32.xlu0 %v1152, 24
      %v1226 = vpop.permute.xlu0 %1225
      %1227 = vrot.lane.b32.xlu0 %v1154, 24
      %v1228 = vpop.permute.xlu0 %1227
      %1229 = vrot.lane.b32.xlu0 %v1157, 24
      %v1230 = vpop.permute.xlu0 %1229
      %1231 = vrot.lane.b32.xlu0 %v1159, 24
      %v1232 = vpop.permute.xlu0 %1231
      %1233 = vrot.lane.b32.xlu0 %v1162, 24
      %v1234 = vpop.permute.xlu0 %1233
      %1235 = vrot.lane.b32.xlu0 %v1164, 24
      %v1236 = vpop.permute.xlu0 %1235
      %1237 = vrot.lane.b32.xlu0 %v1167, 24
      %v1238 = vpop.permute.xlu0 %1237
      %1239 = vrot.lane.b32.xlu0 %v1169, 24
      %v1240 = vpop.permute.xlu0 %1239
      %1241 = vrot.lane.b32.xlu0 %v1172, 24
      %v1242 = vpop.permute.xlu0 %1241
      %1243 = vrot.lane.b32.xlu0 %v1174, 24
      %v1244 = vpop.permute.xlu0 %1243
      %1245 = vrot.lane.b32.xlu0 %v1177, 24
      %v1246 = vpop.permute.xlu0 %1245
      %1247 = vrot.lane.b32.xlu0 %v1179, 24
      %v1248 = vpop.permute.xlu0 %1247
      %1249 = vrot.lane.b32.xlu0 %v1182, 24
      %v1250 = vpop.permute.xlu0 %1249
      %1251 = vrot.lane.b32.xlu0 %v1184, 24
      %v1252 = vpop.permute.xlu0 %1251
      %1253 = vrot.lane.b32.xlu0 %v1187, 24
      %v1254 = vpop.permute.xlu0 %1253
      %1255 = vrot.lane.b32.xlu0 %v1189, 24
      %v1256 = vpop.permute.xlu0 %1255
      %1257 = vrot.lane.b32.xlu0 %v1192, 24
      %v1258 = vpop.permute.xlu0 %1257
      %1259 = vrot.lane.b32.xlu0 %v1194, 24
      %v1260 = vpop.permute.xlu0 %1259
      %1261 = vrot.lane.b32.xlu0 %v1197, 24
      %v1262 = vpop.permute.xlu0 %1261
      %1263 = vrot.lane.b32.xlu0 %v1199, 24
      %v1264 = vpop.permute.xlu0 %1263
      %1265 = vrot.lane.b32.xlu0 %v1202, 24
      %v1266 = vpop.permute.xlu0 %1265
      %1267 = vrot.lane.b32.xlu0 %v1204, 24
      %v1268 = vpop.permute.xlu0 %1267
      %vm1301 = vcmask 1045504
      %v1302 = vrot.slane %v1028, 2
      %v1303 = vrot.slane %v1029, 2
      %v1304 = vsel %vm1301, %v1302, %v1303
      %v1305 = vrot.slane %v1030, 2
      %v1306 = vsel %vm1301, %v1303, %v1305
      %v1307 = vrot.slane %v1031, 2
      %v1308 = vrot.slane %v1032, 2
      %v1309 = vsel %vm1301, %v1307, %v1308
      %v1310 = vrot.slane %v1033, 2
      %v1311 = vsel %vm1301, %v1308, %v1310
      %v1312 = vrot.slane %v1034, 2
      %v1313 = vrot.slane %v1035, 2
      %v1314 = vsel %vm1301, %v1312, %v1313
      %v1315 = vrot.slane %v1036, 2
      %v1316 = vsel %vm1301, %v1313, %v1315
      %v1317 = vrot.slane %v1037, 2
      %v1318 = vrot.slane %v1038, 2
      %v1319 = vsel %vm1301, %v1317, %v1318
      %v1320 = vrot.slane %v1039, 2
      %v1321 = vsel %vm1301, %v1318, %v1320
      %v1322 = vrot.slane %v1040, 2
      %v1323 = vrot.slane %v1041, 2
      %v1324 = vsel %vm1301, %v1322, %v1323
      %v1325 = vrot.slane %v1042, 2
      %v1326 = vsel %vm1301, %v1323, %v1325
      %v1327 = vrot.slane %v1043, 2
      %v1328 = vrot.slane %v1044, 2
      %v1329 = vsel %vm1301, %v1327, %v1328
      %v1330 = vrot.slane %v1045, 2
      %v1331 = vsel %vm1301, %v1328, %v1330
      %v1332 = vrot.slane %v1046, 2
      %v1333 = vrot.slane %v1047, 2
      %v1334 = vsel %vm1301, %v1332, %v1333
      %v1335 = vrot.slane %v1048, 2
      %v1336 = vsel %vm1301, %v1333, %v1335
      %v1337 = vrot.slane %v1049, 2
      %v1338 = vrot.slane %v1050, 2
      %v1339 = vsel %vm1301, %v1337, %v1338
      %v1340 = vrot.slane %v1051, 2
      %v1341 = vsel %vm1301, %v1338, %v1340
      %v1342 = vrot.slane %v1052, 2
      %v1343 = vrot.slane %v1053, 2
      %v1344 = vsel %vm1301, %v1342, %v1343
      %v1345 = vrot.slane %v1054, 2
      %v1346 = vsel %vm1301, %v1343, %v1345
      %v1347 = vrot.slane %v1055, 2
      %v1348 = vrot.slane %v1056, 2
      %v1349 = vsel %vm1301, %v1347, %v1348
      %v1350 = vrot.slane %v1057, 2
      %v1351 = vsel %vm1301, %v1348, %v1350
      %v1352 = vrot.slane %v1058, 2
      %v1353 = vrot.slane %v1059, 2
      %v1354 = vsel %vm1301, %v1352, %v1353
      %v1355 = vrot.slane %v1060, 2
      %v1356 = vsel %vm1301, %v1353, %v1355
      %v1357 = vrot.slane %v1061, 2
      %v1358 = vrot.slane %v1062, 2
      %v1359 = vsel %vm1301, %v1357, %v1358
      %v1360 = vrot.slane %v1063, 2
      %v1361 = vsel %vm1301, %v1358, %v1360
      %v1362 = vrot.slane %v1064, 2
      %v1363 = vrot.slane %v1065, 2
      %v1364 = vsel %vm1301, %v1362, %v1363
      %v1365 = vrot.slane %v1066, 2
      %v1366 = vsel %vm1301, %v1363, %v1365
      %v1367 = vrot.slane %v1067, 2
      %v1368 = vrot.slane %v1068, 2
      %v1369 = vsel %vm1301, %v1367, %v1368
      %v1370 = vrot.slane %v1069, 2
      %v1371 = vsel %vm1301, %v1368, %v1370
      %v1372 = vrot.slane %v1070, 2
      %v1373 = vrot.slane %v1071, 2
      %v1374 = vsel %vm1301, %v1372, %v1373
      %v1375 = vrot.slane %v1072, 2
      %v1376 = vsel %vm1301, %v1373, %v1375
      %v1377 = vrot.slane %v1073, 2
      %v1378 = vrot.slane %v1074, 2
      %v1379 = vsel %vm1301, %v1377, %v1378
      %v1380 = vrot.slane %v1075, 2
      %v1381 = vsel %vm1301, %v1378, %v1380
      %1382 = vrot.lane.b32.xlu0 %v1304, 48
      %v1383 = vpop.permute.xlu0 %1382
      %1384 = vrot.lane.b32.xlu0 %v1306, 48
      %v1385 = vpop.permute.xlu0 %1384
      %1386 = vrot.lane.b32.xlu0 %v1309, 48
      %v1387 = vpop.permute.xlu0 %1386
      %1388 = vrot.lane.b32.xlu0 %v1311, 48
      %v1389 = vpop.permute.xlu0 %1388
      %1390 = vrot.lane.b32.xlu0 %v1314, 48
      %v1391 = vpop.permute.xlu0 %1390
      %1392 = vrot.lane.b32.xlu0 %v1316, 48
      %v1393 = vpop.permute.xlu0 %1392
      %1394 = vrot.lane.b32.xlu0 %v1319, 48
      %v1395 = vpop.permute.xlu0 %1394
      %1396 = vrot.lane.b32.xlu0 %v1321, 48
      %v1397 = vpop.permute.xlu0 %1396
      %1398 = vrot.lane.b32.xlu0 %v1324, 48
      %v1399 = vpop.permute.xlu0 %1398
      %1400 = vrot.lane.b32.xlu0 %v1326, 48
      %v1401 = vpop.permute.xlu0 %1400
      %1402 = vrot.lane.b32.xlu0 %v1329, 48
      %v1403 = vpop.permute.xlu0 %1402
      %1404 = vrot.lane.b32.xlu0 %v1331, 48
      %v1405 = vpop.permute.xlu0 %1404
      %1406 = vrot.lane.b32.xlu0 %v1334, 48
      %v1407 = vpop.permute.xlu0 %1406
      %1408 = vrot.lane.b32.xlu0 %v1336, 48
      %v1409 = vpop.permute.xlu0 %1408
      %1410 = vrot.lane.b32.xlu0 %v1339, 48
      %v1411 = vpop.permute.xlu0 %1410
      %1412 = vrot.lane.b32.xlu0 %v1341, 48
      %v1413 = vpop.permute.xlu0 %1412
      %1414 = vrot.lane.b32.xlu0 %v1344, 48
      %v1415 = vpop.permute.xlu0 %1414
      %1416 = vrot.lane.b32.xlu0 %v1346, 48
      %v1417 = vpop.permute.xlu0 %1416
      %1418 = vrot.lane.b32.xlu0 %v1349, 48
      %v1419 = vpop.permute.xlu0 %1418
      %1420 = vrot.lane.b32.xlu0 %v1351, 48
      %v1421 = vpop.permute.xlu0 %1420
      %1422 = vrot.lane.b32.xlu0 %v1354, 48
      %v1423 = vpop.permute.xlu0 %1422
      %1424 = vrot.lane.b32.xlu0 %v1356, 48
      %v1425 = vpop.permute.xlu0 %1424
      %1426 = vrot.lane.b32.xlu0 %v1359, 48
      %v1427 = vpop.permute.xlu0 %1426
      %1428 = vrot.lane.b32.xlu0 %v1361, 48
      %v1429 = vpop.permute.xlu0 %1428
      %1430 = vrot.lane.b32.xlu0 %v1364, 48
      %v1431 = vpop.permute.xlu0 %1430
      %1432 = vrot.lane.b32.xlu0 %v1366, 48
      %v1433 = vpop.permute.xlu0 %1432
      %1434 = vrot.lane.b32.xlu0 %v1369, 48
      %v1435 = vpop.permute.xlu0 %1434
      %1436 = vrot.lane.b32.xlu0 %v1371, 48
      %v1437 = vpop.permute.xlu0 %1436
      %1438 = vrot.lane.b32.xlu0 %v1374, 48
      %v1439 = vpop.permute.xlu0 %1438
      %1440 = vrot.lane.b32.xlu0 %v1376, 48
      %v1441 = vpop.permute.xlu0 %1440
      %1442 = vrot.lane.b32.xlu0 %v1379, 48
      %v1443 = vpop.permute.xlu0 %1442
      %1444 = vrot.lane.b32.xlu0 %v1381, 48
      %v1445 = vpop.permute.xlu0 %1444
      %vm1478 = vcmask 195584
      %v1479 = vsel %vm1478, %v1028, %v1206
      %v1480 = vsel %vm1478, %v1029, %v1208
      %v1481 = vsel %vm1478, %v1031, %v1210
      %v1482 = vsel %vm1478, %v1032, %v1212
      %v1483 = vsel %vm1478, %v1034, %v1214
      %v1484 = vsel %vm1478, %v1035, %v1216
      %v1485 = vsel %vm1478, %v1037, %v1218
      %v1486 = vsel %vm1478, %v1038, %v1220
      %v1487 = vsel %vm1478, %v1040, %v1222
      %v1488 = vsel %vm1478, %v1041, %v1224
      %v1489 = vsel %vm1478, %v1043, %v1226
      %v1490 = vsel %vm1478, %v1044, %v1228
      %v1491 = vsel %vm1478, %v1046, %v1230
      %v1492 = vsel %vm1478, %v1047, %v1232
      %v1493 = vsel %vm1478, %v1049, %v1234
      %v1494 = vsel %vm1478, %v1050, %v1236
      %v1495 = vsel %vm1478, %v1052, %v1238
      %v1496 = vsel %vm1478, %v1053, %v1240
      %v1497 = vsel %vm1478, %v1055, %v1242
      %v1498 = vsel %vm1478, %v1056, %v1244
      %v1499 = vsel %vm1478, %v1058, %v1246
      %v1500 = vsel %vm1478, %v1059, %v1248
      %v1501 = vsel %vm1478, %v1061, %v1250
      %v1502 = vsel %vm1478, %v1062, %v1252
      %v1503 = vsel %vm1478, %v1064, %v1254
      %v1504 = vsel %vm1478, %v1065, %v1256
      %v1505 = vsel %vm1478, %v1067, %v1258
      %v1506 = vsel %vm1478, %v1068, %v1260
      %v1507 = vsel %vm1478, %v1070, %v1262
      %v1508 = vsel %vm1478, %v1071, %v1264
      %v1509 = vsel %vm1478, %v1073, %v1266
      %v1510 = vsel %vm1478, %v1074, %v1268
      %vm1511 = vcmask 392192
      %v1512 = vsel %vm1511, %v1479, %v1383
      %v1513 = vsel %vm1511, %v1480, %v1385
      %v1514 = vsel %vm1511, %v1481, %v1387
      %v1515 = vsel %vm1511, %v1482, %v1389
      %v1516 = vsel %vm1511, %v1483, %v1391
      %v1517 = vsel %vm1511, %v1484, %v1393
      %v1518 = vsel %vm1511, %v1485, %v1395
      %v1519 = vsel %vm1511, %v1486, %v1397
      %v1520 = vsel %vm1511, %v1487, %v1399
      %v1521 = vsel %vm1511, %v1488, %v1401
      %v1522 = vsel %vm1511, %v1489, %v1403
      %v1523 = vsel %vm1511, %v1490, %v1405
      %v1524 = vsel %vm1511, %v1491, %v1407
      %v1525 = vsel %vm1511, %v1492, %v1409
      %v1526 = vsel %vm1511, %v1493, %v1411
      %v1527 = vsel %vm1511, %v1494, %v1413
      %v1528 = vsel %vm1511, %v1495, %v1415
      %v1529 = vsel %vm1511, %v1496, %v1417
      %v1530 = vsel %vm1511, %v1497, %v1419
      %v1531 = vsel %vm1511, %v1498, %v1421
      %v1532 = vsel %vm1511, %v1499, %v1423
      %v1533 = vsel %vm1511, %v1500, %v1425
      %v1534 = vsel %vm1511, %v1501, %v1427
      %v1535 = vsel %vm1511, %v1502, %v1429
      %v1536 = vsel %vm1511, %v1503, %v1431
      %v1537 = vsel %vm1511, %v1504, %v1433
      %v1538 = vsel %vm1511, %v1505, %v1435
      %v1539 = vsel %vm1511, %v1506, %v1437
      %v1540 = vsel %vm1511, %v1507, %v1439
      %v1541 = vsel %vm1511, %v1508, %v1441
      %v1542 = vsel %vm1511, %v1509, %v1443
      %v1543 = vsel %vm1511, %v1510, %v1445
      %v1544 = vld [vmem:[%s2] sm:$0xff]
      %v1545 = vld [vmem:[%s2 + $0x8] sm:$0xff]
      %v1546 = vld [vmem:[%s2 + $0x10] sm:$0xff]
      %v1547 = vld [vmem:[%s2 + $0x18] sm:$0xff]
      %v1548 = vld [vmem:[%s2 + $0x20] sm:$0xff]
      %v1549 = vld [vmem:[%s2 + $0x28] sm:$0xff]
      %v1550 = vld [vmem:[%s2 + $0x30] sm:$0xff]
      %v1551 = vld [vmem:[%s2 + $0x38] sm:$0xff]
      %v1552 = vld [vmem:[%s2 + $0x40] sm:$0xff]
      %v1553 = vld [vmem:[%s3] sm:$0x1]
      %v1555 = vlaneseq
      %v1556 = vshrl.u32 %v1555, 7
      %v1557 = vsub.s32 0, %v1556
      %v1558 = vrot.slane %v1553, %v1557
      %vm1560 = vcmask 588800
      %v1562 = vsel %vm1560, %v1512, 0
      %v1565 = vsel %vm1560, %v1513, 0
      %v1568 = vsel %vm1560, %v1514, 0
      %v1571 = vsel %vm1560, %v1515, 0
      %v1574 = vsel %vm1560, %v1516, 0
      %v1577 = vsel %vm1560, %v1517, 0
      %v1580 = vsel %vm1560, %v1518, 0
      %v1583 = vsel %vm1560, %v1519, 0
      %v1586 = vsel %vm1560, %v1520, 0
      %v1589 = vsel %vm1560, %v1521, 0
      %v1592 = vsel %vm1560, %v1522, 0
      %v1595 = vsel %vm1560, %v1523, 0
      %v1598 = vsel %vm1560, %v1524, 0
      %v1601 = vsel %vm1560, %v1525, 0
      %v1604 = vsel %vm1560, %v1526, 0
      %v1607 = vsel %vm1560, %v1527, 0
      %v1610 = vsel %vm1560, %v1528, 0
      %v1613 = vsel %vm1560, %v1529, 0
      %v1616 = vsel %vm1560, %v1530, 0
      %v1619 = vsel %vm1560, %v1531, 0
      %v1622 = vsel %vm1560, %v1532, 0
      %v1625 = vsel %vm1560, %v1533, 0
      %v1628 = vsel %vm1560, %v1534, 0
      %v1631 = vsel %vm1560, %v1535, 0
      %v1634 = vsel %vm1560, %v1536, 0
      %v1637 = vsel %vm1560, %v1537, 0
      %v1640 = vsel %vm1560, %v1538, 0
      %v1643 = vsel %vm1560, %v1539, 0
      %v1646 = vsel %vm1560, %v1540, 0
      %v1649 = vsel %vm1560, %v1541, 0
      %v1652 = vsel %vm1560, %v1542, 0
      %v1655 = vsel %vm1560, %v1543, 0
      %1657 = vmatprep.subr.mxu0 0.0
      %1658 = vmatpush1.msra.mxu0 0.0
      %1659 = vmatprep.subr.mxu0 0.0
      %1660 = vmatpush1.msra.mxu0 0.0
      %1661 = vmatprep.subr.mxu0 0.0
      %1662 = vmatpush1.msra.mxu0 0.0
      %1663 = vmatprep.subr.mxu0 0.0
      %1664 = vmatpush1.msra.mxu0 0.0
      %1665 = vmatprep.subr.mxu0 0.0
      %1666 = vmatpush1.msra.mxu0 0.0
      %1667 = vmatprep.subr.mxu0 0.0
      %1668 = vmatpush1.msra.mxu0 0.0
      %1669 = vmatprep.subr.mxu0 0.0
      %1670 = vmatpush1.msra.mxu0 0.0
      %1671 = vmatprep.subr.mxu0 0.0
      %1672 = vmatpush1.msra.mxu0 %v1552
      %1673 = vmatprep.subr.mxu0 0.0
      %1674 = vmatpush1.msra.mxu0 %v1551
      %1675 = vmatprep.subr.mxu0 0.0
      %1676 = vmatpush1.msra.mxu0 %v1550
      %1677 = vmatprep.subr.mxu0 0.0
      %1678 = vmatpush1.msra.mxu0 %v1549
      %1679 = vmatprep.subr.mxu0 0.0
      %1680 = vmatpush1.msra.mxu0 %v1548
      %1681 = vmatprep.subr.mxu0 0.0
      %1682 = vmatpush1.msra.mxu0 %v1547
      %1683 = vmatprep.subr.mxu0 0.0
      %1684 = vmatpush1.msra.mxu0 %v1546
      %1685 = vmatprep.subr.mxu0 0.0
      %1686 = vmatpush1.msra.mxu0 %v1545
      %1687 = vmatprep.subr.mxu0 0.0
      %1688 = vmatpush1.msra.mxu0 %v1544
      %1689 = vmatprep.subr.mxu0 0.0
      %1690 = vmatpush2.msra.mxu0 0.0
      %1691 = vmatprep.subr.mxu0 0.0
      %1692 = vmatpush2.msra.mxu0 0.0
      %1693 = vmatprep.subr.mxu0 0.0
      %1694 = vmatpush2.msra.mxu0 0.0
      %1695 = vmatprep.subr.mxu0 0.0
      %1696 = vmatpush2.msra.mxu0 0.0
      %1697 = vmatprep.subr.mxu0 0.0
      %1698 = vmatpush2.msra.mxu0 0.0
      %1699 = vmatprep.subr.mxu0 0.0
      %1700 = vmatpush2.msra.mxu0 0.0
      %1701 = vmatprep.subr.mxu0 0.0
      %1702 = vmatpush2.msra.mxu0 0.0
      %1703 = vmatprep.subr.mxu0 0.0
      %1704 = vmatpush2.msra.mxu0 0.0
      %1705 = vmatprep.subr.mxu0 0.0
      %1706 = vmatpush2.msra.mxu0 0.0
      %1707 = vmatprep.subr.mxu0 0.0
      %1708 = vmatpush2.msra.mxu0 0.0
      %1709 = vmatprep.subr.mxu0 0.0
      %1710 = vmatpush2.msra.mxu0 0.0
      %1711 = vmatprep.subr.mxu0 0.0
      %1712 = vmatpush2.msra.mxu0 0.0
      %1713 = vmatprep.subr.mxu0 0.0
      %1714 = vmatpush2.msra.mxu0 0.0
      %1715 = vmatprep.subr.mxu0 0.0
      %1716 = vmatpush2.msra.mxu0 0.0
      %1717 = vmatprep.subr.mxu0 0.0
      %1718 = vmatpush2.msra.mxu0 0.0
      %1719 = vmatprep.subr.mxu0 0.0
      %1720 = vmatpush2.msra.mxu0 0.0
      %1721 = vmatprep.mubr.f32.mxu0 0.0
      %1722 = vmatmul.mubr.f32.gmra.mxu0 %v1562
      %v1723 = vpop.f32.mrf.mxu0
      %v1724 = vadd.f32 %v1558, %v1723
      %v1725 = vpop.f32.mrf.mxu0
      %1726 = vmatprep.mubr.f32.mxu0 0.0
      %1727 = vmatmul.mubr.f32.gmra.mxu0 %v1565
      %v1728 = vpop.f32.mrf.mxu0
      %v1729 = vadd.f32 %v1558, %v1728
      %v1730 = vpop.f32.mrf.mxu0
      %1731 = vmatprep.mubr.f32.mxu0 0.0
      %1732 = vmatmul.mubr.f32.gmra.mxu0 %v1568
      %v1733 = vpop.f32.mrf.mxu0
      %v1734 = vadd.f32 %v1558, %v1733
      %v1735 = vpop.f32.mrf.mxu0
      %1736 = vmatprep.mubr.f32.mxu0 0.0
      %1737 = vmatmul.mubr.f32.gmra.mxu0 %v1571
      %v1738 = vpop.f32.mrf.mxu0
      %v1739 = vadd.f32 %v1558, %v1738
      %v1740 = vpop.f32.mrf.mxu0
      %1741 = vmatprep.mubr.f32.mxu0 0.0
      %1742 = vmatmul.mubr.f32.gmra.mxu0 %v1574
      %v1743 = vpop.f32.mrf.mxu0
      %v1744 = vadd.f32 %v1558, %v1743
      %v1745 = vpop.f32.mrf.mxu0
      %1746 = vmatprep.mubr.f32.mxu0 0.0
      %1747 = vmatmul.mubr.f32.gmra.mxu0 %v1577
      %v1748 = vpop.f32.mrf.mxu0
      %v1749 = vadd.f32 %v1558, %v1748
      %v1750 = vpop.f32.mrf.mxu0
      %1751 = vmatprep.mubr.f32.mxu0 0.0
      %1752 = vmatmul.mubr.f32.gmra.mxu0 %v1580
      %v1753 = vpop.f32.mrf.mxu0
      %v1754 = vadd.f32 %v1558, %v1753
      %v1755 = vpop.f32.mrf.mxu0
      %1756 = vmatprep.mubr.f32.mxu0 0.0
      %1757 = vmatmul.mubr.f32.gmra.mxu0 %v1583
      %v1758 = vpop.f32.mrf.mxu0
      %v1759 = vadd.f32 %v1558, %v1758
      %v1760 = vpop.f32.mrf.mxu0
      %1761 = vmatprep.mubr.f32.mxu0 0.0
      %1762 = vmatmul.mubr.f32.gmra.mxu0 %v1586
      %v1763 = vpop.f32.mrf.mxu0
      %v1764 = vadd.f32 %v1558, %v1763
      %v1765 = vpop.f32.mrf.mxu0
      %1766 = vmatprep.mubr.f32.mxu0 0.0
      %1767 = vmatmul.mubr.f32.gmra.mxu0 %v1589
      %v1768 = vpop.f32.mrf.mxu0
      %v1769 = vadd.f32 %v1558, %v1768
      %v1770 = vpop.f32.mrf.mxu0
      %1771 = vmatprep.mubr.f32.mxu0 0.0
      %1772 = vmatmul.mubr.f32.gmra.mxu0 %v1592
      %v1773 = vpop.f32.mrf.mxu0
      %v1774 = vadd.f32 %v1558, %v1773
      %v1775 = vpop.f32.mrf.mxu0
      %1776 = vmatprep.mubr.f32.mxu0 0.0
      %1777 = vmatmul.mubr.f32.gmra.mxu0 %v1595
      %v1778 = vpop.f32.mrf.mxu0
      %v1779 = vadd.f32 %v1558, %v1778
      %v1780 = vpop.f32.mrf.mxu0
      %1781 = vmatprep.mubr.f32.mxu0 0.0
      %1782 = vmatmul.mubr.f32.gmra.mxu0 %v1598
      %v1783 = vpop.f32.mrf.mxu0
      %v1784 = vadd.f32 %v1558, %v1783
      %v1785 = vpop.f32.mrf.mxu0
      %1786 = vmatprep.mubr.f32.mxu0 0.0
      %1787 = vmatmul.mubr.f32.gmra.mxu0 %v1601
      %v1788 = vpop.f32.mrf.mxu0
      %v1789 = vadd.f32 %v1558, %v1788
      %v1790 = vpop.f32.mrf.mxu0
      %1791 = vmatprep.mubr.f32.mxu0 0.0
      %1792 = vmatmul.mubr.f32.gmra.mxu0 %v1604
      %v1793 = vpop.f32.mrf.mxu0
      %v1794 = vadd.f32 %v1558, %v1793
      %v1795 = vpop.f32.mrf.mxu0
      %1796 = vmatprep.mubr.f32.mxu0 0.0
      %1797 = vmatmul.mubr.f32.gmra.mxu0 %v1607
      %v1798 = vpop.f32.mrf.mxu0
      %v1799 = vadd.f32 %v1558, %v1798
      %v1800 = vpop.f32.mrf.mxu0
      %1801 = vmatprep.mubr.f32.mxu0 0.0
      %1802 = vmatmul.mubr.f32.gmra.mxu0 %v1610
      %v1803 = vpop.f32.mrf.mxu0
      %v1804 = vadd.f32 %v1558, %v1803
      %v1805 = vpop.f32.mrf.mxu0
      %1806 = vmatprep.mubr.f32.mxu0 0.0
      %1807 = vmatmul.mubr.f32.gmra.mxu0 %v1613
      %v1808 = vpop.f32.mrf.mxu0
      %v1809 = vadd.f32 %v1558, %v1808
      %v1810 = vpop.f32.mrf.mxu0
      %1811 = vmatprep.mubr.f32.mxu0 0.0
      %1812 = vmatmul.mubr.f32.gmra.mxu0 %v1616
      %v1813 = vpop.f32.mrf.mxu0
      %v1814 = vadd.f32 %v1558, %v1813
      %v1815 = vpop.f32.mrf.mxu0
      %1816 = vmatprep.mubr.f32.mxu0 0.0
      %1817 = vmatmul.mubr.f32.gmra.mxu0 %v1619
      %v1818 = vpop.f32.mrf.mxu0
      %v1819 = vadd.f32 %v1558, %v1818
      %v1820 = vpop.f32.mrf.mxu0
      %1821 = vmatprep.mubr.f32.mxu0 0.0
      %1822 = vmatmul.mubr.f32.gmra.mxu0 %v1622
      %v1823 = vpop.f32.mrf.mxu0
      %v1824 = vadd.f32 %v1558, %v1823
      %v1825 = vpop.f32.mrf.mxu0
      %1826 = vmatprep.mubr.f32.mxu0 0.0
      %1827 = vmatmul.mubr.f32.gmra.mxu0 %v1625
      %v1828 = vpop.f32.mrf.mxu0
      %v1829 = vadd.f32 %v1558, %v1828
      %v1830 = vpop.f32.mrf.mxu0
      %1831 = vmatprep.mubr.f32.mxu0 0.0
      %1832 = vmatmul.mubr.f32.gmra.mxu0 %v1628
      %v1833 = vpop.f32.mrf.mxu0
      %v1834 = vadd.f32 %v1558, %v1833
      %v1835 = vpop.f32.mrf.mxu0
      %1836 = vmatprep.mubr.f32.mxu0 0.0
      %1837 = vmatmul.mubr.f32.gmra.mxu0 %v1631
      %v1838 = vpop.f32.mrf.mxu0
      %v1839 = vadd.f32 %v1558, %v1838
      %v1840 = vpop.f32.mrf.mxu0
      %1841 = vmatprep.mubr.f32.mxu0 0.0
      %1842 = vmatmul.mubr.f32.gmra.mxu0 %v1634
      %v1843 = vpop.f32.mrf.mxu0
      %v1844 = vadd.f32 %v1558, %v1843
      %v1845 = vpop.f32.mrf.mxu0
      %1846 = vmatprep.mubr.f32.mxu0 0.0
      %1847 = vmatmul.mubr.f32.gmra.mxu0 %v1637
      %v1848 = vpop.f32.mrf.mxu0
      %v1849 = vadd.f32 %v1558, %v1848
      %v1850 = vpop.f32.mrf.mxu0
      %1851 = vmatprep.mubr.f32.mxu0 0.0
      %1852 = vmatmul.mubr.f32.gmra.mxu0 %v1640
      %v1853 = vpop.f32.mrf.mxu0
      %v1854 = vadd.f32 %v1558, %v1853
      %v1855 = vpop.f32.mrf.mxu0
      %1856 = vmatprep.mubr.f32.mxu0 0.0
      %1857 = vmatmul.mubr.f32.gmra.mxu0 %v1643
      %v1858 = vpop.f32.mrf.mxu0
      %v1859 = vadd.f32 %v1558, %v1858
      %v1860 = vpop.f32.mrf.mxu0
      %1861 = vmatprep.mubr.f32.mxu0 0.0
      %1862 = vmatmul.mubr.f32.gmra.mxu0 %v1646
      %v1863 = vpop.f32.mrf.mxu0
      %v1864 = vadd.f32 %v1558, %v1863
      %v1865 = vpop.f32.mrf.mxu0
      %1866 = vmatprep.mubr.f32.mxu0 0.0
      %1867 = vmatmul.mubr.f32.gmra.mxu0 %v1649
      %v1868 = vpop.f32.mrf.mxu0
      %v1869 = vadd.f32 %v1558, %v1868
      %v1870 = vpop.f32.mrf.mxu0
      %1871 = vmatprep.mubr.f32.mxu0 0.0
      %1872 = vmatmul.mubr.f32.gmra.mxu0 %v1652
      %v1873 = vpop.f32.mrf.mxu0
      %v1874 = vadd.f32 %v1558, %v1873
      %v1875 = vpop.f32.mrf.mxu0
      %1876 = vmatprep.mubr.f32.mxu0 0.0
      %1877 = vmatmul.mubr.f32.gmra.mxu0 %v1655
      %v1878 = vpop.f32.mrf.mxu0
      %v1879 = vadd.f32 %v1558, %v1878
      %v1880 = vpop.f32.mrf.mxu0
      %1881 = vdwg.mxu0
      %v1882 = vmax.f32 %v1724, 0.0
      %v1883 = vmax.f32 %v1729, 0.0
      %v1884 = vmax.f32 %v1734, 0.0
      %v1885 = vmax.f32 %v1739, 0.0
      %v1886 = vmax.f32 %v1744, 0.0
      %v1887 = vmax.f32 %v1749, 0.0
      %v1888 = vmax.f32 %v1754, 0.0
      %v1889 = vmax.f32 %v1759, 0.0
      %v1890 = vmax.f32 %v1764, 0.0
      %v1891 = vmax.f32 %v1769, 0.0
      %v1892 = vmax.f32 %v1774, 0.0
      %v1893 = vmax.f32 %v1779, 0.0
      %v1894 = vmax.f32 %v1784, 0.0
      %v1895 = vmax.f32 %v1789, 0.0
      %v1896 = vmax.f32 %v1794, 0.0
      %v1897 = vmax.f32 %v1799, 0.0
      %v1898 = vmax.f32 %v1804, 0.0
      %v1899 = vmax.f32 %v1809, 0.0
      %v1900 = vmax.f32 %v1814, 0.0
      %v1901 = vmax.f32 %v1819, 0.0
      %v1902 = vmax.f32 %v1824, 0.0
      %v1903 = vmax.f32 %v1829, 0.0
      %v1904 = vmax.f32 %v1834, 0.0
      %v1905 = vmax.f32 %v1839, 0.0
      %v1906 = vmax.f32 %v1844, 0.0
      %v1907 = vmax.f32 %v1849, 0.0
      %v1908 = vmax.f32 %v1854, 0.0
      %v1909 = vmax.f32 %v1859, 0.0
      %v1910 = vmax.f32 %v1864, 0.0
      %v1911 = vmax.f32 %v1869, 0.0
      %v1912 = vmax.f32 %v1874, 0.0
      %v1913 = vmax.f32 %v1879, 0.0
      %1914 = vst.msk [vmem:[#allocation3] sm:$0xff] %vm520, 0.0
      %1915 = vst.msk [vmem:[#allocation3 + $0x8] sm:$0xff] %vm520, 0.0
      %vm1916 = vcmask 25600
      %1917 = vst.msk [vmem:[#allocation3 + $0x10] sm:$0x3] %vm1916, 0.0
      %1918 = vst.msk [vmem:[#allocation3 + $0x18] sm:$0xff] %vm520, 0.0
      %1919 = vst.msk [vmem:[#allocation3 + $0x20] sm:$0xff] %vm520, 0.0
      %1920 = vst.msk [vmem:[#allocation3 + $0x28] sm:$0x3] %vm1916, 0.0
      %1921 = vst.msk [vmem:[#allocation3 + $0x30] sm:$0xff] %vm520, 0.0
      %1922 = vst.msk [vmem:[#allocation3 + $0x38] sm:$0xff] %vm520, 0.0
      %1923 = vst.msk [vmem:[#allocation3 + $0x40] sm:$0x3] %vm1916, 0.0
      %1924 = vst.msk [vmem:[#allocation3 + $0x48] sm:$0xff] %vm520, 0.0
      %1925 = vst.msk [vmem:[#allocation3 + $0x50] sm:$0xff] %vm520, 0.0
      %1926 = vst.msk [vmem:[#allocation3 + $0x58] sm:$0x3] %vm1916, 0.0
      %1927 = vst.msk [vmem:[#allocation3 + $0x60] sm:$0xff] %vm520, 0.0
      %1928 = vst.msk [vmem:[#allocation3 + $0x68] sm:$0xff] %vm520, 0.0
      %1929 = vst.msk [vmem:[#allocation3 + $0x70] sm:$0x3] %vm1916, 0.0
      %1930 = vst.msk [vmem:[#allocation3 + $0x78] sm:$0xff] %vm520, 0.0
      %1931 = vst.msk [vmem:[#allocation3 + $0x80] sm:$0xff] %vm520, 0.0
      %1932 = vst.msk [vmem:[#allocation3 + $0x88] sm:$0x3] %vm1916, 0.0
      %1933 = vst.msk [vmem:[#allocation3 + $0x90] sm:$0xff] %vm520, 0.0
      %1934 = vst.msk [vmem:[#allocation3 + $0x98] sm:$0xff] %vm520, 0.0
      %1935 = vst.msk [vmem:[#allocation3 + $0xa0] sm:$0x3] %vm1916, 0.0
      %1936 = vst.msk [vmem:[#allocation3 + $0xa8] sm:$0xff] %vm520, 0.0
      %1937 = vst.msk [vmem:[#allocation3 + $0xb0] sm:$0xff] %vm520, 0.0
      %1938 = vst.msk [vmem:[#allocation3 + $0xb8] sm:$0x3] %vm1916, 0.0
      %1939 = vst.msk [vmem:[#allocation3 + $0xc0] sm:$0xff] %vm520, 0.0
      %1940 = vst.msk [vmem:[#allocation3 + $0xc8] sm:$0xff] %vm520, 0.0
      %1941 = vst.msk [vmem:[#allocation3 + $0xd0] sm:$0x3] %vm1916, 0.0
      %1942 = vst.msk [vmem:[#allocation3 + $0xd8] sm:$0xff] %vm520, 0.0
      %1943 = vst.msk [vmem:[#allocation3 + $0xe0] sm:$0xff] %vm520, 0.0
      %1944 = vst.msk [vmem:[#allocation3 + $0xe8] sm:$0x3] %vm1916, 0.0
      %1945 = vst.msk [vmem:[#allocation3 + $0xf0] sm:$0xff] %vm520, 0.0
      %1946 = vst.msk [vmem:[#allocation3 + $0xf8] sm:$0xff] %vm520, 0.0
      %1947 = vst.msk [vmem:[#allocation3 + $0x100] sm:$0x3] %vm1916, 0.0
      %1948 = vst.msk [vmem:[#allocation3 + $0x108] sm:$0xff] %vm520, 0.0
      %1949 = vst.msk [vmem:[#allocation3 + $0x110] sm:$0xff] %vm520, 0.0
      %1950 = vst.msk [vmem:[#allocation3 + $0x118] sm:$0x3] %vm1916, 0.0
      %1951 = vst.msk [vmem:[#allocation3 + $0x120] sm:$0xff] %vm520, 0.0
      %1952 = vst.msk [vmem:[#allocation3 + $0x128] sm:$0xff] %vm520, 0.0
      %1953 = vst.msk [vmem:[#allocation3 + $0x130] sm:$0x3] %vm1916, 0.0
      %1954 = vst.msk [vmem:[#allocation3 + $0x138] sm:$0xff] %vm520, 0.0
      %1955 = vst.msk [vmem:[#allocation3 + $0x140] sm:$0xff] %vm520, 0.0
      %1956 = vst.msk [vmem:[#allocation3 + $0x148] sm:$0x3] %vm1916, 0.0
      %1957 = vst.msk [vmem:[#allocation3 + $0x150] sm:$0xff] %vm520, 0.0
      %1958 = vst.msk [vmem:[#allocation3 + $0x158] sm:$0xff] %vm520, 0.0
      %1959 = vst.msk [vmem:[#allocation3 + $0x160] sm:$0x3] %vm1916, 0.0
      %1960 = vst.msk [vmem:[#allocation3 + $0x168] sm:$0xff] %vm520, 0.0
      %1961 = vst.msk [vmem:[#allocation3 + $0x170] sm:$0xff] %vm520, 0.0
      %1962 = vst.msk [vmem:[#allocation3 + $0x178] sm:$0x3] %vm1916, 0.0
      %1963 = vst.msk [vmem:[#allocation3 + $0x180] sm:$0xff] %vm520, 0.0
      %1964 = vst.msk [vmem:[#allocation3 + $0x188] sm:$0xff] %vm520, 0.0
      %1965 = vst.msk [vmem:[#allocation3 + $0x190] sm:$0x3] %vm1916, 0.0
      %1966 = vst.msk [vmem:[#allocation3 + $0x198] sm:$0xff] %vm520, 0.0
      %1967 = vst.msk [vmem:[#allocation3 + $0x1a0] sm:$0xff] %vm520, 0.0
      %1968 = vst.msk [vmem:[#allocation3 + $0x1a8] sm:$0x3] %vm1916, 0.0
      %s1969 = scalar_lea.vmem [#allocation3], 24
      %1970 = vst.msk [vmem:[%s1969 + $0x1] sm:$0xff] %vm520, %v1882
      %1971 = vst.msk [vmem:[%s1969 + $0x9] sm:$0xff] %vm520, %v1883
      %1972 = vst.msk [vmem:[%s1969 + $0x19] sm:$0xff] %vm520, %v1884
      %1973 = vst.msk [vmem:[%s1969 + $0x21] sm:$0xff] %vm520, %v1885
      %1974 = vst.msk [vmem:[%s1969 + $0x31] sm:$0xff] %vm520, %v1886
      %1975 = vst.msk [vmem:[%s1969 + $0x39] sm:$0xff] %vm520, %v1887
      %1976 = vst.msk [vmem:[%s1969 + $0x49] sm:$0xff] %vm520, %v1888
      %1977 = vst.msk [vmem:[%s1969 + $0x51] sm:$0xff] %vm520, %v1889
      %1978 = vst.msk [vmem:[%s1969 + $0x61] sm:$0xff] %vm520, %v1890
      %1979 = vst.msk [vmem:[%s1969 + $0x69] sm:$0xff] %vm520, %v1891
      %1980 = vst.msk [vmem:[%s1969 + $0x79] sm:$0xff] %vm520, %v1892
      %1981 = vst.msk [vmem:[%s1969 + $0x81] sm:$0xff] %vm520, %v1893
      %1982 = vst.msk [vmem:[%s1969 + $0x91] sm:$0xff] %vm520, %v1894
      %1983 = vst.msk [vmem:[%s1969 + $0x99] sm:$0xff] %vm520, %v1895
      %1984 = vst.msk [vmem:[%s1969 + $0xa9] sm:$0xff] %vm520, %v1896
      %1985 = vst.msk [vmem:[%s1969 + $0xb1] sm:$0xff] %vm520, %v1897
      %1986 = vst.msk [vmem:[%s1969 + $0xc1] sm:$0xff] %vm520, %v1898
      %1987 = vst.msk [vmem:[%s1969 + $0xc9] sm:$0xff] %vm520, %v1899
      %1988 = vst.msk [vmem:[%s1969 + $0xd9] sm:$0xff] %vm520, %v1900
      %1989 = vst.msk [vmem:[%s1969 + $0xe1] sm:$0xff] %vm520, %v1901
      %1990 = vst.msk [vmem:[%s1969 + $0xf1] sm:$0xff] %vm520, %v1902
      %1991 = vst.msk [vmem:[%s1969 + $0xf9] sm:$0xff] %vm520, %v1903
      %1992 = vst.msk [vmem:[%s1969 + $0x109] sm:$0xff] %vm520, %v1904
      %1993 = vst.msk [vmem:[%s1969 + $0x111] sm:$0xff] %vm520, %v1905
      %1994 = vst.msk [vmem:[%s1969 + $0x121] sm:$0xff] %vm520, %v1906
      %1995 = vst.msk [vmem:[%s1969 + $0x129] sm:$0xff] %vm520, %v1907
      %1996 = vst.msk [vmem:[%s1969 + $0x139] sm:$0xff] %vm520, %v1908
      %1997 = vst.msk [vmem:[%s1969 + $0x141] sm:$0xff] %vm520, %v1909
      %1998 = vst.msk [vmem:[%s1969 + $0x151] sm:$0xff] %vm520, %v1910
      %1999 = vst.msk [vmem:[%s1969 + $0x159] sm:$0xff] %vm520, %v1911
      %2000 = vst.msk [vmem:[%s1969 + $0x169] sm:$0xff] %vm520, %v1912
      %2001 = vst.msk [vmem:[%s1969 + $0x171] sm:$0xff] %vm520, %v1913
      %v2002 = vld [vmem:[#allocation3] sm:$0xff]
      %v2003 = vld [vmem:[#allocation3 + $0x8] sm:$0xff]
      %v2004 = vld [vmem:[#allocation3 + $0x10] sm:$0x3]
      %v2005 = vld [vmem:[#allocation3 + $0x18] sm:$0xff]
      %v2006 = vld [vmem:[#allocation3 + $0x20] sm:$0xff]
      %v2007 = vld [vmem:[#allocation3 + $0x28] sm:$0x3]
      %v2008 = vld [vmem:[#allocation3 + $0x30] sm:$0xff]
      %v2009 = vld [vmem:[#allocation3 + $0x38] sm:$0xff]
      %v2010 = vld [vmem:[#allocation3 + $0x40] sm:$0x3]
      %v2011 = vld [vmem:[#allocation3 + $0x48] sm:$0xff]
      %v2012 = vld [vmem:[#allocation3 + $0x50] sm:$0xff]
      %v2013 = vld [vmem:[#allocation3 + $0x58] sm:$0x3]
      %v2014 = vld [vmem:[#allocation3 + $0x60] sm:$0xff]
      %v2015 = vld [vmem:[#allocation3 + $0x68] sm:$0xff]
      %v2016 = vld [vmem:[#allocation3 + $0x70] sm:$0x3]
      %v2017 = vld [vmem:[#allocation3 + $0x78] sm:$0xff]
      %v2018 = vld [vmem:[#allocation3 + $0x80] sm:$0xff]
      %v2019 = vld [vmem:[#allocation3 + $0x88] sm:$0x3]
      %v2020 = vld [vmem:[#allocation3 + $0x90] sm:$0xff]
      %v2021 = vld [vmem:[#allocation3 + $0x98] sm:$0xff]
      %v2022 = vld [vmem:[#allocation3 + $0xa0] sm:$0x3]
      %v2023 = vld [vmem:[#allocation3 + $0xa8] sm:$0xff]
      %v2024 = vld [vmem:[#allocation3 + $0xb0] sm:$0xff]
      %v2025 = vld [vmem:[#allocation3 + $0xb8] sm:$0x3]
      %v2026 = vld [vmem:[#allocation3 + $0xc0] sm:$0xff]
      %v2027 = vld [vmem:[#allocation3 + $0xc8] sm:$0xff]
      %v2028 = vld [vmem:[#allocation3 + $0xd0] sm:$0x3]
      %v2029 = vld [vmem:[#allocation3 + $0xd8] sm:$0xff]
      %v2030 = vld [vmem:[#allocation3 + $0xe0] sm:$0xff]
      %v2031 = vld [vmem:[#allocation3 + $0xe8] sm:$0x3]
      %v2032 = vld [vmem:[#allocation3 + $0xf0] sm:$0xff]
      %v2033 = vld [vmem:[#allocation3 + $0xf8] sm:$0xff]
      %v2034 = vld [vmem:[#allocation3 + $0x100] sm:$0x3]
      %v2035 = vld [vmem:[#allocation3 + $0x108] sm:$0xff]
      %v2036 = vld [vmem:[#allocation3 + $0x110] sm:$0xff]
      %v2037 = vld [vmem:[#allocation3 + $0x118] sm:$0x3]
      %v2038 = vld [vmem:[#allocation3 + $0x120] sm:$0xff]
      %v2039 = vld [vmem:[#allocation3 + $0x128] sm:$0xff]
      %v2040 = vld [vmem:[#allocation3 + $0x130] sm:$0x3]
      %v2041 = vld [vmem:[#allocation3 + $0x138] sm:$0xff]
      %v2042 = vld [vmem:[#allocation3 + $0x140] sm:$0xff]
      %v2043 = vld [vmem:[#allocation3 + $0x148] sm:$0x3]
      %v2044 = vld [vmem:[#allocation3 + $0x150] sm:$0xff]
      %v2045 = vld [vmem:[#allocation3 + $0x158] sm:$0xff]
      %v2046 = vld [vmem:[#allocation3 + $0x160] sm:$0x3]
      %v2047 = vld [vmem:[#allocation3 + $0x168] sm:$0xff]
      %v2048 = vld [vmem:[#allocation3 + $0x170] sm:$0xff]
      %v2049 = vld [vmem:[#allocation3 + $0x178] sm:$0x3]
      %v2050 = vld [vmem:[#allocation3 + $0x180] sm:$0xff]
      %v2051 = vld [vmem:[#allocation3 + $0x188] sm:$0xff]
      %v2052 = vld [vmem:[#allocation3 + $0x190] sm:$0x3]
      %v2053 = vld [vmem:[#allocation3 + $0x198] sm:$0xff]
      %v2054 = vld [vmem:[#allocation3 + $0x1a0] sm:$0xff]
      %v2055 = vld [vmem:[#allocation3 + $0x1a8] sm:$0x3]
      %2104 = vrot.lane.b32.xlu0 %v2005, 4
      %v2105 = vpop.permute.xlu0 %2104
      %2106 = vrot.lane.b32.xlu0 %v2006, 4
      %v2107 = vpop.permute.xlu0 %2106
      %2108 = vrot.lane.b32.xlu0 %v2007, 4
      %v2109 = vpop.permute.xlu0 %2108
      %2110 = vrot.lane.b32.xlu0 %v2008, 4
      %v2111 = vpop.permute.xlu0 %2110
      %2112 = vrot.lane.b32.xlu0 %v2009, 4
      %v2113 = vpop.permute.xlu0 %2112
      %2114 = vrot.lane.b32.xlu0 %v2010, 4
      %v2115 = vpop.permute.xlu0 %2114
      %2116 = vrot.lane.b32.xlu0 %v2011, 4
      %v2117 = vpop.permute.xlu0 %2116
      %2118 = vrot.lane.b32.xlu0 %v2012, 4
      %v2119 = vpop.permute.xlu0 %2118
      %2120 = vrot.lane.b32.xlu0 %v2013, 4
      %v2121 = vpop.permute.xlu0 %2120
      %2122 = vrot.lane.b32.xlu0 %v2014, 4
      %v2123 = vpop.permute.xlu0 %2122
      %2124 = vrot.lane.b32.xlu0 %v2015, 4
      %v2125 = vpop.permute.xlu0 %2124
      %2126 = vrot.lane.b32.xlu0 %v2016, 4
      %v2127 = vpop.permute.xlu0 %2126
      %2128 = vrot.lane.b32.xlu0 %v2017, 4
      %v2129 = vpop.permute.xlu0 %2128
      %2130 = vrot.lane.b32.xlu0 %v2018, 4
      %v2131 = vpop.permute.xlu0 %2130
      %2132 = vrot.lane.b32.xlu0 %v2019, 4
      %v2133 = vpop.permute.xlu0 %2132
      %2134 = vrot.lane.b32.xlu0 %v2020, 4
      %v2135 = vpop.permute.xlu0 %2134
      %2136 = vrot.lane.b32.xlu0 %v2021, 4
      %v2137 = vpop.permute.xlu0 %2136
      %2138 = vrot.lane.b32.xlu0 %v2022, 4
      %v2139 = vpop.permute.xlu0 %2138
      %2140 = vrot.lane.b32.xlu0 %v2023, 4
      %v2141 = vpop.permute.xlu0 %2140
      %2142 = vrot.lane.b32.xlu0 %v2024, 4
      %v2143 = vpop.permute.xlu0 %2142
      %2144 = vrot.lane.b32.xlu0 %v2025, 4
      %v2145 = vpop.permute.xlu0 %2144
      %2146 = vrot.lane.b32.xlu0 %v2026, 4
      %v2147 = vpop.permute.xlu0 %2146
      %2148 = vrot.lane.b32.xlu0 %v2027, 4
      %v2149 = vpop.permute.xlu0 %2148
      %2150 = vrot.lane.b32.xlu0 %v2028, 4
      %v2151 = vpop.permute.xlu0 %2150
      %2152 = vrot.lane.b32.xlu0 %v2029, 4
      %v2153 = vpop.permute.xlu0 %2152
      %2154 = vrot.lane.b32.xlu0 %v2030, 4
      %v2155 = vpop.permute.xlu0 %2154
      %2156 = vrot.lane.b32.xlu0 %v2031, 4
      %v2157 = vpop.permute.xlu0 %2156
      %2158 = vrot.lane.b32.xlu0 %v2032, 4
      %v2159 = vpop.permute.xlu0 %2158
      %2160 = vrot.lane.b32.xlu0 %v2033, 4
      %v2161 = vpop.permute.xlu0 %2160
      %2162 = vrot.lane.b32.xlu0 %v2034, 4
      %v2163 = vpop.permute.xlu0 %2162
      %2164 = vrot.lane.b32.xlu0 %v2035, 4
      %v2165 = vpop.permute.xlu0 %2164
      %2166 = vrot.lane.b32.xlu0 %v2036, 4
      %v2167 = vpop.permute.xlu0 %2166
      %2168 = vrot.lane.b32.xlu0 %v2037, 4
      %v2169 = vpop.permute.xlu0 %2168
      %2170 = vrot.lane.b32.xlu0 %v2038, 4
      %v2171 = vpop.permute.xlu0 %2170
      %2172 = vrot.lane.b32.xlu0 %v2039, 4
      %v2173 = vpop.permute.xlu0 %2172
      %2174 = vrot.lane.b32.xlu0 %v2040, 4
      %v2175 = vpop.permute.xlu0 %2174
      %2176 = vrot.lane.b32.xlu0 %v2041, 4
      %v2177 = vpop.permute.xlu0 %2176
      %2178 = vrot.lane.b32.xlu0 %v2042, 4
      %v2179 = vpop.permute.xlu0 %2178
      %2180 = vrot.lane.b32.xlu0 %v2043, 4
      %v2181 = vpop.permute.xlu0 %2180
      %2182 = vrot.lane.b32.xlu0 %v2044, 4
      %v2183 = vpop.permute.xlu0 %2182
      %2184 = vrot.lane.b32.xlu0 %v2045, 4
      %v2185 = vpop.permute.xlu0 %2184
      %2186 = vrot.lane.b32.xlu0 %v2046, 4
      %v2187 = vpop.permute.xlu0 %2186
      %2188 = vrot.lane.b32.xlu0 %v2047, 4
      %v2189 = vpop.permute.xlu0 %2188
      %2190 = vrot.lane.b32.xlu0 %v2048, 4
      %v2191 = vpop.permute.xlu0 %2190
      %2192 = vrot.lane.b32.xlu0 %v2049, 4
      %v2193 = vpop.permute.xlu0 %2192
      %2194 = vrot.lane.b32.xlu0 %v2050, 4
      %v2195 = vpop.permute.xlu0 %2194
      %2196 = vrot.lane.b32.xlu0 %v2051, 4
      %v2197 = vpop.permute.xlu0 %2196
      %2198 = vrot.lane.b32.xlu0 %v2052, 4
      %v2199 = vpop.permute.xlu0 %2198
      %2251 = vrot.lane.b32.xlu0 %v2008, 8
      %v2252 = vpop.permute.xlu0 %2251
      %2253 = vrot.lane.b32.xlu0 %v2009, 8
      %v2254 = vpop.permute.xlu0 %2253
      %2255 = vrot.lane.b32.xlu0 %v2010, 8
      %v2256 = vpop.permute.xlu0 %2255
      %2257 = vrot.lane.b32.xlu0 %v2011, 8
      %v2258 = vpop.permute.xlu0 %2257
      %2259 = vrot.lane.b32.xlu0 %v2012, 8
      %v2260 = vpop.permute.xlu0 %2259
      %2261 = vrot.lane.b32.xlu0 %v2013, 8
      %v2262 = vpop.permute.xlu0 %2261
      %2263 = vrot.lane.b32.xlu0 %v2014, 8
      %v2264 = vpop.permute.xlu0 %2263
      %2265 = vrot.lane.b32.xlu0 %v2015, 8
      %v2266 = vpop.permute.xlu0 %2265
      %2267 = vrot.lane.b32.xlu0 %v2016, 8
      %v2268 = vpop.permute.xlu0 %2267
      %2269 = vrot.lane.b32.xlu0 %v2017, 8
      %v2270 = vpop.permute.xlu0 %2269
      %2271 = vrot.lane.b32.xlu0 %v2018, 8
      %v2272 = vpop.permute.xlu0 %2271
      %2273 = vrot.lane.b32.xlu0 %v2019, 8
      %v2274 = vpop.permute.xlu0 %2273
      %2275 = vrot.lane.b32.xlu0 %v2020, 8
      %v2276 = vpop.permute.xlu0 %2275
      %2277 = vrot.lane.b32.xlu0 %v2021, 8
      %v2278 = vpop.permute.xlu0 %2277
      %2279 = vrot.lane.b32.xlu0 %v2022, 8
      %v2280 = vpop.permute.xlu0 %2279
      %2281 = vrot.lane.b32.xlu0 %v2023, 8
      %v2282 = vpop.permute.xlu0 %2281
      %2283 = vrot.lane.b32.xlu0 %v2024, 8
      %v2284 = vpop.permute.xlu0 %2283
      %2285 = vrot.lane.b32.xlu0 %v2025, 8
      %v2286 = vpop.permute.xlu0 %2285
      %2287 = vrot.lane.b32.xlu0 %v2026, 8
      %v2288 = vpop.permute.xlu0 %2287
      %2289 = vrot.lane.b32.xlu0 %v2027, 8
      %v2290 = vpop.permute.xlu0 %2289
      %2291 = vrot.lane.b32.xlu0 %v2028, 8
      %v2292 = vpop.permute.xlu0 %2291
      %2293 = vrot.lane.b32.xlu0 %v2029, 8
      %v2294 = vpop.permute.xlu0 %2293
      %2295 = vrot.lane.b32.xlu0 %v2030, 8
      %v2296 = vpop.permute.xlu0 %2295
      %2297 = vrot.lane.b32.xlu0 %v2031, 8
      %v2298 = vpop.permute.xlu0 %2297
      %2299 = vrot.lane.b32.xlu0 %v2032, 8
      %v2300 = vpop.permute.xlu0 %2299
      %2301 = vrot.lane.b32.xlu0 %v2033, 8
      %v2302 = vpop.permute.xlu0 %2301
      %2303 = vrot.lane.b32.xlu0 %v2034, 8
      %v2304 = vpop.permute.xlu0 %2303
      %2305 = vrot.lane.b32.xlu0 %v2035, 8
      %v2306 = vpop.permute.xlu0 %2305
      %2307 = vrot.lane.b32.xlu0 %v2036, 8
      %v2308 = vpop.permute.xlu0 %2307
      %2309 = vrot.lane.b32.xlu0 %v2037, 8
      %v2310 = vpop.permute.xlu0 %2309
      %2311 = vrot.lane.b32.xlu0 %v2038, 8
      %v2312 = vpop.permute.xlu0 %2311
      %2313 = vrot.lane.b32.xlu0 %v2039, 8
      %v2314 = vpop.permute.xlu0 %2313
      %2315 = vrot.lane.b32.xlu0 %v2040, 8
      %v2316 = vpop.permute.xlu0 %2315
      %2317 = vrot.lane.b32.xlu0 %v2041, 8
      %v2318 = vpop.permute.xlu0 %2317
      %2319 = vrot.lane.b32.xlu0 %v2042, 8
      %v2320 = vpop.permute.xlu0 %2319
      %2321 = vrot.lane.b32.xlu0 %v2043, 8
      %v2322 = vpop.permute.xlu0 %2321
      %2323 = vrot.lane.b32.xlu0 %v2044, 8
      %v2324 = vpop.permute.xlu0 %2323
      %2325 = vrot.lane.b32.xlu0 %v2045, 8
      %v2326 = vpop.permute.xlu0 %2325
      %2327 = vrot.lane.b32.xlu0 %v2046, 8
      %v2328 = vpop.permute.xlu0 %2327
      %2329 = vrot.lane.b32.xlu0 %v2047, 8
      %v2330 = vpop.permute.xlu0 %2329
      %2331 = vrot.lane.b32.xlu0 %v2048, 8
      %v2332 = vpop.permute.xlu0 %2331
      %2333 = vrot.lane.b32.xlu0 %v2049, 8
      %v2334 = vpop.permute.xlu0 %2333
      %2335 = vrot.lane.b32.xlu0 %v2050, 8
      %v2336 = vpop.permute.xlu0 %2335
      %2337 = vrot.lane.b32.xlu0 %v2051, 8
      %v2338 = vpop.permute.xlu0 %2337
      %2339 = vrot.lane.b32.xlu0 %v2052, 8
      %v2340 = vpop.permute.xlu0 %2339
      %2341 = vrot.lane.b32.xlu0 %v2053, 8
      %v2342 = vpop.permute.xlu0 %2341
      %2343 = vrot.lane.b32.xlu0 %v2054, 8
      %v2344 = vpop.permute.xlu0 %2343
      %2345 = vrot.lane.b32.xlu0 %v2055, 8
      %v2346 = vpop.permute.xlu0 %2345
      %v2395 = vsel %vm520, %v2002, %v2105
      %v2396 = vsel %vm520, %v2003, %v2107
      %v2397 = vsel %vm520, %v2004, %v2109
      %v2398 = vsel %vm520, %v2005, %v2111
      %v2399 = vsel %vm520, %v2006, %v2113
      %v2400 = vsel %vm520, %v2007, %v2115
      %v2401 = vsel %vm520, %v2008, %v2117
      %v2402 = vsel %vm520, %v2009, %v2119
      %v2403 = vsel %vm520, %v2010, %v2121
      %v2404 = vsel %vm520, %v2011, %v2123
      %v2405 = vsel %vm520, %v2012, %v2125
      %v2406 = vsel %vm520, %v2013, %v2127
      %v2407 = vsel %vm520, %v2014, %v2129
      %v2408 = vsel %vm520, %v2015, %v2131
      %v2409 = vsel %vm520, %v2016, %v2133
      %v2410 = vsel %vm520, %v2017, %v2135
      %v2411 = vsel %vm520, %v2018, %v2137
      %v2412 = vsel %vm520, %v2019, %v2139
      %v2413 = vsel %vm520, %v2020, %v2141
      %v2414 = vsel %vm520, %v2021, %v2143
      %v2415 = vsel %vm520, %v2022, %v2145
      %v2416 = vsel %vm520, %v2023, %v2147
      %v2417 = vsel %vm520, %v2024, %v2149
      %v2418 = vsel %vm520, %v2025, %v2151
      %v2419 = vsel %vm520, %v2026, %v2153
      %v2420 = vsel %vm520, %v2027, %v2155
      %v2421 = vsel %vm520, %v2028, %v2157
      %v2422 = vsel %vm520, %v2029, %v2159
      %v2423 = vsel %vm520, %v2030, %v2161
      %v2424 = vsel %vm520, %v2031, %v2163
      %v2425 = vsel %vm520, %v2032, %v2165
      %v2426 = vsel %vm520, %v2033, %v2167
      %v2427 = vsel %vm520, %v2034, %v2169
      %v2428 = vsel %vm520, %v2035, %v2171
      %v2429 = vsel %vm520, %v2036, %v2173
      %v2430 = vsel %vm520, %v2037, %v2175
      %v2431 = vsel %vm520, %v2038, %v2177
      %v2432 = vsel %vm520, %v2039, %v2179
      %v2433 = vsel %vm520, %v2040, %v2181
      %v2434 = vsel %vm520, %v2041, %v2183
      %v2435 = vsel %vm520, %v2042, %v2185
      %v2436 = vsel %vm520, %v2043, %v2187
      %v2437 = vsel %vm520, %v2044, %v2189
      %v2438 = vsel %vm520, %v2045, %v2191
      %v2439 = vsel %vm520, %v2046, %v2193
      %v2440 = vsel %vm520, %v2047, %v2195
      %v2441 = vsel %vm520, %v2048, %v2197
      %v2442 = vsel %vm520, %v2049, %v2199
      %v2443 = vsel %vm272, %v2395, %v2252
      %v2444 = vsel %vm272, %v2396, %v2254
      %v2445 = vsel %vm272, %v2397, %v2256
      %v2446 = vsel %vm272, %v2398, %v2258
      %v2447 = vsel %vm272, %v2399, %v2260
      %v2448 = vsel %vm272, %v2400, %v2262
      %v2449 = vsel %vm272, %v2401, %v2264
      %v2450 = vsel %vm272, %v2402, %v2266
      %v2451 = vsel %vm272, %v2403, %v2268
      %v2452 = vsel %vm272, %v2404, %v2270
      %v2453 = vsel %vm272, %v2405, %v2272
      %v2454 = vsel %vm272, %v2406, %v2274
      %v2455 = vsel %vm272, %v2407, %v2276
      %v2456 = vsel %vm272, %v2408, %v2278
      %v2457 = vsel %vm272, %v2409, %v2280
      %v2458 = vsel %vm272, %v2410, %v2282
      %v2459 = vsel %vm272, %v2411, %v2284
      %v2460 = vsel %vm272, %v2412, %v2286
      %v2461 = vsel %vm272, %v2413, %v2288
      %v2462 = vsel %vm272, %v2414, %v2290
      %v2463 = vsel %vm272, %v2415, %v2292
      %v2464 = vsel %vm272, %v2416, %v2294
      %v2465 = vsel %vm272, %v2417, %v2296
      %v2466 = vsel %vm272, %v2418, %v2298
      %v2467 = vsel %vm272, %v2419, %v2300
      %v2468 = vsel %vm272, %v2420, %v2302
      %v2469 = vsel %vm272, %v2421, %v2304
      %v2470 = vsel %vm272, %v2422, %v2306
      %v2471 = vsel %vm272, %v2423, %v2308
      %v2472 = vsel %vm272, %v2424, %v2310
      %v2473 = vsel %vm272, %v2425, %v2312
      %v2474 = vsel %vm272, %v2426, %v2314
      %v2475 = vsel %vm272, %v2427, %v2316
      %v2476 = vsel %vm272, %v2428, %v2318
      %v2477 = vsel %vm272, %v2429, %v2320
      %v2478 = vsel %vm272, %v2430, %v2322
      %v2479 = vsel %vm272, %v2431, %v2324
      %v2480 = vsel %vm272, %v2432, %v2326
      %v2481 = vsel %vm272, %v2433, %v2328
      %v2482 = vsel %vm272, %v2434, %v2330
      %v2483 = vsel %vm272, %v2435, %v2332
      %v2484 = vsel %vm272, %v2436, %v2334
      %v2485 = vsel %vm272, %v2437, %v2336
      %v2486 = vsel %vm272, %v2438, %v2338
      %v2487 = vsel %vm272, %v2439, %v2340
      %v2488 = vsel %vm272, %v2440, %v2342
      %v2489 = vsel %vm272, %v2441, %v2344
      %v2490 = vsel %vm272, %v2442, %v2346
      %v2539 = vrot.slane %v2443, 1
      %v2540 = vrot.slane %v2444, 1
      %v2541 = vsel %vm1124, %v2539, %v2540
      %v2542 = vrot.slane %v2445, 1
      %v2543 = vsel %vm1124, %v2540, %v2542
      %v2544 = vrot.slane %v2446, 1
      %v2545 = vrot.slane %v2447, 1
      %v2546 = vsel %vm1124, %v2544, %v2545
      %v2547 = vrot.slane %v2448, 1
      %v2548 = vsel %vm1124, %v2545, %v2547
      %v2549 = vrot.slane %v2449, 1
      %v2550 = vrot.slane %v2450, 1
      %v2551 = vsel %vm1124, %v2549, %v2550
      %v2552 = vrot.slane %v2451, 1
      %v2553 = vsel %vm1124, %v2550, %v2552
      %v2554 = vrot.slane %v2452, 1
      %v2555 = vrot.slane %v2453, 1
      %v2556 = vsel %vm1124, %v2554, %v2555
      %v2557 = vrot.slane %v2454, 1
      %v2558 = vsel %vm1124, %v2555, %v2557
      %v2559 = vrot.slane %v2455, 1
      %v2560 = vrot.slane %v2456, 1
      %v2561 = vsel %vm1124, %v2559, %v2560
      %v2562 = vrot.slane %v2457, 1
      %v2563 = vsel %vm1124, %v2560, %v2562
      %v2564 = vrot.slane %v2458, 1
      %v2565 = vrot.slane %v2459, 1
      %v2566 = vsel %vm1124, %v2564, %v2565
      %v2567 = vrot.slane %v2460, 1
      %v2568 = vsel %vm1124, %v2565, %v2567
      %v2569 = vrot.slane %v2461, 1
      %v2570 = vrot.slane %v2462, 1
      %v2571 = vsel %vm1124, %v2569, %v2570
      %v2572 = vrot.slane %v2463, 1
      %v2573 = vsel %vm1124, %v2570, %v2572
      %v2574 = vrot.slane %v2464, 1
      %v2575 = vrot.slane %v2465, 1
      %v2576 = vsel %vm1124, %v2574, %v2575
      %v2577 = vrot.slane %v2466, 1
      %v2578 = vsel %vm1124, %v2575, %v2577
      %v2579 = vrot.slane %v2467, 1
      %v2580 = vrot.slane %v2468, 1
      %v2581 = vsel %vm1124, %v2579, %v2580
      %v2582 = vrot.slane %v2469, 1
      %v2583 = vsel %vm1124, %v2580, %v2582
      %v2584 = vrot.slane %v2470, 1
      %v2585 = vrot.slane %v2471, 1
      %v2586 = vsel %vm1124, %v2584, %v2585
      %v2587 = vrot.slane %v2472, 1
      %v2588 = vsel %vm1124, %v2585, %v2587
      %v2589 = vrot.slane %v2473, 1
      %v2590 = vrot.slane %v2474, 1
      %v2591 = vsel %vm1124, %v2589, %v2590
      %v2592 = vrot.slane %v2475, 1
      %v2593 = vsel %vm1124, %v2590, %v2592
      %v2594 = vrot.slane %v2476, 1
      %v2595 = vrot.slane %v2477, 1
      %v2596 = vsel %vm1124, %v2594, %v2595
      %v2597 = vrot.slane %v2478, 1
      %v2598 = vsel %vm1124, %v2595, %v2597
      %v2599 = vrot.slane %v2479, 1
      %v2600 = vrot.slane %v2480, 1
      %v2601 = vsel %vm1124, %v2599, %v2600
      %v2602 = vrot.slane %v2481, 1
      %v2603 = vsel %vm1124, %v2600, %v2602
      %v2604 = vrot.slane %v2482, 1
      %v2605 = vrot.slane %v2483, 1
      %v2606 = vsel %vm1124, %v2604, %v2605
      %v2607 = vrot.slane %v2484, 1
      %v2608 = vsel %vm1124, %v2605, %v2607
      %v2609 = vrot.slane %v2485, 1
      %v2610 = vrot.slane %v2486, 1
      %v2611 = vsel %vm1124, %v2609, %v2610
      %v2612 = vrot.slane %v2487, 1
      %v2613 = vsel %vm1124, %v2610, %v2612
      %v2614 = vrot.slane %v2488, 1
      %v2615 = vrot.slane %v2489, 1
      %v2616 = vsel %vm1124, %v2614, %v2615
      %v2617 = vrot.slane %v2490, 1
      %v2618 = vsel %vm1124, %v2615, %v2617
      %2619 = vrot.lane.b32.xlu0 %v2541, 12
      %v2620 = vpop.permute.xlu0 %2619
      %2621 = vrot.lane.b32.xlu0 %v2543, 12
      %v2622 = vpop.permute.xlu0 %2621
      %2623 = vrot.lane.b32.xlu0 %v2546, 12
      %v2624 = vpop.permute.xlu0 %2623
      %2625 = vrot.lane.b32.xlu0 %v2548, 12
      %v2626 = vpop.permute.xlu0 %2625
      %2627 = vrot.lane.b32.xlu0 %v2551, 12
      %v2628 = vpop.permute.xlu0 %2627
      %2629 = vrot.lane.b32.xlu0 %v2553, 12
      %v2630 = vpop.permute.xlu0 %2629
      %2631 = vrot.lane.b32.xlu0 %v2556, 12
      %v2632 = vpop.permute.xlu0 %2631
      %2633 = vrot.lane.b32.xlu0 %v2558, 12
      %v2634 = vpop.permute.xlu0 %2633
      %2635 = vrot.lane.b32.xlu0 %v2561, 12
      %v2636 = vpop.permute.xlu0 %2635
      %2637 = vrot.lane.b32.xlu0 %v2563, 12
      %v2638 = vpop.permute.xlu0 %2637
      %2639 = vrot.lane.b32.xlu0 %v2566, 12
      %v2640 = vpop.permute.xlu0 %2639
      %2641 = vrot.lane.b32.xlu0 %v2568, 12
      %v2642 = vpop.permute.xlu0 %2641
      %2643 = vrot.lane.b32.xlu0 %v2571, 12
      %v2644 = vpop.permute.xlu0 %2643
      %2645 = vrot.lane.b32.xlu0 %v2573, 12
      %v2646 = vpop.permute.xlu0 %2645
      %2647 = vrot.lane.b32.xlu0 %v2576, 12
      %v2648 = vpop.permute.xlu0 %2647
      %2649 = vrot.lane.b32.xlu0 %v2578, 12
      %v2650 = vpop.permute.xlu0 %2649
      %2651 = vrot.lane.b32.xlu0 %v2581, 12
      %v2652 = vpop.permute.xlu0 %2651
      %2653 = vrot.lane.b32.xlu0 %v2583, 12
      %v2654 = vpop.permute.xlu0 %2653
      %2655 = vrot.lane.b32.xlu0 %v2586, 12
      %v2656 = vpop.permute.xlu0 %2655
      %2657 = vrot.lane.b32.xlu0 %v2588, 12
      %v2658 = vpop.permute.xlu0 %2657
      %2659 = vrot.lane.b32.xlu0 %v2591, 12
      %v2660 = vpop.permute.xlu0 %2659
      %2661 = vrot.lane.b32.xlu0 %v2593, 12
      %v2662 = vpop.permute.xlu0 %2661
      %2663 = vrot.lane.b32.xlu0 %v2596, 12
      %v2664 = vpop.permute.xlu0 %2663
      %2665 = vrot.lane.b32.xlu0 %v2598, 12
      %v2666 = vpop.permute.xlu0 %2665
      %2667 = vrot.lane.b32.xlu0 %v2601, 12
      %v2668 = vpop.permute.xlu0 %2667
      %2669 = vrot.lane.b32.xlu0 %v2603, 12
      %v2670 = vpop.permute.xlu0 %2669
      %2671 = vrot.lane.b32.xlu0 %v2606, 12
      %v2672 = vpop.permute.xlu0 %2671
      %2673 = vrot.lane.b32.xlu0 %v2608, 12
      %v2674 = vpop.permute.xlu0 %2673
      %2675 = vrot.lane.b32.xlu0 %v2611, 12
      %v2676 = vpop.permute.xlu0 %2675
      %2677 = vrot.lane.b32.xlu0 %v2613, 12
      %v2678 = vpop.permute.xlu0 %2677
      %2679 = vrot.lane.b32.xlu0 %v2616, 12
      %v2680 = vpop.permute.xlu0 %2679
      %2681 = vrot.lane.b32.xlu0 %v2618, 12
      %v2682 = vpop.permute.xlu0 %2681
      %v2715 = vrot.slane %v2443, 2
      %v2716 = vrot.slane %v2444, 2
      %v2717 = vsel %vm1301, %v2715, %v2716
      %v2718 = vrot.slane %v2445, 2
      %v2719 = vsel %vm1301, %v2716, %v2718
      %v2720 = vrot.slane %v2446, 2
      %v2721 = vrot.slane %v2447, 2
      %v2722 = vsel %vm1301, %v2720, %v2721
      %v2723 = vrot.slane %v2448, 2
      %v2724 = vsel %vm1301, %v2721, %v2723
      %v2725 = vrot.slane %v2449, 2
      %v2726 = vrot.slane %v2450, 2
      %v2727 = vsel %vm1301, %v2725, %v2726
      %v2728 = vrot.slane %v2451, 2
      %v2729 = vsel %vm1301, %v2726, %v2728
      %v2730 = vrot.slane %v2452, 2
      %v2731 = vrot.slane %v2453, 2
      %v2732 = vsel %vm1301, %v2730, %v2731
      %v2733 = vrot.slane %v2454, 2
      %v2734 = vsel %vm1301, %v2731, %v2733
      %v2735 = vrot.slane %v2455, 2
      %v2736 = vrot.slane %v2456, 2
      %v2737 = vsel %vm1301, %v2735, %v2736
      %v2738 = vrot.slane %v2457, 2
      %v2739 = vsel %vm1301, %v2736, %v2738
      %v2740 = vrot.slane %v2458, 2
      %v2741 = vrot.slane %v2459, 2
      %v2742 = vsel %vm1301, %v2740, %v2741
      %v2743 = vrot.slane %v2460, 2
      %v2744 = vsel %vm1301, %v2741, %v2743
      %v2745 = vrot.slane %v2461, 2
      %v2746 = vrot.slane %v2462, 2
      %v2747 = vsel %vm1301, %v2745, %v2746
      %v2748 = vrot.slane %v2463, 2
      %v2749 = vsel %vm1301, %v2746, %v2748
      %v2750 = vrot.slane %v2464, 2
      %v2751 = vrot.slane %v2465, 2
      %v2752 = vsel %vm1301, %v2750, %v2751
      %v2753 = vrot.slane %v2466, 2
      %v2754 = vsel %vm1301, %v2751, %v2753
      %v2755 = vrot.slane %v2467, 2
      %v2756 = vrot.slane %v2468, 2
      %v2757 = vsel %vm1301, %v2755, %v2756
      %v2758 = vrot.slane %v2469, 2
      %v2759 = vsel %vm1301, %v2756, %v2758
      %v2760 = vrot.slane %v2470, 2
      %v2761 = vrot.slane %v2471, 2
      %v2762 = vsel %vm1301, %v2760, %v2761
      %v2763 = vrot.slane %v2472, 2
      %v2764 = vsel %vm1301, %v2761, %v2763
      %v2765 = vrot.slane %v2473, 2
      %v2766 = vrot.slane %v2474, 2
      %v2767 = vsel %vm1301, %v2765, %v2766
      %v2768 = vrot.slane %v2475, 2
      %v2769 = vsel %vm1301, %v2766, %v2768
      %v2770 = vrot.slane %v2476, 2
      %v2771 = vrot.slane %v2477, 2
      %v2772 = vsel %vm1301, %v2770, %v2771
      %v2773 = vrot.slane %v2478, 2
      %v2774 = vsel %vm1301, %v2771, %v2773
      %v2775 = vrot.slane %v2479, 2
      %v2776 = vrot.slane %v2480, 2
      %v2777 = vsel %vm1301, %v2775, %v2776
      %v2778 = vrot.slane %v2481, 2
      %v2779 = vsel %vm1301, %v2776, %v2778
      %v2780 = vrot.slane %v2482, 2
      %v2781 = vrot.slane %v2483, 2
      %v2782 = vsel %vm1301, %v2780, %v2781
      %v2783 = vrot.slane %v2484, 2
      %v2784 = vsel %vm1301, %v2781, %v2783
      %v2785 = vrot.slane %v2485, 2
      %v2786 = vrot.slane %v2486, 2
      %v2787 = vsel %vm1301, %v2785, %v2786
      %v2788 = vrot.slane %v2487, 2
      %v2789 = vsel %vm1301, %v2786, %v2788
      %v2790 = vrot.slane %v2488, 2
      %v2791 = vrot.slane %v2489, 2
      %v2792 = vsel %vm1301, %v2790, %v2791
      %v2793 = vrot.slane %v2490, 2
      %v2794 = vsel %vm1301, %v2791, %v2793
      %2795 = vrot.lane.b32.xlu0 %v2717, 24
      %v2796 = vpop.permute.xlu0 %2795
      %2797 = vrot.lane.b32.xlu0 %v2719, 24
      %v2798 = vpop.permute.xlu0 %2797
      %2799 = vrot.lane.b32.xlu0 %v2722, 24
      %v2800 = vpop.permute.xlu0 %2799
      %2801 = vrot.lane.b32.xlu0 %v2724, 24
      %v2802 = vpop.permute.xlu0 %2801
      %2803 = vrot.lane.b32.xlu0 %v2727, 24
      %v2804 = vpop.permute.xlu0 %2803
      %2805 = vrot.lane.b32.xlu0 %v2729, 24
      %v2806 = vpop.permute.xlu0 %2805
      %2807 = vrot.lane.b32.xlu0 %v2732, 24
      %v2808 = vpop.permute.xlu0 %2807
      %2809 = vrot.lane.b32.xlu0 %v2734, 24
      %v2810 = vpop.permute.xlu0 %2809
      %2811 = vrot.lane.b32.xlu0 %v2737, 24
      %v2812 = vpop.permute.xlu0 %2811
      %2813 = vrot.lane.b32.xlu0 %v2739, 24
      %v2814 = vpop.permute.xlu0 %2813
      %2815 = vrot.lane.b32.xlu0 %v2742, 24
      %v2816 = vpop.permute.xlu0 %2815
      %2817 = vrot.lane.b32.xlu0 %v2744, 24
      %v2818 = vpop.permute.xlu0 %2817
      %2819 = vrot.lane.b32.xlu0 %v2747, 24
      %v2820 = vpop.permute.xlu0 %2819
      %2821 = vrot.lane.b32.xlu0 %v2749, 24
      %v2822 = vpop.permute.xlu0 %2821
      %2823 = vrot.lane.b32.xlu0 %v2752, 24
      %v2824 = vpop.permute.xlu0 %2823
      %2825 = vrot.lane.b32.xlu0 %v2754, 24
      %v2826 = vpop.permute.xlu0 %2825
      %2827 = vrot.lane.b32.xlu0 %v2757, 24
      %v2828 = vpop.permute.xlu0 %2827
      %2829 = vrot.lane.b32.xlu0 %v2759, 24
      %v2830 = vpop.permute.xlu0 %2829
      %2831 = vrot.lane.b32.xlu0 %v2762, 24
      %v2832 = vpop.permute.xlu0 %2831
      %2833 = vrot.lane.b32.xlu0 %v2764, 24
      %v2834 = vpop.permute.xlu0 %2833
      %2835 = vrot.lane.b32.xlu0 %v2767, 24
      %v2836 = vpop.permute.xlu0 %2835
      %2837 = vrot.lane.b32.xlu0 %v2769, 24
      %v2838 = vpop.permute.xlu0 %2837
      %2839 = vrot.lane.b32.xlu0 %v2772, 24
      %v2840 = vpop.permute.xlu0 %2839
      %2841 = vrot.lane.b32.xlu0 %v2774, 24
      %v2842 = vpop.permute.xlu0 %2841
      %2843 = vrot.lane.b32.xlu0 %v2777, 24
      %v2844 = vpop.permute.xlu0 %2843
      %2845 = vrot.lane.b32.xlu0 %v2779, 24
      %v2846 = vpop.permute.xlu0 %2845
      %2847 = vrot.lane.b32.xlu0 %v2782, 24
      %v2848 = vpop.permute.xlu0 %2847
      %2849 = vrot.lane.b32.xlu0 %v2784, 24
      %v2850 = vpop.permute.xlu0 %2849
      %2851 = vrot.lane.b32.xlu0 %v2787, 24
      %v2852 = vpop.permute.xlu0 %2851
      %2853 = vrot.lane.b32.xlu0 %v2789, 24
      %v2854 = vpop.permute.xlu0 %2853
      %2855 = vrot.lane.b32.xlu0 %v2792, 24
      %v2856 = vpop.permute.xlu0 %2855
      %2857 = vrot.lane.b32.xlu0 %v2794, 24
      %v2858 = vpop.permute.xlu0 %2857
      %vm2891 = vcmask 97280
      %v2892 = vsel %vm2891, %v2443, %v2620
      %v2893 = vsel %vm2891, %v2444, %v2622
      %v2894 = vsel %vm2891, %v2446, %v2624
      %v2895 = vsel %vm2891, %v2447, %v2626
      %v2896 = vsel %vm2891, %v2449, %v2628
      %v2897 = vsel %vm2891, %v2450, %v2630
      %v2898 = vsel %vm2891, %v2452, %v2632
      %v2899 = vsel %vm2891, %v2453, %v2634
      %v2900 = vsel %vm2891, %v2455, %v2636
      %v2901 = vsel %vm2891, %v2456, %v2638
      %v2902 = vsel %vm2891, %v2458, %v2640
      %v2903 = vsel %vm2891, %v2459, %v2642
      %v2904 = vsel %vm2891, %v2461, %v2644
      %v2905 = vsel %vm2891, %v2462, %v2646
      %v2906 = vsel %vm2891, %v2464, %v2648
      %v2907 = vsel %vm2891, %v2465, %v2650
      %v2908 = vsel %vm2891, %v2467, %v2652
      %v2909 = vsel %vm2891, %v2468, %v2654
      %v2910 = vsel %vm2891, %v2470, %v2656
      %v2911 = vsel %vm2891, %v2471, %v2658
      %v2912 = vsel %vm2891, %v2473, %v2660
      %v2913 = vsel %vm2891, %v2474, %v2662
      %v2914 = vsel %vm2891, %v2476, %v2664
      %v2915 = vsel %vm2891, %v2477, %v2666
      %v2916 = vsel %vm2891, %v2479, %v2668
      %v2917 = vsel %vm2891, %v2480, %v2670
      %v2918 = vsel %vm2891, %v2482, %v2672
      %v2919 = vsel %vm2891, %v2483, %v2674
      %v2920 = vsel %vm2891, %v2485, %v2676
      %v2921 = vsel %vm2891, %v2486, %v2678
      %v2922 = vsel %vm2891, %v2488, %v2680
      %v2923 = vsel %vm2891, %v2489, %v2682
      %v2924 = vsel %vm1478, %v2892, %v2796
      %v2925 = vsel %vm1478, %v2893, %v2798
      %v2926 = vsel %vm1478, %v2894, %v2800
      %v2927 = vsel %vm1478, %v2895, %v2802
      %v2928 = vsel %vm1478, %v2896, %v2804
      %v2929 = vsel %vm1478, %v2897, %v2806
      %v2930 = vsel %vm1478, %v2898, %v2808
      %v2931 = vsel %vm1478, %v2899, %v2810
      %v2932 = vsel %vm1478, %v2900, %v2812
      %v2933 = vsel %vm1478, %v2901, %v2814
      %v2934 = vsel %vm1478, %v2902, %v2816
      %v2935 = vsel %vm1478, %v2903, %v2818
      %v2936 = vsel %vm1478, %v2904, %v2820
      %v2937 = vsel %vm1478, %v2905, %v2822
      %v2938 = vsel %vm1478, %v2906, %v2824
      %v2939 = vsel %vm1478, %v2907, %v2826
      %v2940 = vsel %vm1478, %v2908, %v2828
      %v2941 = vsel %vm1478, %v2909, %v2830
      %v2942 = vsel %vm1478, %v2910, %v2832
      %v2943 = vsel %vm1478, %v2911, %v2834
      %v2944 = vsel %vm1478, %v2912, %v2836
      %v2945 = vsel %vm1478, %v2913, %v2838
      %v2946 = vsel %vm1478, %v2914, %v2840
      %v2947 = vsel %vm1478, %v2915, %v2842
      %v2948 = vsel %vm1478, %v2916, %v2844
      %v2949 = vsel %vm1478, %v2917, %v2846
      %v2950 = vsel %vm1478, %v2918, %v2848
      %v2951 = vsel %vm1478, %v2919, %v2850
      %v2952 = vsel %vm1478, %v2920, %v2852
      %v2953 = vsel %vm1478, %v2921, %v2854
      %v2954 = vsel %vm1478, %v2922, %v2856
      %v2955 = vsel %vm1478, %v2923, %v2858
      %v2956 = vld [vmem:[%s4] sm:$0xff]
      %v2957 = vld [vmem:[%s4 + $0x8] sm:$0xff]
      %v2958 = vld [vmem:[%s4 + $0x10] sm:$0xff]
      %v2959 = vld [vmem:[%s4 + $0x18] sm:$0xff]
      %v2960 = vld [vmem:[%s4 + $0x20] sm:$0xf]
      %v2961 = vld [vmem:[%s5] sm:$0x1]
      %v2963 = vlaneseq
      %v2964 = vshrl.u32 %v2963, 7
      %v2965 = vsub.s32 0, %v2964
      %v2966 = vrot.slane %v2961, %v2965
      %vm2968 = vcmask 293888
      %v2970 = vsel %vm2968, %v2924, 0
      %v2973 = vsel %vm2968, %v2925, 0
      %v2976 = vsel %vm2968, %v2926, 0
      %v2979 = vsel %vm2968, %v2927, 0
      %v2982 = vsel %vm2968, %v2928, 0
      %v2985 = vsel %vm2968, %v2929, 0
      %v2988 = vsel %vm2968, %v2930, 0
      %v2991 = vsel %vm2968, %v2931, 0
      %v2994 = vsel %vm2968, %v2932, 0
      %v2997 = vsel %vm2968, %v2933, 0
      %v3000 = vsel %vm2968, %v2934, 0
      %v3003 = vsel %vm2968, %v2935, 0
      %v3006 = vsel %vm2968, %v2936, 0
      %v3009 = vsel %vm2968, %v2937, 0
      %v3012 = vsel %vm2968, %v2938, 0
      %v3015 = vsel %vm2968, %v2939, 0
      %v3018 = vsel %vm2968, %v2940, 0
      %v3021 = vsel %vm2968, %v2941, 0
      %v3024 = vsel %vm2968, %v2942, 0
      %v3027 = vsel %vm2968, %v2943, 0
      %v3030 = vsel %vm2968, %v2944, 0
      %v3033 = vsel %vm2968, %v2945, 0
      %v3036 = vsel %vm2968, %v2946, 0
      %v3039 = vsel %vm2968, %v2947, 0
      %v3042 = vsel %vm2968, %v2948, 0
      %v3045 = vsel %vm2968, %v2949, 0
      %v3048 = vsel %vm2968, %v2950, 0
      %v3051 = vsel %vm2968, %v2951, 0
      %v3054 = vsel %vm2968, %v2952, 0
      %v3057 = vsel %vm2968, %v2953, 0
      %v3060 = vsel %vm2968, %v2954, 0
      %v3063 = vsel %vm2968, %v2955, 0
      %vm3065 = vcmask 1043456
      %v3067 = vsel %vm3065, %v2960, 0
      %3069 = vmatprep.subr.mxu0 0.0
      %3070 = vmatpush1.msra.mxu0 0.0
      %3071 = vmatprep.subr.mxu0 0.0
      %3072 = vmatpush1.msra.mxu0 0.0
      %3073 = vmatprep.subr.mxu0 0.0
      %3074 = vmatpush1.msra.mxu0 0.0
      %3075 = vmatprep.subr.mxu0 0.0
      %3076 = vmatpush1.msra.mxu0 0.0
      %3077 = vmatprep.subr.mxu0 0.0
      %3078 = vmatpush1.msra.mxu0 0.0
      %3079 = vmatprep.subr.mxu0 0.0
      %3080 = vmatpush1.msra.mxu0 0.0
      %3081 = vmatprep.subr.mxu0 0.0
      %3082 = vmatpush1.msra.mxu0 0.0
      %3083 = vmatprep.subr.mxu0 0.0
      %3084 = vmatpush1.msra.mxu0 0.0
      %3085 = vmatprep.subr.mxu0 0.0
      %3086 = vmatpush1.msra.mxu0 0.0
      %3087 = vmatprep.subr.mxu0 0.0
      %3088 = vmatpush1.msra.mxu0 0.0
      %3089 = vmatprep.subr.mxu0 0.0
      %3090 = vmatpush1.msra.mxu0 0.0
      %3091 = vmatprep.subr.mxu0 0.0
      %3092 = vmatpush1.msra.mxu0 %v3067
      %3093 = vmatprep.subr.mxu0 0.0
      %3094 = vmatpush1.msra.mxu0 %v2959
      %3095 = vmatprep.subr.mxu0 0.0
      %3096 = vmatpush1.msra.mxu0 %v2958
      %3097 = vmatprep.subr.mxu0 0.0
      %3098 = vmatpush1.msra.mxu0 %v2957
      %3099 = vmatprep.subr.mxu0 0.0
      %3100 = vmatpush1.msra.mxu0 %v2956
      %3101 = vmatprep.subr.mxu0 0.0
      %3102 = vmatpush2.msra.mxu0 0.0
      %3103 = vmatprep.subr.mxu0 0.0
      %3104 = vmatpush2.msra.mxu0 0.0
      %3105 = vmatprep.subr.mxu0 0.0
      %3106 = vmatpush2.msra.mxu0 0.0
      %3107 = vmatprep.subr.mxu0 0.0
      %3108 = vmatpush2.msra.mxu0 0.0
      %3109 = vmatprep.subr.mxu0 0.0
      %3110 = vmatpush2.msra.mxu0 0.0
      %3111 = vmatprep.subr.mxu0 0.0
      %3112 = vmatpush2.msra.mxu0 0.0
      %3113 = vmatprep.subr.mxu0 0.0
      %3114 = vmatpush2.msra.mxu0 0.0
      %3115 = vmatprep.subr.mxu0 0.0
      %3116 = vmatpush2.msra.mxu0 0.0
      %3117 = vmatprep.subr.mxu0 0.0
      %3118 = vmatpush2.msra.mxu0 0.0
      %3119 = vmatprep.subr.mxu0 0.0
      %3120 = vmatpush2.msra.mxu0 0.0
      %3121 = vmatprep.subr.mxu0 0.0
      %3122 = vmatpush2.msra.mxu0 0.0
      %3123 = vmatprep.subr.mxu0 0.0
      %3124 = vmatpush2.msra.mxu0 0.0
      %3125 = vmatprep.subr.mxu0 0.0
      %3126 = vmatpush2.msra.mxu0 0.0
      %3127 = vmatprep.subr.mxu0 0.0
      %3128 = vmatpush2.msra.mxu0 0.0
      %3129 = vmatprep.subr.mxu0 0.0
      %3130 = vmatpush2.msra.mxu0 0.0
      %3131 = vmatprep.subr.mxu0 0.0
      %3132 = vmatpush2.msra.mxu0 0.0
      %3133 = vmatprep.mubr.f32.mxu0 0.0
      %3134 = vmatmul.mubr.f32.gmra.mxu0 %v2970
      %v3135 = vpop.f32.mrf.mxu0
      %v3136 = vadd.f32 %v2966, %v3135
      %v3137 = vpop.f32.mrf.mxu0
      %3138 = vmatprep.mubr.f32.mxu0 0.0
      %3139 = vmatmul.mubr.f32.gmra.mxu0 %v2973
      %v3140 = vpop.f32.mrf.mxu0
      %v3141 = vadd.f32 %v2966, %v3140
      %v3142 = vpop.f32.mrf.mxu0
      %3143 = vmatprep.mubr.f32.mxu0 0.0
      %3144 = vmatmul.mubr.f32.gmra.mxu0 %v2976
      %v3145 = vpop.f32.mrf.mxu0
      %v3146 = vadd.f32 %v2966, %v3145
      %v3147 = vpop.f32.mrf.mxu0
      %3148 = vmatprep.mubr.f32.mxu0 0.0
      %3149 = vmatmul.mubr.f32.gmra.mxu0 %v2979
      %v3150 = vpop.f32.mrf.mxu0
      %v3151 = vadd.f32 %v2966, %v3150
      %v3152 = vpop.f32.mrf.mxu0
      %3153 = vmatprep.mubr.f32.mxu0 0.0
      %3154 = vmatmul.mubr.f32.gmra.mxu0 %v2982
      %v3155 = vpop.f32.mrf.mxu0
      %v3156 = vadd.f32 %v2966, %v3155
      %v3157 = vpop.f32.mrf.mxu0
      %3158 = vmatprep.mubr.f32.mxu0 0.0
      %3159 = vmatmul.mubr.f32.gmra.mxu0 %v2985
      %v3160 = vpop.f32.mrf.mxu0
      %v3161 = vadd.f32 %v2966, %v3160
      %v3162 = vpop.f32.mrf.mxu0
      %3163 = vmatprep.mubr.f32.mxu0 0.0
      %3164 = vmatmul.mubr.f32.gmra.mxu0 %v2988
      %v3165 = vpop.f32.mrf.mxu0
      %v3166 = vadd.f32 %v2966, %v3165
      %v3167 = vpop.f32.mrf.mxu0
      %3168 = vmatprep.mubr.f32.mxu0 0.0
      %3169 = vmatmul.mubr.f32.gmra.mxu0 %v2991
      %v3170 = vpop.f32.mrf.mxu0
      %v3171 = vadd.f32 %v2966, %v3170
      %v3172 = vpop.f32.mrf.mxu0
      %3173 = vmatprep.mubr.f32.mxu0 0.0
      %3174 = vmatmul.mubr.f32.gmra.mxu0 %v2994
      %v3175 = vpop.f32.mrf.mxu0
      %v3176 = vadd.f32 %v2966, %v3175
      %v3177 = vpop.f32.mrf.mxu0
      %3178 = vmatprep.mubr.f32.mxu0 0.0
      %3179 = vmatmul.mubr.f32.gmra.mxu0 %v2997
      %v3180 = vpop.f32.mrf.mxu0
      %v3181 = vadd.f32 %v2966, %v3180
      %v3182 = vpop.f32.mrf.mxu0
      %3183 = vmatprep.mubr.f32.mxu0 0.0
      %3184 = vmatmul.mubr.f32.gmra.mxu0 %v3000
      %v3185 = vpop.f32.mrf.mxu0
      %v3186 = vadd.f32 %v2966, %v3185
      %v3187 = vpop.f32.mrf.mxu0
      %3188 = vmatprep.mubr.f32.mxu0 0.0
      %3189 = vmatmul.mubr.f32.gmra.mxu0 %v3003
      %v3190 = vpop.f32.mrf.mxu0
      %v3191 = vadd.f32 %v2966, %v3190
      %v3192 = vpop.f32.mrf.mxu0
      %3193 = vmatprep.mubr.f32.mxu0 0.0
      %3194 = vmatmul.mubr.f32.gmra.mxu0 %v3006
      %v3195 = vpop.f32.mrf.mxu0
      %v3196 = vadd.f32 %v2966, %v3195
      %v3197 = vpop.f32.mrf.mxu0
      %3198 = vmatprep.mubr.f32.mxu0 0.0
      %3199 = vmatmul.mubr.f32.gmra.mxu0 %v3009
      %v3200 = vpop.f32.mrf.mxu0
      %v3201 = vadd.f32 %v2966, %v3200
      %v3202 = vpop.f32.mrf.mxu0
      %3203 = vmatprep.mubr.f32.mxu0 0.0
      %3204 = vmatmul.mubr.f32.gmra.mxu0 %v3012
      %v3205 = vpop.f32.mrf.mxu0
      %v3206 = vadd.f32 %v2966, %v3205
      %v3207 = vpop.f32.mrf.mxu0
      %3208 = vmatprep.mubr.f32.mxu0 0.0
      %3209 = vmatmul.mubr.f32.gmra.mxu0 %v3015
      %v3210 = vpop.f32.mrf.mxu0
      %v3211 = vadd.f32 %v2966, %v3210
      %v3212 = vpop.f32.mrf.mxu0
      %3213 = vmatprep.mubr.f32.mxu0 0.0
      %3214 = vmatmul.mubr.f32.gmra.mxu0 %v3018
      %v3215 = vpop.f32.mrf.mxu0
      %v3216 = vadd.f32 %v2966, %v3215
      %v3217 = vpop.f32.mrf.mxu0
      %3218 = vmatprep.mubr.f32.mxu0 0.0
      %3219 = vmatmul.mubr.f32.gmra.mxu0 %v3021
      %v3220 = vpop.f32.mrf.mxu0
      %v3221 = vadd.f32 %v2966, %v3220
      %v3222 = vpop.f32.mrf.mxu0
      %3223 = vmatprep.mubr.f32.mxu0 0.0
      %3224 = vmatmul.mubr.f32.gmra.mxu0 %v3024
      %v3225 = vpop.f32.mrf.mxu0
      %v3226 = vadd.f32 %v2966, %v3225
      %v3227 = vpop.f32.mrf.mxu0
      %3228 = vmatprep.mubr.f32.mxu0 0.0
      %3229 = vmatmul.mubr.f32.gmra.mxu0 %v3027
      %v3230 = vpop.f32.mrf.mxu0
      %v3231 = vadd.f32 %v2966, %v3230
      %v3232 = vpop.f32.mrf.mxu0
      %3233 = vmatprep.mubr.f32.mxu0 0.0
      %3234 = vmatmul.mubr.f32.gmra.mxu0 %v3030
      %v3235 = vpop.f32.mrf.mxu0
      %v3236 = vadd.f32 %v2966, %v3235
      %v3237 = vpop.f32.mrf.mxu0
      %3238 = vmatprep.mubr.f32.mxu0 0.0
      %3239 = vmatmul.mubr.f32.gmra.mxu0 %v3033
      %v3240 = vpop.f32.mrf.mxu0
      %v3241 = vadd.f32 %v2966, %v3240
      %v3242 = vpop.f32.mrf.mxu0
      %3243 = vmatprep.mubr.f32.mxu0 0.0
      %3244 = vmatmul.mubr.f32.gmra.mxu0 %v3036
      %v3245 = vpop.f32.mrf.mxu0
      %v3246 = vadd.f32 %v2966, %v3245
      %v3247 = vpop.f32.mrf.mxu0
      %3248 = vmatprep.mubr.f32.mxu0 0.0
      %3249 = vmatmul.mubr.f32.gmra.mxu0 %v3039
      %v3250 = vpop.f32.mrf.mxu0
      %v3251 = vadd.f32 %v2966, %v3250
      %v3252 = vpop.f32.mrf.mxu0
      %3253 = vmatprep.mubr.f32.mxu0 0.0
      %3254 = vmatmul.mubr.f32.gmra.mxu0 %v3042
      %v3255 = vpop.f32.mrf.mxu0
      %v3256 = vadd.f32 %v2966, %v3255
      %v3257 = vpop.f32.mrf.mxu0
      %3258 = vmatprep.mubr.f32.mxu0 0.0
      %3259 = vmatmul.mubr.f32.gmra.mxu0 %v3045
      %v3260 = vpop.f32.mrf.mxu0
      %v3261 = vadd.f32 %v2966, %v3260
      %v3262 = vpop.f32.mrf.mxu0
      %3263 = vmatprep.mubr.f32.mxu0 0.0
      %3264 = vmatmul.mubr.f32.gmra.mxu0 %v3048
      %v3265 = vpop.f32.mrf.mxu0
      %v3266 = vadd.f32 %v2966, %v3265
      %v3267 = vpop.f32.mrf.mxu0
      %3268 = vmatprep.mubr.f32.mxu0 0.0
      %3269 = vmatmul.mubr.f32.gmra.mxu0 %v3051
      %v3270 = vpop.f32.mrf.mxu0
      %v3271 = vadd.f32 %v2966, %v3270
      %v3272 = vpop.f32.mrf.mxu0
      %3273 = vmatprep.mubr.f32.mxu0 0.0
      %3274 = vmatmul.mubr.f32.gmra.mxu0 %v3054
      %v3275 = vpop.f32.mrf.mxu0
      %v3276 = vadd.f32 %v2966, %v3275
      %v3277 = vpop.f32.mrf.mxu0
      %3278 = vmatprep.mubr.f32.mxu0 0.0
      %3279 = vmatmul.mubr.f32.gmra.mxu0 %v3057
      %v3280 = vpop.f32.mrf.mxu0
      %v3281 = vadd.f32 %v2966, %v3280
      %v3282 = vpop.f32.mrf.mxu0
      %3283 = vmatprep.mubr.f32.mxu0 0.0
      %3284 = vmatmul.mubr.f32.gmra.mxu0 %v3060
      %v3285 = vpop.f32.mrf.mxu0
      %v3286 = vadd.f32 %v2966, %v3285
      %v3287 = vpop.f32.mrf.mxu0
      %3288 = vmatprep.mubr.f32.mxu0 0.0
      %3289 = vmatmul.mubr.f32.gmra.mxu0 %v3063
      %v3290 = vpop.f32.mrf.mxu0
      %v3291 = vadd.f32 %v2966, %v3290
      %v3292 = vpop.f32.mrf.mxu0
      %3293 = vdwg.mxu0
      %v3294 = vmax.f32 %v3136, 0.0
      %v3295 = vmax.f32 %v3141, 0.0
      %v3296 = vmax.f32 %v3146, 0.0
      %v3297 = vmax.f32 %v3151, 0.0
      %v3298 = vmax.f32 %v3156, 0.0
      %v3299 = vmax.f32 %v3161, 0.0
      %v3300 = vmax.f32 %v3166, 0.0
      %v3301 = vmax.f32 %v3171, 0.0
      %v3302 = vmax.f32 %v3176, 0.0
      %v3303 = vmax.f32 %v3181, 0.0
      %v3304 = vmax.f32 %v3186, 0.0
      %v3305 = vmax.f32 %v3191, 0.0
      %v3306 = vmax.f32 %v3196, 0.0
      %v3307 = vmax.f32 %v3201, 0.0
      %v3308 = vmax.f32 %v3206, 0.0
      %v3309 = vmax.f32 %v3211, 0.0
      %v3310 = vmax.f32 %v3216, 0.0
      %v3311 = vmax.f32 %v3221, 0.0
      %v3312 = vmax.f32 %v3226, 0.0
      %v3313 = vmax.f32 %v3231, 0.0
      %v3314 = vmax.f32 %v3236, 0.0
      %v3315 = vmax.f32 %v3241, 0.0
      %v3316 = vmax.f32 %v3246, 0.0
      %v3317 = vmax.f32 %v3251, 0.0
      %v3318 = vmax.f32 %v3256, 0.0
      %v3319 = vmax.f32 %v3261, 0.0
      %v3320 = vmax.f32 %v3266, 0.0
      %v3321 = vmax.f32 %v3271, 0.0
      %v3322 = vmax.f32 %v3276, 0.0
      %v3323 = vmax.f32 %v3281, 0.0
      %v3324 = vmax.f32 %v3286, 0.0
      %v3325 = vmax.f32 %v3291, 0.0
      %3326 = vst.msk [vmem:[%s271] sm:$0xff] %vm520, %v3294
      %3327 = vst.msk [vmem:[%s271 + $0x8] sm:$0xff] %vm520, %v3295
      %3328 = vst.msk [vmem:[%s271 + $0x10] sm:$0xff] %vm520, %v3296
      %3329 = vst.msk [vmem:[%s271 + $0x18] sm:$0xff] %vm520, %v3297
      %3330 = vst.msk [vmem:[%s271 + $0x20] sm:$0xff] %vm520, %v3298
      %3331 = vst.msk [vmem:[%s271 + $0x28] sm:$0xff] %vm520, %v3299
      %3332 = vst.msk [vmem:[%s271 + $0x30] sm:$0xff] %vm520, %v3300
      %3333 = vst.msk [vmem:[%s271 + $0x38] sm:$0xff] %vm520, %v3301
      %3334 = vst.msk [vmem:[%s271 + $0x40] sm:$0xff] %vm520, %v3302
      %3335 = vst.msk [vmem:[%s271 + $0x48] sm:$0xff] %vm520, %v3303
      %3336 = vst.msk [vmem:[%s271 + $0x50] sm:$0xff] %vm520, %v3304
      %3337 = vst.msk [vmem:[%s271 + $0x58] sm:$0xff] %vm520, %v3305
      %3338 = vst.msk [vmem:[%s271 + $0x60] sm:$0xff] %vm520, %v3306
      %3339 = vst.msk [vmem:[%s271 + $0x68] sm:$0xff] %vm520, %v3307
      %3340 = vst.msk [vmem:[%s271 + $0x70] sm:$0xff] %vm520, %v3308
      %3341 = vst.msk [vmem:[%s271 + $0x78] sm:$0xff] %vm520, %v3309
      %3342 = vst.msk [vmem:[%s271 + $0x80] sm:$0xff] %vm520, %v3310
      %3343 = vst.msk [vmem:[%s271 + $0x88] sm:$0xff] %vm520, %v3311
      %3344 = vst.msk [vmem:[%s271 + $0x90] sm:$0xff] %vm520, %v3312
      %3345 = vst.msk [vmem:[%s271 + $0x98] sm:$0xff] %vm520, %v3313
      %3346 = vst.msk [vmem:[%s271 + $0xa0] sm:$0xff] %vm520, %v3314
      %3347 = vst.msk [vmem:[%s271 + $0xa8] sm:$0xff] %vm520, %v3315
      %3348 = vst.msk [vmem:[%s271 + $0xb0] sm:$0xff] %vm520, %v3316
      %3349 = vst.msk [vmem:[%s271 + $0xb8] sm:$0xff] %vm520, %v3317
      %3350 = vst.msk [vmem:[%s271 + $0xc0] sm:$0xff] %vm520, %v3318
      %3351 = vst.msk [vmem:[%s271 + $0xc8] sm:$0xff] %vm520, %v3319
      %3352 = vst.msk [vmem:[%s271 + $0xd0] sm:$0xff] %vm520, %v3320
      %3353 = vst.msk [vmem:[%s271 + $0xd8] sm:$0xff] %vm520, %v3321
      %3354 = vst.msk [vmem:[%s271 + $0xe0] sm:$0xff] %vm520, %v3322
      %3355 = vst.msk [vmem:[%s271 + $0xe8] sm:$0xff] %vm520, %v3323
      %3356 = vst.msk [vmem:[%s271 + $0xf0] sm:$0xff] %vm520, %v3324
      %3357 = vst.msk [vmem:[%s271 + $0xf8] sm:$0xff] %vm520, %v3325
      %p3358 = scmp.lt.s32.totalorder %s17, 1
      %s3359 = scalar_select %p3358, %s17, 1
      %s3360 = smul.addr %s3359, 32
      %s3361 = smul.addr %s3360, 8
      %s3362 = scalar_lea.vmem %s6, %s3361
      // Predicated region
      $region45: #{up_forward.1} parent=43 // pred_check
        %p3363 = pneg %p171
      $region46: #{up_forward.1} parent=43 // pred_check_branch
        %3365 = sbr.rel (%p3363) target = $region48
      $region47: #{up_forward.1} parent=43 // pred_region
        _
      $region48: #{up_forward.1} parent=43 // pred_fallthru
        _
    $region44: #{up_forward.1} parent=5 // pred_fallthru
      _
    %p3366 = scmp.le.s32.totalorder 2, %s12
    // Predicated region
    $region49: #{up_forward.1} parent=5 // pred_check
      %p3367 = pneg %p3366
    $region50: #{up_forward.1} parent=5 // pred_check_branch
      %3369 = sbr.rel (%p3367) target = $region52
    $region51: #{up_forward.1} parent=5 // pred_region
      %s3370 = ssub.s32 %s12, 2
      // Predicated region
      $region53: #{up_forward.1} parent=51 // pred_check
        %p3371 = pneg %p177
      $region54: #{up_forward.1} parent=51 // pred_check_branch
        %3373 = sbr.rel (%p3371) target = $region56
      $region55: #{up_forward.1} parent=51 // pred_region
        %p3374 = scmp.lt.s32.totalorder %s18, 1
        %s3375 = scalar_select %p3374, %s18, 1
        %s3376 = smul.addr %s3375, 32
        %s3377 = smul.addr %s3376, 8
        %s3378 = scalar_lea.vmem %s6, %s3377
      $region56: #{up_forward.1} parent=51 // pred_fallthru
        _
    $region52: #{up_forward.1} parent=5 // pred_fallthru
      _
  $region6: #{up_forward.1} parent=0 // loop_footer
    %s16 = sadd.s32 1, %s12
  $region7: #{up_forward.1} parent=0 // loop_footer_branch
    %11 = sbr.rel target = $region3
  $region8: #{up_forward.1} parent=0 // loop_exit
    _

</llo_original>
